<compile_context>
chip_gen: v6e
topology: v6e:2x2x1
jax: 0.10.0
libtpu: 0.0.40
codegen_flags: <defaults>
</compile_context>

<pallas_src>
import functools

import jax
import jax.numpy as jnp
from jax.experimental import pallas as pl
from jax.experimental.pallas import tpu as pltpu


# ------------------------------------------------------------------ helpers

def _layernorm(x, g, b, eps=1e-8):
    mu = jnp.mean(x, axis=-1, keepdims=True)
    var = jnp.mean((x - mu) ** 2, axis=-1, keepdims=True)
    return (x - mu) * jax.lax.rsqrt(var + eps) * g + b


def _pick_batch_tile(B, T, target_rows=256):
    """Smallest divisor of B giving >= target_rows matmul rows (MXU fill)."""
    for tb in range(1, B + 1):
        if B % tb == 0 and tb * T >= target_rows:
            return tb
    return B


# ------------------------------------------------------------------ kernel

def sasrec_fused_kernel(num_heads,
                        x_ref,
                        ln1_g_ref, ln1_b_ref,
                        wq_ref, bq_ref, wkv_ref, bkv_ref, wo_ref, bo_ref,
                        ln2_g_ref, ln2_b_ref,
                        w1_ref, b1_ref, w2_ref, b2_ref,
                        last_g_ref, last_b_ref,
                        pos_ref, neg_ref,
                        logits_ref,
                        act_ref):
    """All SASRec blocks + final layernorm/logit head.

    grid = (batch_tiles, num_layers); the residual stream lives in the VMEM
    scratch `act_ref` across the (arbitrary) layer axis, so it never hits HBM.
    """
    layer = pl.program_id(1)
    n_layers = pl.num_programs(1)

    @pl.when(layer == 0)
    def _():
        act_ref[...] = x_ref[...].astype(act_ref.dtype)

    tb, T, H = act_ref.shape
    nh = num_heads
    dh = H // nh
    N = tb * T

    x = act_ref[...].reshape(N, H)                     # f32 residual stream

    # ----- Q = attention_layernorm(seqs)   (f32 statistics)
    q_in = _layernorm(x, ln1_g_ref[...], ln1_b_ref[...])

    # ----- projections: bf16 MXU, f32 accumulation; K/V fused in one matmul
    q = jnp.dot(q_in.astype(jnp.bfloat16), wq_ref[...],
                preferred_element_type=jnp.float32) + bq_ref[...]
    kv = jnp.dot(x.astype(jnp.bfloat16), wkv_ref[...],
                 preferred_element_type=jnp.float32) + bkv_ref[...]
    k = kv[:, :H]
    v = kv[:, H:]

    # ----- batched multi-head attention (heads folded into the batch dim)
    scale = 1.0 / (dh ** 0.5)

    def to_heads(t):
        return (t.reshape(tb, T, nh, dh)
                 .transpose(0, 2, 1, 3)
                 .reshape(tb * nh, T, dh))

    qh = to_heads(q * scale).astype(jnp.bfloat16)      # scale on Q, not S
    kh = to_heads(k).astype(jnp.bfloat16)
    vh = to_heads(v).astype(jnp.bfloat16)

    s = jnp.einsum('ztd,zsd->zts', qh, kh,
                   preferred_element_type=jnp.float32)           # (tb*nh,T,T)

    # in-kernel causal mask: -1e9 strictly above the diagonal
    row = jax.lax.broadcasted_iota(jnp.int32, (T, T), 0)
    col = jax.lax.broadcasted_iota(jnp.int32, (T, T), 1)
    s = s + jnp.where(col > row, jnp.float32(-1e9), jnp.float32(0.0))[None]

    s = s - jnp.max(s, axis=-1, keepdims=True)
    p = jnp.exp(s)
    p = p * pl.reciprocal(jnp.sum(p, axis=-1, keepdims=True), approx=True)

    o = jnp.einsum('zts,zsd->ztd', p.astype(jnp.bfloat16), vh,
                   preferred_element_type=jnp.float32)           # (tb*nh,T,dh)
    attn = (o.reshape(tb, nh, T, dh)
             .transpose(0, 2, 1, 3)
             .reshape(N, H))

    mha = jnp.dot(attn.astype(jnp.bfloat16), wo_ref[...],
                  preferred_element_type=jnp.float32) + bo_ref[...]

    # seqs = Q + mha_outputs   (residual against the layernormed Q)
    s1 = q_in + mha

    # seqs = forward_layernorm(seqs); seqs = PointWiseFeedForward(seqs)
    h2 = _layernorm(s1, ln2_g_ref[...], ln2_b_ref[...])
    ff = jnp.maximum(
        jnp.dot(h2.astype(jnp.bfloat16), w1_ref[...],
                preferred_element_type=jnp.float32) + b1_ref[...], 0.0)
    ff = jnp.dot(ff.astype(jnp.bfloat16), w2_ref[...],
                 preferred_element_type=jnp.float32) + b2_ref[...]
    out = ff + h2                              # PointWiseFeedForward residual

    act_ref[...] = out.reshape(tb, T, H)

    # ----- final layer: last_layernorm + pos/neg logits (lane-dense slab)
    @pl.when(layer == n_layers - 1)
    def _():
        ln = _layernorm(out, last_g_ref[...], last_b_ref[...])
        posf = pos_ref[...].astype(jnp.float32).reshape(N, H)
        negf = neg_ref[...].astype(jnp.float32).reshape(N, H)
        pos_row = jnp.sum(ln * posf, axis=-1).reshape(1, N)
        neg_row = jnp.sum(ln * negf, axis=-1).reshape(1, N)
        rows = jnp.concatenate([pos_row, neg_row], axis=0)       # (2, N)
        Np = logits_ref.shape[1]
        if Np > N:   # static pad to a multiple of 128 lanes (unmasked vst)
            rows = jnp.concatenate(
                [rows, jnp.zeros((2, Np - N), jnp.float32)], axis=1)
        logits_ref[...] = rows


# ------------------------------------------------------------------ wrapper

def run_sasrec(x, pos_embs, neg_embs, params, num_heads):
    B, T, H = x.shape
    L = params['wq'].shape[0]
    tb = _pick_batch_tile(B, T)
    assert B % tb == 0
    N = tb * T
    Np = ((N + 127) // 128) * 128

    def w_spec(shape):
        # per-layer weight block; leading (layer) dim squeezed out
        return pl.BlockSpec((None,) + shape, lambda b, l: (l, 0, 0))

    act_spec = pl.BlockSpec((tb, T, H), lambda b, l: (b, 0, 0))
    vec_spec = pl.BlockSpec((1, H), lambda b, l: (0, 0))

    out = pl.pallas_call(
        functools.partial(sasrec_fused_kernel, num_heads),
        grid=(B // tb, L),
        in_specs=[
            act_spec,                                  # embedded sequences
            w_spec((1, H)), w_spec((1, H)),            # attention LN gamma/beta
            w_spec((H, H)), w_spec((1, H)),            # Wq, bq
            w_spec((H, 2 * H)), w_spec((1, 2 * H)),    # fused Wkv, bkv
            w_spec((H, H)), w_spec((1, H)),            # Wo, bo
            w_spec((1, H)), w_spec((1, H)),            # forward LN gamma/beta
            w_spec((H, H)), w_spec((1, H)),            # conv1 (w, b)
            w_spec((H, H)), w_spec((1, H)),            # conv2 (w, b)
            vec_spec, vec_spec,                        # last LN gamma/beta
            act_spec, act_spec,                        # pos / neg embeddings
        ],
        out_specs=pl.BlockSpec((None, 2, Np), lambda b, l: (b, 0, 0)),
        out_shape=jax.ShapeDtypeStruct((B // tb, 2, Np), jnp.float32),
        scratch_shapes=[pltpu.VMEM((tb, T, H), jnp.float32)],
        compiler_params=pltpu.CompilerParams(
            dimension_semantics=("parallel", "arbitrary"),
            # TODO(synk): re-budget tb / this limit per generation (v7x has
            # only 64 MiB physical VMEM -> use roughly half the v6e tile).
            vmem_limit_bytes=32 * 1024 * 1024),
    )(x,
      params['ln1_g'], params['ln1_b'],
      params['wq'], params['bq'], params['wkv'], params['bkv'],
      params['wo'], params['bo'],
      params['ln2_g'], params['ln2_b'],
      params['w1'], params['b1'], params['w2'], params['b2'],
      params['last_ln_g'], params['last_ln_b'],
      pos_embs, neg_embs)

    logits = out[:, :, :N].reshape(B // tb, 2, tb, T)
    pos = logits[:, 0].reshape(B, T)
    neg = logits[:, 1].reshape(B, T)
    return pos, neg


# ------------------------------------------------------------------ params

def init_params(key, item_num, maxlen, hidden, num_blocks):
    """Deterministic synthetic parameters (shapes match the torch module).
    Matmul weights stored pre-transposed (in, out) and in bf16; K/V fused."""
    def nrm(k, shape, scale=0.02):
        return (scale * jax.random.normal(k, shape)).astype(jnp.float32)

    keys = iter(jax.random.split(key, 2 + num_blocks * 6))
    item_emb = nrm(next(keys), (item_num + 1, hidden)).at[0].set(0.0)  # pad idx 0
    pos_emb = nrm(next(keys), (maxlen + 1, hidden)).at[0].set(0.0)     # pad idx 0

    wq, wkv, wo, w1, w2 = [], [], [], [], []
    for _ in range(num_blocks):
        wq.append(nrm(next(keys), (hidden, hidden)))
        wk = nrm(next(keys), (hidden, hidden))
        wv = nrm(next(keys), (hidden, hidden))
        wkv.append(jnp.concatenate([wk, wv], axis=1))
        wo.append(nrm(next(keys), (hidden, hidden)))
        w1.append(nrm(next(keys), (hidden, hidden)))
        w2.append(nrm(next(keys), (hidden, hidden)))

    L, H = num_blocks, hidden
    zeros = jnp.zeros((L, 1, H), jnp.float32)
    ones = jnp.ones((L, 1, H), jnp.float32)
    return dict(
        item_emb=item_emb, pos_emb=pos_emb,
        ln1_g=ones, ln1_b=zeros,
        wq=jnp.stack(wq).astype(jnp.bfloat16), bq=zeros,
        wkv=jnp.stack(wkv).astype(jnp.bfloat16),
        bkv=jnp.zeros((L, 1, 2 * H), jnp.float32),
        wo=jnp.stack(wo).astype(jnp.bfloat16), bo=zeros,
        ln2_g=ones, ln2_b=zeros,
        w1=jnp.stack(w1).astype(jnp.bfloat16), b1=zeros,
        w2=jnp.stack(w2).astype(jnp.bfloat16), b2=zeros,
        last_ln_g=jnp.ones((1, H), jnp.float32),
        last_ln_b=jnp.zeros((1, H), jnp.float32),
    )


# ------------------------------------------------------------------ forward

def sasrec_forward(params, log_seqs, pos_seqs, neg_seqs, num_heads):
    item_emb = params['item_emb']
    pos_emb = params['pos_emb']
    B, T = log_seqs.shape
    H = item_emb.shape[1]

    # log2feats embedding stage (glue, plain JAX gathers)
    seqs = jnp.take(item_emb, log_seqs, axis=0) * (H ** 0.5)
    poss = jnp.arange(1, T + 1, dtype=jnp.int32)[None, :] * (log_seqs != 0)
    seqs = (seqs + jnp.take(pos_emb, poss, axis=0)).astype(jnp.float32)
    # emb_dropout: identity (eval)

    pos_embs = jnp.take(item_emb, pos_seqs, axis=0).astype(jnp.float32)
    neg_embs = jnp.take(item_emb, neg_seqs, axis=0).astype(jnp.float32)

    return run_sasrec(seqs, pos_embs, neg_embs, params, num_heads)


# ------------------------------------------------------------------ main

if __name__ == "__main__":
    B, T, H = 2, 8, 32          # batch, maxlen, hidden_units
    num_heads = 2
    num_blocks = 2
    item_num = 50

    key = jax.random.PRNGKey(0)
    kp, ks, kpos, kneg = jax.random.split(key, 4)

    params = init_params(kp, item_num, T, H, num_blocks)

    # item id 0 is padding; include some padding at the front of the sequences
    log_seqs = jax.random.randint(ks, (B, T), 0, item_num + 1, dtype=jnp.int32)
    log_seqs = log_seqs.at[:, :2].set(0)
    pos_seqs = jax.random.randint(kpos, (B, T), 1, item_num + 1, dtype=jnp.int32)
    neg_seqs = jax.random.randint(kneg, (B, T), 1, item_num + 1, dtype=jnp.int32)

    pos_logits, neg_logits = sasrec_forward(params, log_seqs, pos_seqs,
                                            neg_seqs, num_heads)
    jax.block_until_ready((pos_logits, neg_logits))

    assert pos_logits.shape == (B, T) and neg_logits.shape == (B, T)
    print("KERNEL_OK")
</pallas_src>

<mosaic_0001>
module attributes {stable_mosaic.version = 11 : i64} {
  func.func @sasrec_fused_kernel(%arg0: i32, %arg1: i32, %arg2: memref<2x8x32xf32, #tpu.memory_space<vmem>>, %arg3: memref<1x1x32xf32, #tpu.memory_space<vmem>>, %arg4: memref<1x1x32xf32, #tpu.memory_space<vmem>>, %arg5: memref<1x32x32xbf16, #tpu.memory_space<vmem>>, %arg6: memref<1x1x32xf32, #tpu.memory_space<vmem>>, %arg7: memref<1x32x64xbf16, #tpu.memory_space<vmem>>, %arg8: memref<1x1x64xf32, #tpu.memory_space<vmem>>, %arg9: memref<1x32x32xbf16, #tpu.memory_space<vmem>>, %arg10: memref<1x1x32xf32, #tpu.memory_space<vmem>>, %arg11: memref<1x1x32xf32, #tpu.memory_space<vmem>>, %arg12: memref<1x1x32xf32, #tpu.memory_space<vmem>>, %arg13: memref<1x32x32xbf16, #tpu.memory_space<vmem>>, %arg14: memref<1x1x32xf32, #tpu.memory_space<vmem>>, %arg15: memref<1x32x32xbf16, #tpu.memory_space<vmem>>, %arg16: memref<1x1x32xf32, #tpu.memory_space<vmem>>, %arg17: memref<1x32xf32, #tpu.memory_space<vmem>>, %arg18: memref<1x32xf32, #tpu.memory_space<vmem>>, %arg19: memref<2x8x32xf32, #tpu.memory_space<vmem>>, %arg20: memref<2x8x32xf32, #tpu.memory_space<vmem>>, %arg21: memref<1x2x128xf32, #tpu.memory_space<vmem>>, %arg22: memref<2x8x32xf32, #tpu.memory_space<vmem>>) attributes {dimension_semantics = [#tpu.dimension_semantics<parallel>, #tpu.dimension_semantics<arbitrary>], iteration_bounds = array<i64: 1, 2>, scalar_prefetch = 0 : i64, scratch_operands = 1 : i64, tpu.core_type = #tpu.core_type<tc>, window_params = [{transform_indices = @transform_0, window_bounds = array<i64: 2, 8, 32>}, {transform_indices = @transform_1, window_bounds = array<i64: 1, 1, 32>}, {transform_indices = @transform_2, window_bounds = array<i64: 1, 1, 32>}, {transform_indices = @transform_3, window_bounds = array<i64: 1, 32, 32>}, {transform_indices = @transform_4, window_bounds = array<i64: 1, 1, 32>}, {transform_indices = @transform_5, window_bounds = array<i64: 1, 32, 64>}, {transform_indices = @transform_6, window_bounds = array<i64: 1, 1, 64>}, {transform_indices = @transform_7, window_bounds = array<i64: 1, 32, 32>}, {transform_indices = @transform_8, window_bounds = array<i64: 1, 1, 32>}, {transform_indices = @transform_9, window_bounds = array<i64: 1, 1, 32>}, {transform_indices = @transform_10, window_bounds = array<i64: 1, 1, 32>}, {transform_indices = @transform_11, window_bounds = array<i64: 1, 32, 32>}, {transform_indices = @transform_12, window_bounds = array<i64: 1, 1, 32>}, {transform_indices = @transform_13, window_bounds = array<i64: 1, 32, 32>}, {transform_indices = @transform_14, window_bounds = array<i64: 1, 1, 32>}, {pipeline_mode = #tpu.pipeline_mode<synchronous>, transform_indices = @transform_15, window_bounds = array<i64: 1, 32>}, {pipeline_mode = #tpu.pipeline_mode<synchronous>, transform_indices = @transform_16, window_bounds = array<i64: 1, 32>}, {transform_indices = @transform_17, window_bounds = array<i64: 2, 8, 32>}, {transform_indices = @transform_18, window_bounds = array<i64: 2, 8, 32>}, {transform_indices = @transform_19, window_bounds = array<i64: 1, 2, 128>}]} {
    %c0_i32 = arith.constant 0 : i32
    %0 = arith.cmpi eq, %arg1, %c0_i32 : i32
    %1 = arith.extui %0 : i1 to i32
    %c0_i32_0 = arith.constant 0 : i32
    %2 = arith.cmpi ne, %1, %c0_i32_0 : i32
    scf.if %2 {
      %c0_71 = arith.constant 0 : index
      %c0_72 = arith.constant 0 : index
      %c0_73 = arith.constant 0 : index
      %147 = vector.load %arg2[%c0_71, %c0_72, %c0_73] : memref<2x8x32xf32, #tpu.memory_space<vmem>>, vector<2x8x32xf32>
      %c0_74 = arith.constant 0 : index
      %c0_75 = arith.constant 0 : index
      %c0_76 = arith.constant 0 : index
      %148 = vector.load %arg22[%c0_74, %c0_75, %c0_76] : memref<2x8x32xf32, #tpu.memory_space<vmem>>, vector<2x8x32xf32>
      tpu.vector_store %arg22[%c0_74, %c0_75, %c0_76], %147 {strides = array<i32>} : memref<2x8x32xf32, #tpu.memory_space<vmem>>, vector<2x8x32xf32>,
    } else {
    }
    %c0 = arith.constant 0 : index
    %c0_1 = arith.constant 0 : index
    %c0_2 = arith.constant 0 : index
    %3 = vector.load %arg22[%c0, %c0_1, %c0_2] : memref<2x8x32xf32, #tpu.memory_space<vmem>>, vector<2x8x32xf32>
    %4 = vector.shape_cast %3 : vector<2x8x32xf32> to vector<16x32xf32>
    %c0_3 = arith.constant 0 : index
    %c0_4 = arith.constant 0 : index
    %c0_5 = arith.constant 0 : index
    %5 = vector.load %arg3[%c0_3, %c0_4, %c0_5] : memref<1x1x32xf32, #tpu.memory_space<vmem>>, vector<1x1x32xf32>
    %6 = vector.shape_cast %5 : vector<1x1x32xf32> to vector<1x32xf32>
    %c0_6 = arith.constant 0 : index
    %c0_7 = arith.constant 0 : index
    %c0_8 = arith.constant 0 : index
    %7 = vector.load %arg4[%c0_6, %c0_7, %c0_8] : memref<1x1x32xf32, #tpu.memory_space<vmem>>, vector<1x1x32xf32>
    %8 = vector.shape_cast %7 : vector<1x1x32xf32> to vector<1x32xf32>
    %cst = arith.constant dense<0.000000e+00> : vector<16xf32>
    %9 = vector.multi_reduction <add>, %4, %cst [1] : vector<16x32xf32> to vector<16xf32>
    %10 = vector.shape_cast %9 : vector<16xf32> to vector<16x1xf32>
    %cst_9 = arith.constant 3.200000e+01 : f32
    %11 = vector.broadcast %cst_9 : f32 to vector<16x1xf32>
    %12 = arith.divf %10, %11 : vector<16x1xf32>
    %13 = vector.broadcast %12 : vector<16x1xf32> to vector<16x32xf32>
    %14 = arith.subf %4, %13 : vector<16x32xf32>
    %15 = arith.mulf %14, %14 : vector<16x32xf32>
    %cst_10 = arith.constant dense<0.000000e+00> : vector<16xf32>
    %16 = vector.multi_reduction <add>, %15, %cst_10 [1] : vector<16x32xf32> to vector<16xf32>
    %17 = vector.shape_cast %16 : vector<16xf32> to vector<16x1xf32>
    %cst_11 = arith.constant 3.200000e+01 : f32
    %18 = vector.broadcast %cst_11 : f32 to vector<16x1xf32>
    %19 = arith.divf %17, %18 : vector<16x1xf32>
    %20 = vector.broadcast %12 : vector<16x1xf32> to vector<16x32xf32>
    %21 = arith.subf %4, %20 : vector<16x32xf32>
    %cst_12 = arith.constant 9.99999993E-9 : f32
    %22 = vector.broadcast %cst_12 : f32 to vector<16x1xf32>
    %23 = arith.addf %19, %22 : vector<16x1xf32>
    %24 = math.rsqrt %23 : vector<16x1xf32>
    %25 = vector.broadcast %24 : vector<16x1xf32> to vector<16x32xf32>
    %26 = arith.mulf %21, %25 : vector<16x32xf32>
    %27 = vector.broadcast %6 : vector<1x32xf32> to vector<16x32xf32>
    %28 = arith.mulf %26, %27 : vector<16x32xf32>
    %29 = vector.broadcast %8 : vector<1x32xf32> to vector<16x32xf32>
    %30 = arith.addf %28, %29 : vector<16x32xf32>
    %31 = arith.truncf %30 : vector<16x32xf32> to vector<16x32xbf16>
    %c0_13 = arith.constant 0 : index
    %c0_14 = arith.constant 0 : index
    %c0_15 = arith.constant 0 : index
    %32 = vector.load %arg5[%c0_13, %c0_14, %c0_15] : memref<1x32x32xbf16, #tpu.memory_space<vmem>>, vector<1x32x32xbf16>
    %33 = vector.shape_cast %32 : vector<1x32x32xbf16> to vector<32x32xbf16>
    %cst_16 = arith.constant dense<0.000000e+00> : vector<16x32xf32>
    %34 = tpu.matmul %31, %33, %cst_16 {dimension_numbers = #tpu.dot_dimension_numbers<[1], [0], [0], [1], [0, 0, 1, 1], [], []>} : vector<16x32xbf16>, vector<32x32xbf16>, vector<16x32xf32> -> vector<16x32xf32>
    %c0_17 = arith.constant 0 : index
    %c0_18 = arith.constant 0 : index
    %c0_19 = arith.constant 0 : index
    %35 = vector.load %arg6[%c0_17, %c0_18, %c0_19] : memref<1x1x32xf32, #tpu.memory_space<vmem>>, vector<1x1x32xf32>
    %36 = vector.shape_cast %35 : vector<1x1x32xf32> to vector<1x32xf32>
    %37 = vector.broadcast %36 : vector<1x32xf32> to vector<16x32xf32>
    %38 = arith.addf %34, %37 : vector<16x32xf32>
    %39 = arith.truncf %4 : vector<16x32xf32> to vector<16x32xbf16>
    %c0_20 = arith.constant 0 : index
    %c0_21 = arith.constant 0 : index
    %c0_22 = arith.constant 0 : index
    %40 = vector.load %arg7[%c0_20, %c0_21, %c0_22] : memref<1x32x64xbf16, #tpu.memory_space<vmem>>, vector<1x32x64xbf16>
    %41 = vector.shape_cast %40 : vector<1x32x64xbf16> to vector<32x64xbf16>
    %cst_23 = arith.constant dense<0.000000e+00> : vector<16x64xf32>
    %42 = tpu.matmul %39, %41, %cst_23 {dimension_numbers = #tpu.dot_dimension_numbers<[1], [0], [0], [1], [0, 0, 1, 1], [], []>} : vector<16x32xbf16>, vector<32x64xbf16>, vector<16x64xf32> -> vector<16x64xf32>
    %c0_24 = arith.constant 0 : index
    %c0_25 = arith.constant 0 : index
    %c0_26 = arith.constant 0 : index
    %43 = vector.load %arg8[%c0_24, %c0_25, %c0_26] : memref<1x1x64xf32, #tpu.memory_space<vmem>>, vector<1x1x64xf32>
    %44 = vector.shape_cast %43 : vector<1x1x64xf32> to vector<1x64xf32>
    %45 = vector.broadcast %44 : vector<1x64xf32> to vector<16x64xf32>
    %46 = arith.addf %42, %45 : vector<16x64xf32>
    %47 = vector.extract_strided_slice %46 {offsets = [0, 0], sizes = [16, 32], strides = [1, 1]} : vector<16x64xf32> to vector<16x32xf32>
    %48 = vector.extract_strided_slice %46 {offsets = [0, 32], sizes = [16, 32], strides = [1, 1]} : vector<16x64xf32> to vector<16x32xf32>
    %cst_27 = arith.constant 2.500000e-01 : f32
    %49 = vector.broadcast %cst_27 : f32 to vector<16x32xf32>
    %50 = arith.mulf %38, %49 : vector<16x32xf32>
    %51 = vector.shape_cast %50 : vector<16x32xf32> to vector<2x8x2x16xf32>
    %52 = tpu.transpose %51, [0, 2, 1, 3] : vector<2x8x2x16xf32> -> vector<2x2x8x16xf32>
    %53 = vector.shape_cast %52 : vector<2x2x8x16xf32> to vector<4x8x16xf32>
    %54 = arith.truncf %53 : vector<4x8x16xf32> to vector<4x8x16xbf16>
    %55 = vector.shape_cast %47 : vector<16x32xf32> to vector<2x8x2x16xf32>
    %56 = tpu.transpose %55, [0, 2, 1, 3] : vector<2x8x2x16xf32> -> vector<2x2x8x16xf32>
    %57 = vector.shape_cast %56 : vector<2x2x8x16xf32> to vector<4x8x16xf32>
    %58 = arith.truncf %57 : vector<4x8x16xf32> to vector<4x8x16xbf16>
    %59 = vector.shape_cast %48 : vector<16x32xf32> to vector<2x8x2x16xf32>
    %60 = tpu.transpose %59, [0, 2, 1, 3] : vector<2x8x2x16xf32> -> vector<2x2x8x16xf32>
    %61 = vector.shape_cast %60 : vector<2x2x8x16xf32> to vector<4x8x16xf32>
    %62 = arith.truncf %61 : vector<4x8x16xf32> to vector<4x8x16xbf16>
    "tpu.trace_start"() <{level = 10 : i32, message = "ztd,zsd->zts"}> : () -> ()
    %cst_28 = arith.constant dense<0.000000e+00> : vector<4x8x8xf32>
    %63 = tpu.matmul %54, %58, %cst_28 {dimension_numbers = #tpu.dot_dimension_numbers<[2], [2], [1], [1], [0, 0, 0, 1, 1, 1], [0], [0]>} : vector<4x8x16xbf16>, vector<4x8x16xbf16>, vector<4x8x8xf32> -> vector<4x8x8xf32>
    "tpu.trace_stop"() : () -> ()
    %64 = tpu.iota {dimensions = array<i32: 0>} : vector<8x8xi32>
    %65 = tpu.iota {dimensions = array<i32: 1>} : vector<8x8xi32>
    %66 = arith.cmpi sgt, %65, %64 : vector<8x8xi32>
    %cst_29 = arith.constant -1.000000e+09 : f32
    %cst_30 = arith.constant 0.000000e+00 : f32
    %67 = vector.broadcast %cst_29 : f32 to vector<8x8xf32>
    %68 = vector.broadcast %cst_30 : f32 to vector<8x8xf32>
    %69 = arith.select %66, %67, %68 : vector<8x8xi1>, vector<8x8xf32>
    %70 = vector.shape_cast %69 : vector<8x8xf32> to vector<1x8x8xf32>
    %71 = vector.broadcast %70 : vector<1x8x8xf32> to vector<4x8x8xf32>
    %72 = arith.addf %63, %71 : vector<4x8x8xf32>
    %cst_31 = arith.constant dense<0xFF800000> : vector<4x8xf32>
    %73 = vector.multi_reduction <maximumf>, %72, %cst_31 [2] : vector<4x8x8xf32> to vector<4x8xf32>
    %74 = vector.shape_cast %73 : vector<4x8xf32> to vector<4x8x1xf32>
    %75 = vector.broadcast %74 : vector<4x8x1xf32> to vector<4x8x8xf32>
    %76 = arith.subf %72, %75 : vector<4x8x8xf32>
    %77 = math.exp %76 : vector<4x8x8xf32>
    %cst_32 = arith.constant dense<0.000000e+00> : vector<4x8xf32>
    %78 = vector.multi_reduction <add>, %77, %cst_32 [2] : vector<4x8x8xf32> to vector<4x8xf32>
    %79 = vector.shape_cast %78 : vector<4x8xf32> to vector<4x8x1xf32>
    %80 = tpu.reciprocal %79 {approx = true} : vector<4x8x1xf32> -> vector<4x8x1xf32>
    %81 = vector.broadcast %80 : vector<4x8x1xf32> to vector<4x8x8xf32>
    %82 = arith.mulf %77, %81 : vector<4x8x8xf32>
    %83 = arith.truncf %82 : vector<4x8x8xf32> to vector<4x8x8xbf16>
    "tpu.trace_start"() <{level = 10 : i32, message = "zts,zsd->ztd"}> : () -> ()
    %cst_33 = arith.constant dense<0.000000e+00> : vector<4x8x16xf32>
    %84 = tpu.matmul %83, %62, %cst_33 {dimension_numbers = #tpu.dot_dimension_numbers<[2], [1], [1], [2], [0, 0, 0, 1, 1, 2], [0], [0]>} : vector<4x8x8xbf16>, vector<4x8x16xbf16>, vector<4x8x16xf32> -> vector<4x8x16xf32>
    "tpu.trace_stop"() : () -> ()
    %85 = vector.shape_cast %84 : vector<4x8x16xf32> to vector<2x2x8x16xf32>
    %86 = tpu.transpose %85, [0, 2, 1, 3] : vector<2x2x8x16xf32> -> vector<2x8x2x16xf32>
    %87 = vector.shape_cast %86 : vector<2x8x2x16xf32> to vector<16x32xf32>
    %88 = arith.truncf %87 : vector<16x32xf32> to vector<16x32xbf16>
    %c0_34 = arith.constant 0 : index
    %c0_35 = arith.constant 0 : index
    %c0_36 = arith.constant 0 : index
    %89 = vector.load %arg9[%c0_34, %c0_35, %c0_36] : memref<1x32x32xbf16, #tpu.memory_space<vmem>>, vector<1x32x32xbf16>
    %90 = vector.shape_cast %89 : vector<1x32x32xbf16> to vector<32x32xbf16>
    %cst_37 = arith.constant dense<0.000000e+00> : vector<16x32xf32>
    %91 = tpu.matmul %88, %90, %cst_37 {dimension_numbers = #tpu.dot_dimension_numbers<[1], [0], [0], [1], [0, 0, 1, 1], [], []>} : vector<16x32xbf16>, vector<32x32xbf16>, vector<16x32xf32> -> vector<16x32xf32>
    %c0_38 = arith.constant 0 : index
    %c0_39 = arith.constant 0 : index
    %c0_40 = arith.constant 0 : index
    %92 = vector.load %arg10[%c0_38, %c0_39, %c0_40] : memref<1x1x32xf32, #tpu.memory_space<vmem>>, vector<1x1x32xf32>
    %93 = vector.shape_cast %92 : vector<1x1x32xf32> to vector<1x32xf32>
    %94 = vector.broadcast %93 : vector<1x32xf32> to vector<16x32xf32>
    %95 = arith.addf %91, %94 : vector<16x32xf32>
    %96 = arith.addf %30, %95 : vector<16x32xf32>
    %c0_41 = arith.constant 0 : index
    %c0_42 = arith.constant 0 : index
    %c0_43 = arith.constant 0 : index
    %97 = vector.load %arg11[%c0_41, %c0_42, %c0_43] : memref<1x1x32xf32, #tpu.memory_space<vmem>>, vector<1x1x32xf32>
    %98 = vector.shape_cast %97 : vector<1x1x32xf32> to vector<1x32xf32>
    %c0_44 = arith.constant 0 : index
    %c0_45 = arith.constant 0 : index
    %c0_46 = arith.constant 0 : index
    %99 = vector.load %arg12[%c0_44, %c0_45, %c0_46] : memref<1x1x32xf32, #tpu.memory_space<vmem>>, vector<1x1x32xf32>
    %100 = vector.shape_cast %99 : vector<1x1x32xf32> to vector<1x32xf32>
    %cst_47 = arith.constant dense<0.000000e+00> : vector<16xf32>
    %101 = vector.multi_reduction <add>, %96, %cst_47 [1] : vector<16x32xf32> to vector<16xf32>
    %102 = vector.shape_cast %101 : vector<16xf32> to vector<16x1xf32>
    %cst_48 = arith.constant 3.200000e+01 : f32
    %103 = vector.broadcast %cst_48 : f32 to vector<16x1xf32>
    %104 = arith.divf %102, %103 : vector<16x1xf32>
    %105 = vector.broadcast %104 : vector<16x1xf32> to vector<16x32xf32>
    %106 = arith.subf %96, %105 : vector<16x32xf32>
    %107 = arith.mulf %106, %106 : vector<16x32xf32>
    %cst_49 = arith.constant dense<0.000000e+00> : vector<16xf32>
    %108 = vector.multi_reduction <add>, %107, %cst_49 [1] : vector<16x32xf32> to vector<16xf32>
    %109 = vector.shape_cast %108 : vector<16xf32> to vector<16x1xf32>
    %cst_50 = arith.constant 3.200000e+01 : f32
    %110 = vector.broadcast %cst_50 : f32 to vector<16x1xf32>
    %111 = arith.divf %109, %110 : vector<16x1xf32>
    %112 = vector.broadcast %104 : vector<16x1xf32> to vector<16x32xf32>
    %113 = arith.subf %96, %112 : vector<16x32xf32>
    %cst_51 = arith.constant 9.99999993E-9 : f32
    %114 = vector.broadcast %cst_51 : f32 to vector<16x1xf32>
    %115 = arith.addf %111, %114 : vector<16x1xf32>
    %116 = math.rsqrt %115 : vector<16x1xf32>
    %117 = vector.broadcast %116 : vector<16x1xf32> to vector<16x32xf32>
    %118 = arith.mulf %113, %117 : vector<16x32xf32>
    %119 = vector.broadcast %98 : vector<1x32xf32> to vector<16x32xf32>
    %120 = arith.mulf %118, %119 : vector<16x32xf32>
    %121 = vector.broadcast %100 : vector<1x32xf32> to vector<16x32xf32>
    %122 = arith.addf %120, %121 : vector<16x32xf32>
    %123 = arith.truncf %122 : vector<16x32xf32> to vector<16x32xbf16>
    %c0_52 = arith.constant 0 : index
    %c0_53 = arith.constant 0 : index
    %c0_54 = arith.constant 0 : index
    %124 = vector.load %arg13[%c0_52, %c0_53, %c0_54] : memref<1x32x32xbf16, #tpu.memory_space<vmem>>, vector<1x32x32xbf16>
    %125 = vector.shape_cast %124 : vector<1x32x32xbf16> to vector<32x32xbf16>
    %cst_55 = arith.constant dense<0.000000e+00> : vector<16x32xf32>
    %126 = tpu.matmul %123, %125, %cst_55 {dimension_numbers = #tpu.dot_dimension_numbers<[1], [0], [0], [1], [0, 0, 1, 1], [], []>} : vector<16x32xbf16>, vector<32x32xbf16>, vector<16x32xf32> -> vector<16x32xf32>
    %c0_56 = arith.constant 0 : index
    %c0_57 = arith.constant 0 : index
    %c0_58 = arith.constant 0 : index
    %127 = vector.load %arg14[%c0_56, %c0_57, %c0_58] : memref<1x1x32xf32, #tpu.memory_space<vmem>>, vector<1x1x32xf32>
    %128 = vector.shape_cast %127 : vector<1x1x32xf32> to vector<1x32xf32>
    %129 = vector.broadcast %128 : vector<1x32xf32> to vector<16x32xf32>
    %130 = arith.addf %126, %129 : vector<16x32xf32>
    %cst_59 = arith.constant 0.000000e+00 : f32
    %131 = vector.broadcast %cst_59 : f32 to vector<16x32xf32>
    %132 = arith.maximumf %130, %131 : vector<16x32xf32>
    %133 = arith.truncf %132 : vector<16x32xf32> to vector<16x32xbf16>
    %c0_60 = arith.constant 0 : index
    %c0_61 = arith.constant 0 : index
    %c0_62 = arith.constant 0 : index
    %134 = vector.load %arg15[%c0_60, %c0_61, %c0_62] : memref<1x32x32xbf16, #tpu.memory_space<vmem>>, vector<1x32x32xbf16>
    %135 = vector.shape_cast %134 : vector<1x32x32xbf16> to vector<32x32xbf16>
    %cst_63 = arith.constant dense<0.000000e+00> : vector<16x32xf32>
    %136 = tpu.matmul %133, %135, %cst_63 {dimension_numbers = #tpu.dot_dimension_numbers<[1], [0], [0], [1], [0, 0, 1, 1], [], []>} : vector<16x32xbf16>, vector<32x32xbf16>, vector<16x32xf32> -> vector<16x32xf32>
    %c0_64 = arith.constant 0 : index
    %c0_65 = arith.constant 0 : index
    %c0_66 = arith.constant 0 : index
    %137 = vector.load %arg16[%c0_64, %c0_65, %c0_66] : memref<1x1x32xf32, #tpu.memory_space<vmem>>, vector<1x1x32xf32>
    %138 = vector.shape_cast %137 : vector<1x1x32xf32> to vector<1x32xf32>
    %139 = vector.broadcast %138 : vector<1x32xf32> to vector<16x32xf32>
    %140 = arith.addf %136, %139 : vector<16x32xf32>
    %141 = arith.addf %140, %122 : vector<16x32xf32>
    %142 = vector.shape_cast %141 : vector<16x32xf32> to vector<2x8x32xf32>
    %c0_67 = arith.constant 0 : index
    %c0_68 = arith.constant 0 : index
    %c0_69 = arith.constant 0 : index
    %143 = vector.load %arg22[%c0_67, %c0_68, %c0_69] : memref<2x8x32xf32, #tpu.memory_space<vmem>>, vector<2x8x32xf32>
    tpu.vector_store %arg22[%c0_67, %c0_68, %c0_69], %142 {strides = array<i32>} : memref<2x8x32xf32, #tpu.memory_space<vmem>>, vector<2x8x32xf32>,
    %c1_i32 = arith.constant 1 : i32
    %144 = arith.cmpi eq, %arg1, %c1_i32 : i32
    %145 = arith.extui %144 : i1 to i32
    %c0_i32_70 = arith.constant 0 : i32
    %146 = arith.cmpi ne, %145, %c0_i32_70 : i32
    scf.if %146 {
      %c0_71 = arith.constant 0 : index
      %c0_72 = arith.constant 0 : index
      %147 = vector.load %arg17[%c0_71, %c0_72] : memref<1x32xf32, #tpu.memory_space<vmem>>, vector<1x32xf32>
      %c0_73 = arith.constant 0 : index
      %c0_74 = arith.constant 0 : index
      %148 = vector.load %arg18[%c0_73, %c0_74] : memref<1x32xf32, #tpu.memory_space<vmem>>, vector<1x32xf32>
      %cst_75 = arith.constant dense<0.000000e+00> : vector<16xf32>
      %149 = vector.multi_reduction <add>, %141, %cst_75 [1] : vector<16x32xf32> to vector<16xf32>
      %150 = vector.shape_cast %149 : vector<16xf32> to vector<16x1xf32>
      %cst_76 = arith.constant 3.200000e+01 : f32
      %151 = vector.broadcast %cst_76 : f32 to vector<16x1xf32>
      %152 = arith.divf %150, %151 : vector<16x1xf32>
      %153 = vector.broadcast %152 : vector<16x1xf32> to vector<16x32xf32>
      %154 = arith.subf %141, %153 : vector<16x32xf32>
      %155 = arith.mulf %154, %154 : vector<16x32xf32>
      %cst_77 = arith.constant dense<0.000000e+00> : vector<16xf32>
      %156 = vector.multi_reduction <add>, %155, %cst_77 [1] : vector<16x32xf32> to vector<16xf32>
      %157 = vector.shape_cast %156 : vector<16xf32> to vector<16x1xf32>
      %cst_78 = arith.constant 3.200000e+01 : f32
      %158 = vector.broadcast %cst_78 : f32 to vector<16x1xf32>
      %159 = arith.divf %157, %158 : vector<16x1xf32>
      %160 = vector.broadcast %152 : vector<16x1xf32> to vector<16x32xf32>
      %161 = arith.subf %141, %160 : vector<16x32xf32>
      %cst_79 = arith.constant 9.99999993E-9 : f32
      %162 = vector.broadcast %cst_79 : f32 to vector<16x1xf32>
      %163 = arith.addf %159, %162 : vector<16x1xf32>
      %164 = math.rsqrt %163 : vector<16x1xf32>
      %165 = vector.broadcast %164 : vector<16x1xf32> to vector<16x32xf32>
      %166 = arith.mulf %161, %165 : vector<16x32xf32>
      %167 = vector.broadcast %147 : vector<1x32xf32> to vector<16x32xf32>
      %168 = arith.mulf %166, %167 : vector<16x32xf32>
      %169 = vector.broadcast %148 : vector<1x32xf32> to vector<16x32xf32>
      %170 = arith.addf %168, %169 : vector<16x32xf32>
      %c0_80 = arith.constant 0 : index
      %c0_81 = arith.constant 0 : index
      %c0_82 = arith.constant 0 : index
      %171 = vector.load %arg19[%c0_80, %c0_81, %c0_82] : memref<2x8x32xf32, #tpu.memory_space<vmem>>, vector<2x8x32xf32>
      %172 = vector.shape_cast %171 : vector<2x8x32xf32> to vector<16x32xf32>
      %c0_83 = arith.constant 0 : index
      %c0_84 = arith.constant 0 : index
      %c0_85 = arith.constant 0 : index
      %173 = vector.load %arg20[%c0_83, %c0_84, %c0_85] : memref<2x8x32xf32, #tpu.memory_space<vmem>>, vector<2x8x32xf32>
      %174 = vector.shape_cast %173 : vector<2x8x32xf32> to vector<16x32xf32>
      %175 = arith.mulf %170, %172 : vector<16x32xf32>
      %cst_86 = arith.constant dense<0.000000e+00> : vector<16xf32>
      %176 = vector.multi_reduction <add>, %175, %cst_86 [1] : vector<16x32xf32> to vector<16xf32>
      %177 = vector.shape_cast %176 : vector<16xf32> to vector<1x16xf32>
      %178 = arith.mulf %170, %174 : vector<16x32xf32>
      %cst_87 = arith.constant dense<0.000000e+00> : vector<16xf32>
      %179 = vector.multi_reduction <add>, %178, %cst_87 [1] : vector<16x32xf32> to vector<16xf32>
      %180 = vector.shape_cast %179 : vector<16xf32> to vector<1x16xf32>
      %181 = tpu.concatenate %177, %180 in 0 : vector<1x16xf32>, vector<1x16xf32> -> vector<2x16xf32>
      %cst_88 = arith.constant 0.000000e+00 : f32
      %182 = vector.broadcast %cst_88 : f32 to vector<2x112xf32>
      %183 = tpu.concatenate %181, %182 in 1 : vector<2x16xf32>, vector<2x112xf32> -> vector<2x128xf32>
      %c0_89 = arith.constant 0 : index
      %c0_90 = arith.constant 0 : index
      %c0_91 = arith.constant 0 : index
      %184 = vector.load %arg21[%c0_89, %c0_90, %c0_91] : memref<1x2x128xf32, #tpu.memory_space<vmem>>, vector<1x2x128xf32>
      %185 = vector.shape_cast %184 : vector<1x2x128xf32> to vector<2x128xf32>
      %186 = vector.shape_cast %183 : vector<2x128xf32> to vector<1x2x128xf32>
      tpu.vector_store %arg21[%c0_89, %c0_90, %c0_91], %186 {strides = array<i32>} : memref<1x2x128xf32, #tpu.memory_space<vmem>>, vector<1x2x128xf32>,
    } else {
    }
    return
  }
  func.func @transform_0(%arg0: i32, %arg1: i32) -> (i32, i32, i32) {
    %c0_i32 = arith.constant 0 : i32
    %c0_i32_0 = arith.constant 0 : i32
    %c0_i32_1 = arith.constant 0 : i32
    return %arg0, %c0_i32, %c0_i32_0 : i32, i32, i32
  }
  func.func @transform_1(%arg0: i32, %arg1: i32) -> (i32, i32, i32) {
    %c0_i32 = arith.constant 0 : i32
    %c0_i32_0 = arith.constant 0 : i32
    %c0_i32_1 = arith.constant 0 : i32
    return %arg1, %c0_i32, %c0_i32_0 : i32, i32, i32
  }
  func.func @transform_2(%arg0: i32, %arg1: i32) -> (i32, i32, i32) {
    %c0_i32 = arith.constant 0 : i32
    %c0_i32_0 = arith.constant 0 : i32
    %c0_i32_1 = arith.constant 0 : i32
    return %arg1, %c0_i32, %c0_i32_0 : i32, i32, i32
  }
  func.func @transform_3(%arg0: i32, %arg1: i32) -> (i32, i32, i32) {
    %c0_i32 = arith.constant 0 : i32
    %c0_i32_0 = arith.constant 0 : i32
    %c0_i32_1 = arith.constant 0 : i32
    return %arg1, %c0_i32, %c0_i32_0 : i32, i32, i32
  }
  func.func @transform_4(%arg0: i32, %arg1: i32) -> (i32, i32, i32) {
    %c0_i32 = arith.constant 0 : i32
    %c0_i32_0 = arith.constant 0 : i32
    %c0_i32_1 = arith.constant 0 : i32
    return %arg1, %c0_i32, %c0_i32_0 : i32, i32, i32
  }
  func.func @transform_5(%arg0: i32, %arg1: i32) -> (i32, i32, i32) {
    %c0_i32 = arith.constant 0 : i32
    %c0_i32_0 = arith.constant 0 : i32
    %c0_i32_1 = arith.constant 0 : i32
    return %arg1, %c0_i32, %c0_i32_0 : i32, i32, i32
  }
  func.func @transform_6(%arg0: i32, %arg1: i32) -> (i32, i32, i32) {
    %c0_i32 = arith.constant 0 : i32
    %c0_i32_0 = arith.constant 0 : i32
    %c0_i32_1 = arith.constant 0 : i32
    return %arg1, %c0_i32, %c0_i32_0 : i32, i32, i32
  }
  func.func @transform_7(%arg0: i32, %arg1: i32) -> (i32, i32, i32) {
    %c0_i32 = arith.constant 0 : i32
    %c0_i32_0 = arith.constant 0 : i32
    %c0_i32_1 = arith.constant 0 : i32
    return %arg1, %c0_i32, %c0_i32_0 : i32, i32, i32
  }
  func.func @transform_8(%arg0: i32, %arg1: i32) -> (i32, i32, i32) {
    %c0_i32 = arith.constant 0 : i32
    %c0_i32_0 = arith.constant 0 : i32
    %c0_i32_1 = arith.constant 0 : i32
    return %arg1, %c0_i32, %c0_i32_0 : i32, i32, i32
  }
  func.func @transform_9(%arg0: i32, %arg1: i32) -> (i32, i32, i32) {
    %c0_i32 = arith.constant 0 : i32
    %c0_i32_0 = arith.constant 0 : i32
    %c0_i32_1 = arith.constant 0 : i32
    return %arg1, %c0_i32, %c0_i32_0 : i32, i32, i32
  }
  func.func @transform_10(%arg0: i32, %arg1: i32) -> (i32, i32, i32) {
    %c0_i32 = arith.constant 0 : i32
    %c0_i32_0 = arith.constant 0 : i32
    %c0_i32_1 = arith.constant 0 : i32
    return %arg1, %c0_i32, %c0_i32_0 : i32, i32, i32
  }
  func.func @transform_11(%arg0: i32, %arg1: i32) -> (i32, i32, i32) {
    %c0_i32 = arith.constant 0 : i32
    %c0_i32_0 = arith.constant 0 : i32
    %c0_i32_1 = arith.constant 0 : i32
    return %arg1, %c0_i32, %c0_i32_0 : i32, i32, i32
  }
  func.func @transform_12(%arg0: i32, %arg1: i32) -> (i32, i32, i32) {
    %c0_i32 = arith.constant 0 : i32
    %c0_i32_0 = arith.constant 0 : i32
    %c0_i32_1 = arith.constant 0 : i32
    return %arg1, %c0_i32, %c0_i32_0 : i32, i32, i32
  }
  func.func @transform_13(%arg0: i32, %arg1: i32) -> (i32, i32, i32) {
    %c0_i32 = arith.constant 0 : i32
    %c0_i32_0 = arith.constant 0 : i32
    %c0_i32_1 = arith.constant 0 : i32
    return %arg1, %c0_i32, %c0_i32_0 : i32, i32, i32
  }
  func.func @transform_14(%arg0: i32, %arg1: i32) -> (i32, i32, i32) {
    %c0_i32 = arith.constant 0 : i32
    %c0_i32_0 = arith.constant 0 : i32
    %c0_i32_1 = arith.constant 0 : i32
    return %arg1, %c0_i32, %c0_i32_0 : i32, i32, i32
  }
  func.func @transform_15(%arg0: i32, %arg1: i32) -> (i32, i32) {
    %c0_i32 = arith.constant 0 : i32
    %c0_i32_0 = arith.constant 0 : i32
    %c0_i32_1 = arith.constant 0 : i32
    return %c0_i32, %c0_i32_0 : i32, i32
  }
  func.func @transform_16(%arg0: i32, %arg1: i32) -> (i32, i32) {
    %c0_i32 = arith.constant 0 : i32
    %c0_i32_0 = arith.constant 0 : i32
    %c0_i32_1 = arith.constant 0 : i32
    return %c0_i32, %c0_i32_0 : i32, i32
  }
  func.func @transform_17(%arg0: i32, %arg1: i32) -> (i32, i32, i32) {
    %c0_i32 = arith.constant 0 : i32
    %c0_i32_0 = arith.constant 0 : i32
    %c0_i32_1 = arith.constant 0 : i32
    return %arg0, %c0_i32, %c0_i32_0 : i32, i32, i32
  }
  func.func @transform_18(%arg0: i32, %arg1: i32) -> (i32, i32, i32) {
    %c0_i32 = arith.constant 0 : i32
    %c0_i32_0 = arith.constant 0 : i32
    %c0_i32_1 = arith.constant 0 : i32
    return %arg0, %c0_i32, %c0_i32_0 : i32, i32, i32
  }
  func.func @transform_19(%arg0: i32, %arg1: i32) -> (i32, i32, i32) {
    %c0_i32 = arith.constant 0 : i32
    %c0_i32_0 = arith.constant 0 : i32
    %c0_i32_1 = arith.constant 0 : i32
    return %arg0, %c0_i32, %c0_i32_0 : i32, i32, i32
  }
}

</mosaic_0001>

<llo_original>
// kernel: tpu_custom_call.1
$region0: #{tpu_custom_call.1}
  #allocation0 [shape = 'u32[]', space=smem, size = 0x4, offset = 0x4, fixed_abs, tag = 'smem constant byte address 0x4 - core index']
  #allocation1 [shape = 'u32[144,128]{1,0:T(1,128)}', space=vmem, size = 0x12000, scoped, tag = 'internal scratch']
  #allocation2 [shape = 'f32[2,8,32]{2,1,0:T(8,128)}', space=vmem, size = 0x2000, scoped, tag = 'scratch operand']
  %s0 = inlined_call_operand.hbm [shape: f32[2,8,32], index: 0, kind: input, shape index: {}]
  %s1 = inlined_call_operand.hbm [shape: f32[2,1,32], index: 1, kind: input, shape index: {}]
  %s2 = inlined_call_operand.hbm [shape: f32[2,1,32], index: 2, kind: input, shape index: {}]
  %s3 = inlined_call_operand.hbm [shape: bf16[2,32,32], index: 3, kind: input, shape index: {}]
  %s4 = inlined_call_operand.hbm [shape: f32[2,1,32], index: 4, kind: input, shape index: {}]
  %s5 = inlined_call_operand.hbm [shape: bf16[2,32,64], index: 5, kind: input, shape index: {}]
  %s6 = inlined_call_operand.hbm [shape: f32[2,1,64], index: 6, kind: input, shape index: {}]
  %s7 = inlined_call_operand.hbm [shape: bf16[2,32,32], index: 7, kind: input, shape index: {}]
  %s8 = inlined_call_operand.hbm [shape: f32[2,1,32], index: 8, kind: input, shape index: {}]
  %s9 = inlined_call_operand.hbm [shape: f32[2,1,32], index: 9, kind: input, shape index: {}]
  %s10 = inlined_call_operand.hbm [shape: f32[2,1,32], index: 10, kind: input, shape index: {}]
  %s11 = inlined_call_operand.hbm [shape: bf16[2,32,32], index: 11, kind: input, shape index: {}]
  %s12 = inlined_call_operand.hbm [shape: f32[2,1,32], index: 12, kind: input, shape index: {}]
  %s13 = inlined_call_operand.hbm [shape: bf16[2,32,32], index: 13, kind: input, shape index: {}]
  %s14 = inlined_call_operand.hbm [shape: f32[2,1,32], index: 14, kind: input, shape index: {}]
  %s15 = inlined_call_operand.hbm [shape: f32[1,32], index: 15, kind: input, shape index: {}]
  %s16 = inlined_call_operand.hbm [shape: f32[1,32], index: 16, kind: input, shape index: {}]
  %s17 = inlined_call_operand.vmem [shape: f32[2,8,32], index: 17, kind: input, shape index: {}]
  %s18 = inlined_call_operand.vmem [shape: f32[2,8,32], index: 18, kind: input, shape index: {}]
  %s19 = inlined_call_operand.hbm [shape: f32[1,2,128], index: 19, kind: output, shape index: {}]
  %s20 = sld [smem:[#allocation0]]
  $region185: #{tpu_custom_call.1} parent=0
    _
  %s22 = ssub.s32 1, %s20
  %s23 = scalar_select 0, %s22, %s20
  $region1: #{tpu_custom_call.1} parent=0
    #allocation3 [shape = 'u8[8192]{0}', space=vmem, size = 0x2000, scoped, tag = 'input window, operand 0, single buffered']
    #allocation4 [shape = 's32[2]{0}', space=sflag, size = 0x8, scoped, tag = 'scoped memory for tpu_custom_call.1']
    #allocation5 [shape = 's32[2]{0}', space=sflag, size = 0x8, scoped, tag = 'scoped memory for tpu_custom_call.1']
    #allocation6 [shape = 'u8[1024]{0}', space=vmem, size = 0x400, scoped, tag = 'input window, operand 1']
    #allocation7 [shape = 's32[2]{0}', space=sflag, size = 0x8, scoped, tag = 'scoped memory for tpu_custom_call.1']
    #allocation8 [shape = 'u8[1024]{0}', space=vmem, size = 0x400, scoped, tag = 'input window, operand 2']
    #allocation9 [shape = 'u8[16384]{0}', space=vmem, size = 0x4000, scoped, tag = 'input window, operand 3']
    #allocation10 [shape = 's32[2]{0}', space=sflag, size = 0x8, scoped, tag = 'scoped memory for tpu_custom_call.1']
    #allocation11 [shape = 'u8[1024]{0}', space=vmem, size = 0x400, scoped, tag = 'input window, operand 4']
    #allocation12 [shape = 'u8[16384]{0}', space=vmem, size = 0x4000, scoped, tag = 'input window, operand 5']
    #allocation13 [shape = 's32[2]{0}', space=sflag, size = 0x8, scoped, tag = 'scoped memory for tpu_custom_call.1']
    #allocation14 [shape = 'u8[1024]{0}', space=vmem, size = 0x400, scoped, tag = 'input window, operand 6']
    #allocation15 [shape = 'u8[16384]{0}', space=vmem, size = 0x4000, scoped, tag = 'input window, operand 7']
    #allocation16 [shape = 's32[2]{0}', space=sflag, size = 0x8, scoped, tag = 'scoped memory for tpu_custom_call.1']
    #allocation17 [shape = 'u8[1024]{0}', space=vmem, size = 0x400, scoped, tag = 'input window, operand 8']
    #allocation18 [shape = 'u8[1024]{0}', space=vmem, size = 0x400, scoped, tag = 'input window, operand 9']
    #allocation19 [shape = 's32[2]{0}', space=sflag, size = 0x8, scoped, tag = 'scoped memory for tpu_custom_call.1']
    #allocation20 [shape = 'u8[1024]{0}', space=vmem, size = 0x400, scoped, tag = 'input window, operand 10']
    #allocation21 [shape = 'u8[16384]{0}', space=vmem, size = 0x4000, scoped, tag = 'input window, operand 11']
    #allocation22 [shape = 's32[2]{0}', space=sflag, size = 0x8, scoped, tag = 'scoped memory for tpu_custom_call.1']
    #allocation23 [shape = 'u8[1024]{0}', space=vmem, size = 0x400, scoped, tag = 'input window, operand 12']
    #allocation24 [shape = 'u8[16384]{0}', space=vmem, size = 0x4000, scoped, tag = 'input window, operand 13']
    #allocation25 [shape = 's32[2]{0}', space=sflag, size = 0x8, scoped, tag = 'scoped memory for tpu_custom_call.1']
    #allocation26 [shape = 'u8[1024]{0}', space=vmem, size = 0x400, scoped, tag = 'input window, operand 14']
    #allocation27 [shape = 'u8[512]{0}', space=vmem, size = 0x400, scoped, tag = 'input window, operand 15, single buffered']
    #allocation28 [shape = 's32[1]{0}', space=sflag, size = 0x4, scoped, tag = 'scoped memory for tpu_custom_call.1']
    #allocation29 [shape = 'u8[512]{0}', space=vmem, size = 0x400, scoped, tag = 'input window, operand 16, single buffered']
    #allocation30 [shape = 'u8[1024]{0}', space=vmem, size = 0x400, scoped, tag = 'output window, operand 0, single buffered']
    %24 = vsyncpa [#allocation4], 0
    %25 = vsyncpa [#allocation7], 0
    %s26 = scalar_lea.sflag [#allocation7], 1
    %27 = vsyncpa %s26, 0
    %28 = vsyncpa [#allocation10], 0
    %s29 = scalar_lea.sflag [#allocation10], 1
    %30 = vsyncpa %s29, 0
    %31 = vsyncpa [#allocation13], 0
    %s32 = scalar_lea.sflag [#allocation13], 1
    %33 = vsyncpa %s32, 0
    %34 = vsyncpa [#allocation16], 0
    %s35 = scalar_lea.sflag [#allocation16], 1
    %36 = vsyncpa %s35, 0
    %37 = vsyncpa [#allocation19], 0
    %s38 = scalar_lea.sflag [#allocation19], 1
    %39 = vsyncpa %s38, 0
    %40 = vsyncpa [#allocation22], 0
    %s41 = scalar_lea.sflag [#allocation22], 1
    %42 = vsyncpa %s41, 0
    %43 = vsyncpa [#allocation25], 0
    %s44 = scalar_lea.sflag [#allocation25], 1
    %45 = vsyncpa %s44, 0
    %46 = vsyncpa [#allocation28], 0
    %47 = vsyncpa [#allocation5], 0
    loop: start=0, step=1, limit=4
    $region2: #{tpu_custom_call.1} parent=1 // loop_pre_header
      _
    $region3: #{tpu_custom_call.1} parent=1 // loop_header
      %s49 = sphi 0, %s53
      %p50 = scmp.ge.s32.totalorder %s49, 4
      %s56 = sphi 0, %s68
      %s57 = sphi 0, %s64
      %s58 = sphi 0, %s56
      %s59 = sphi 0, %s57
      %s60 = sphi 0, %s58
      %s61 = sphi 0, %s59
      %s71 = sphi 0, %s73
      %s74 = sphi 0, %s71
      %s75 = sphi 0, %s74
      %s91 = sphi 0, %s75
      %s97 = sphi 0, %s99
      %s100 = sphi 0, %s97
      %s101 = sphi 0, %s100
      %s117 = sphi 0, %s101
      %s123 = sphi 0, %s125
      %s126 = sphi 0, %s123
      %s127 = sphi 0, %s126
      %s143 = sphi 0, %s127
      %s149 = sphi 0, %s151
      %s152 = sphi 0, %s149
      %s153 = sphi 0, %s152
      %s169 = sphi 0, %s153
      %s175 = sphi 0, %s177
      %s178 = sphi 0, %s175
      %s179 = sphi 0, %s178
      %s195 = sphi 0, %s179
      %s201 = sphi 0, %s203
      %s204 = sphi 0, %s201
      %s205 = sphi 0, %s204
      %s221 = sphi 0, %s205
      %s227 = sphi 0, %s229
      %s230 = sphi 0, %s227
      %s231 = sphi 0, %s230
      %s247 = sphi 0, %s231
      %s253 = sphi 0, %s255
      %s256 = sphi 0, %s253
      %s257 = sphi 0, %s256
      %s273 = sphi 0, %s257
      %s279 = sphi 0, %s281
      %s282 = sphi 0, %s279
      %s283 = sphi 0, %s282
      %s299 = sphi 0, %s283
      %s305 = sphi 0, %s307
      %s308 = sphi 0, %s305
      %s309 = sphi 0, %s308
      %s325 = sphi 0, %s309
      %s331 = sphi 0, %s333
      %s334 = sphi 0, %s331
      %s335 = sphi 0, %s334
      %s351 = sphi 0, %s335
      %s357 = sphi 0, %s359
      %s360 = sphi 0, %s357
      %s361 = sphi 0, %s360
      %s377 = sphi 0, %s361
      %s383 = sphi 0, %s385
      %s386 = sphi 0, %s383
      %s387 = sphi 0, %s386
      %s403 = sphi 0, %s387
      %s409 = sphi 0, %s411
      %s412 = sphi 0, %s409
      %s413 = sphi 0, %s412
      %s429 = sphi 0, %s413
      %s435 = sphi 0, %s437
      %s438 = sphi 0, %s435
      %s439 = sphi 0, %s438
      %s455 = sphi 0, %s439
      %s459 = sphi 0, %s459
      %s461 = sphi 0, %s459
      %s462 = sphi 0, %s461
      %s476 = sphi 0, %s462
      %s480 = sphi 0, %s480
      %s482 = sphi 0, %s480
      %s483 = sphi 0, %s482
      %s497 = sphi 0, %s483
      %s503 = sphi 0, %s505
      %s506 = sphi 0, %s503
      %s507 = sphi 0, %s506
      %s523 = sphi 0, %s507
      %s529 = sphi 0, %s531
      %s532 = sphi 0, %s529
      %s533 = sphi 0, %s532
      %s549 = sphi 0, %s533
      %s555 = sphi 0, %s557
      %s558 = sphi 0, %s555
      %s559 = sphi 0, %s558
      %s575 = sphi 0, %s559
    $region4: #{tpu_custom_call.1} parent=1 // loop_header_branch
      %52 = sbr.rel (%p50) target = $region8
    $region5: #{tpu_custom_call.1} parent=1 // loop_body
      %s54 = ssub.s32 %s49, 1
      %s55 = ssub.s32 %s49, 2
      %s62 = sadd.s32 1, %s57
      %p63 = scmp.ge.s32.totalorder %s62, 2
      %s64 = scalar_select %p63, 0, %s62
      %s65 = sadd.s32 1, %s56
      %s66 = scalar_select %p63, %s65, %s56
      %p67 = scmp.ge.s32.totalorder %s66, 1
      %s68 = scalar_select %p67, 0, %s66
      %s69 = ssub.s32 %s56, %s68
      %p70 = scmp.eq.s32.totalorder %s69, 0
      %s72 = sadd.s32 %s71, 1
      %s73 = scalar_select %p70, %s71, %s72
      %p76 = pneg %p70
      %p77 = scmp.eq.s32.totalorder %s49, 1
      %p78 = por %p76, %p77
      %p79 = scmp.ne.s32.totalorder %s71, %s74
      %p80 = scmp.eq.s32.totalorder %s49, 0
      %p81 = por %p79, %p80
      %p82 = scmp.ne.s32.totalorder %s71, %s74
      %p83 = scmp.eq.s32.totalorder %s54, 1
      %p84 = por %p82, %p83
      %p85 = scmp.ne.s32.totalorder %s74, %s75
      %p86 = scmp.eq.s32.totalorder %s54, 0
      %p87 = por %p85, %p86
      %p88 = scmp.ne.s32.totalorder %s74, %s75
      %p89 = scmp.eq.s32.totalorder %s55, 1
      %p90 = por %p88, %p89
      %p92 = scmp.ne.s32.totalorder %s75, %s91
      %p93 = scmp.eq.s32.totalorder %s55, 0
      %p94 = por %p92, %p93
      %s95 = ssub.s32 %s57, %s64
      %p96 = scmp.eq.s32.totalorder %s95, 0
      %s98 = sadd.s32 %s97, 1
      %s99 = scalar_select %p96, %s97, %s98
      %p102 = pneg %p96
      %p103 = scmp.eq.s32.totalorder %s49, 1
      %p104 = por %p102, %p103
      %p105 = scmp.ne.s32.totalorder %s97, %s100
      %p106 = scmp.eq.s32.totalorder %s49, 0
      %p107 = por %p105, %p106
      %p108 = scmp.ne.s32.totalorder %s97, %s100
      %p109 = scmp.eq.s32.totalorder %s54, 1
      %p110 = por %p108, %p109
      %p111 = scmp.ne.s32.totalorder %s100, %s101
      %p112 = scmp.eq.s32.totalorder %s54, 0
      %p113 = por %p111, %p112
      %p114 = scmp.ne.s32.totalorder %s100, %s101
      %p115 = scmp.eq.s32.totalorder %s55, 1
      %p116 = por %p114, %p115
      %p118 = scmp.ne.s32.totalorder %s101, %s117
      %p119 = scmp.eq.s32.totalorder %s55, 0
      %p120 = por %p118, %p119
      %s121 = ssub.s32 %s57, %s64
      %p122 = scmp.eq.s32.totalorder %s121, 0
      %s124 = sadd.s32 %s123, 1
      %s125 = scalar_select %p122, %s123, %s124
      %p128 = pneg %p122
      %p129 = scmp.eq.s32.totalorder %s49, 1
      %p130 = por %p128, %p129
      %p131 = scmp.ne.s32.totalorder %s123, %s126
      %p132 = scmp.eq.s32.totalorder %s49, 0
      %p133 = por %p131, %p132
      %p134 = scmp.ne.s32.totalorder %s123, %s126
      %p135 = scmp.eq.s32.totalorder %s54, 1
      %p136 = por %p134, %p135
      %p137 = scmp.ne.s32.totalorder %s126, %s127
      %p138 = scmp.eq.s32.totalorder %s54, 0
      %p139 = por %p137, %p138
      %p140 = scmp.ne.s32.totalorder %s126, %s127
      %p141 = scmp.eq.s32.totalorder %s55, 1
      %p142 = por %p140, %p141
      %p144 = scmp.ne.s32.totalorder %s127, %s143
      %p145 = scmp.eq.s32.totalorder %s55, 0
      %p146 = por %p144, %p145
      %s147 = ssub.s32 %s57, %s64
      %p148 = scmp.eq.s32.totalorder %s147, 0
      %s150 = sadd.s32 %s149, 1
      %s151 = scalar_select %p148, %s149, %s150
      %p154 = pneg %p148
      %p155 = scmp.eq.s32.totalorder %s49, 1
      %p156 = por %p154, %p155
      %p157 = scmp.ne.s32.totalorder %s149, %s152
      %p158 = scmp.eq.s32.totalorder %s49, 0
      %p159 = por %p157, %p158
      %p160 = scmp.ne.s32.totalorder %s149, %s152
      %p161 = scmp.eq.s32.totalorder %s54, 1
      %p162 = por %p160, %p161
      %p163 = scmp.ne.s32.totalorder %s152, %s153
      %p164 = scmp.eq.s32.totalorder %s54, 0
      %p165 = por %p163, %p164
      %p166 = scmp.ne.s32.totalorder %s152, %s153
      %p167 = scmp.eq.s32.totalorder %s55, 1
      %p168 = por %p166, %p167
      %p170 = scmp.ne.s32.totalorder %s153, %s169
      %p171 = scmp.eq.s32.totalorder %s55, 0
      %p172 = por %p170, %p171
      %s173 = ssub.s32 %s57, %s64
      %p174 = scmp.eq.s32.totalorder %s173, 0
      %s176 = sadd.s32 %s175, 1
      %s177 = scalar_select %p174, %s175, %s176
      %p180 = pneg %p174
      %p181 = scmp.eq.s32.totalorder %s49, 1
      %p182 = por %p180, %p181
      %p183 = scmp.ne.s32.totalorder %s175, %s178
      %p184 = scmp.eq.s32.totalorder %s49, 0
      %p185 = por %p183, %p184
      %p186 = scmp.ne.s32.totalorder %s175, %s178
      %p187 = scmp.eq.s32.totalorder %s54, 1
      %p188 = por %p186, %p187
      %p189 = scmp.ne.s32.totalorder %s178, %s179
      %p190 = scmp.eq.s32.totalorder %s54, 0
      %p191 = por %p189, %p190
      %p192 = scmp.ne.s32.totalorder %s178, %s179
      %p193 = scmp.eq.s32.totalorder %s55, 1
      %p194 = por %p192, %p193
      %p196 = scmp.ne.s32.totalorder %s179, %s195
      %p197 = scmp.eq.s32.totalorder %s55, 0
      %p198 = por %p196, %p197
      %s199 = ssub.s32 %s57, %s64
      %p200 = scmp.eq.s32.totalorder %s199, 0
      %s202 = sadd.s32 %s201, 1
      %s203 = scalar_select %p200, %s201, %s202
      %p206 = pneg %p200
      %p207 = scmp.eq.s32.totalorder %s49, 1
      %p208 = por %p206, %p207
      %p209 = scmp.ne.s32.totalorder %s201, %s204
      %p210 = scmp.eq.s32.totalorder %s49, 0
      %p211 = por %p209, %p210
      %p212 = scmp.ne.s32.totalorder %s201, %s204
      %p213 = scmp.eq.s32.totalorder %s54, 1
      %p214 = por %p212, %p213
      %p215 = scmp.ne.s32.totalorder %s204, %s205
      %p216 = scmp.eq.s32.totalorder %s54, 0
      %p217 = por %p215, %p216
      %p218 = scmp.ne.s32.totalorder %s204, %s205
      %p219 = scmp.eq.s32.totalorder %s55, 1
      %p220 = por %p218, %p219
      %p222 = scmp.ne.s32.totalorder %s205, %s221
      %p223 = scmp.eq.s32.totalorder %s55, 0
      %p224 = por %p222, %p223
      %s225 = ssub.s32 %s57, %s64
      %p226 = scmp.eq.s32.totalorder %s225, 0
      %s228 = sadd.s32 %s227, 1
      %s229 = scalar_select %p226, %s227, %s228
      %p232 = pneg %p226
      %p233 = scmp.eq.s32.totalorder %s49, 1
      %p234 = por %p232, %p233
      %p235 = scmp.ne.s32.totalorder %s227, %s230
      %p236 = scmp.eq.s32.totalorder %s49, 0
      %p237 = por %p235, %p236
      %p238 = scmp.ne.s32.totalorder %s227, %s230
      %p239 = scmp.eq.s32.totalorder %s54, 1
      %p240 = por %p238, %p239
      %p241 = scmp.ne.s32.totalorder %s230, %s231
      %p242 = scmp.eq.s32.totalorder %s54, 0
      %p243 = por %p241, %p242
      %p244 = scmp.ne.s32.totalorder %s230, %s231
      %p245 = scmp.eq.s32.totalorder %s55, 1
      %p246 = por %p244, %p245
      %p248 = scmp.ne.s32.totalorder %s231, %s247
      %p249 = scmp.eq.s32.totalorder %s55, 0
      %p250 = por %p248, %p249
      %s251 = ssub.s32 %s57, %s64
      %p252 = scmp.eq.s32.totalorder %s251, 0
      %s254 = sadd.s32 %s253, 1
      %s255 = scalar_select %p252, %s253, %s254
      %p258 = pneg %p252
      %p259 = scmp.eq.s32.totalorder %s49, 1
      %p260 = por %p258, %p259
      %p261 = scmp.ne.s32.totalorder %s253, %s256
      %p262 = scmp.eq.s32.totalorder %s49, 0
      %p263 = por %p261, %p262
      %p264 = scmp.ne.s32.totalorder %s253, %s256
      %p265 = scmp.eq.s32.totalorder %s54, 1
      %p266 = por %p264, %p265
      %p267 = scmp.ne.s32.totalorder %s256, %s257
      %p268 = scmp.eq.s32.totalorder %s54, 0
      %p269 = por %p267, %p268
      %p270 = scmp.ne.s32.totalorder %s256, %s257
      %p271 = scmp.eq.s32.totalorder %s55, 1
      %p272 = por %p270, %p271
      %p274 = scmp.ne.s32.totalorder %s257, %s273
      %p275 = scmp.eq.s32.totalorder %s55, 0
      %p276 = por %p274, %p275
      %s277 = ssub.s32 %s57, %s64
      %p278 = scmp.eq.s32.totalorder %s277, 0
      %s280 = sadd.s32 %s279, 1
      %s281 = scalar_select %p278, %s279, %s280
      %p284 = pneg %p278
      %p285 = scmp.eq.s32.totalorder %s49, 1
      %p286 = por %p284, %p285
      %p287 = scmp.ne.s32.totalorder %s279, %s282
      %p288 = scmp.eq.s32.totalorder %s49, 0
      %p289 = por %p287, %p288
      %p290 = scmp.ne.s32.totalorder %s279, %s282
      %p291 = scmp.eq.s32.totalorder %s54, 1
      %p292 = por %p290, %p291
      %p293 = scmp.ne.s32.totalorder %s282, %s283
      %p294 = scmp.eq.s32.totalorder %s54, 0
      %p295 = por %p293, %p294
      %p296 = scmp.ne.s32.totalorder %s282, %s283
      %p297 = scmp.eq.s32.totalorder %s55, 1
      %p298 = por %p296, %p297
      %p300 = scmp.ne.s32.totalorder %s283, %s299
      %p301 = scmp.eq.s32.totalorder %s55, 0
      %p302 = por %p300, %p301
      %s303 = ssub.s32 %s57, %s64
      %p304 = scmp.eq.s32.totalorder %s303, 0
      %s306 = sadd.s32 %s305, 1
      %s307 = scalar_select %p304, %s305, %s306
      %p310 = pneg %p304
      %p311 = scmp.eq.s32.totalorder %s49, 1
      %p312 = por %p310, %p311
      %p313 = scmp.ne.s32.totalorder %s305, %s308
      %p314 = scmp.eq.s32.totalorder %s49, 0
      %p315 = por %p313, %p314
      %p316 = scmp.ne.s32.totalorder %s305, %s308
      %p317 = scmp.eq.s32.totalorder %s54, 1
      %p318 = por %p316, %p317
      %p319 = scmp.ne.s32.totalorder %s308, %s309
      %p320 = scmp.eq.s32.totalorder %s54, 0
      %p321 = por %p319, %p320
      %p322 = scmp.ne.s32.totalorder %s308, %s309
      %p323 = scmp.eq.s32.totalorder %s55, 1
      %p324 = por %p322, %p323
      %p326 = scmp.ne.s32.totalorder %s309, %s325
      %p327 = scmp.eq.s32.totalorder %s55, 0
      %p328 = por %p326, %p327
      %s329 = ssub.s32 %s57, %s64
      %p330 = scmp.eq.s32.totalorder %s329, 0
      %s332 = sadd.s32 %s331, 1
      %s333 = scalar_select %p330, %s331, %s332
      %p336 = pneg %p330
      %p337 = scmp.eq.s32.totalorder %s49, 1
      %p338 = por %p336, %p337
      %p339 = scmp.ne.s32.totalorder %s331, %s334
      %p340 = scmp.eq.s32.totalorder %s49, 0
      %p341 = por %p339, %p340
      %p342 = scmp.ne.s32.totalorder %s331, %s334
      %p343 = scmp.eq.s32.totalorder %s54, 1
      %p344 = por %p342, %p343
      %p345 = scmp.ne.s32.totalorder %s334, %s335
      %p346 = scmp.eq.s32.totalorder %s54, 0
      %p347 = por %p345, %p346
      %p348 = scmp.ne.s32.totalorder %s334, %s335
      %p349 = scmp.eq.s32.totalorder %s55, 1
      %p350 = por %p348, %p349
      %p352 = scmp.ne.s32.totalorder %s335, %s351
      %p353 = scmp.eq.s32.totalorder %s55, 0
      %p354 = por %p352, %p353
      %s355 = ssub.s32 %s57, %s64
      %p356 = scmp.eq.s32.totalorder %s355, 0
      %s358 = sadd.s32 %s357, 1
      %s359 = scalar_select %p356, %s357, %s358
      %p362 = pneg %p356
      %p363 = scmp.eq.s32.totalorder %s49, 1
      %p364 = por %p362, %p363
      %p365 = scmp.ne.s32.totalorder %s357, %s360
      %p366 = scmp.eq.s32.totalorder %s49, 0
      %p367 = por %p365, %p366
      %p368 = scmp.ne.s32.totalorder %s357, %s360
      %p369 = scmp.eq.s32.totalorder %s54, 1
      %p370 = por %p368, %p369
      %p371 = scmp.ne.s32.totalorder %s360, %s361
      %p372 = scmp.eq.s32.totalorder %s54, 0
      %p373 = por %p371, %p372
      %p374 = scmp.ne.s32.totalorder %s360, %s361
      %p375 = scmp.eq.s32.totalorder %s55, 1
      %p376 = por %p374, %p375
      %p378 = scmp.ne.s32.totalorder %s361, %s377
      %p379 = scmp.eq.s32.totalorder %s55, 0
      %p380 = por %p378, %p379
      %s381 = ssub.s32 %s57, %s64
      %p382 = scmp.eq.s32.totalorder %s381, 0
      %s384 = sadd.s32 %s383, 1
      %s385 = scalar_select %p382, %s383, %s384
      %p388 = pneg %p382
      %p389 = scmp.eq.s32.totalorder %s49, 1
      %p390 = por %p388, %p389
      %p391 = scmp.ne.s32.totalorder %s383, %s386
      %p392 = scmp.eq.s32.totalorder %s49, 0
      %p393 = por %p391, %p392
      %p394 = scmp.ne.s32.totalorder %s383, %s386
      %p395 = scmp.eq.s32.totalorder %s54, 1
      %p396 = por %p394, %p395
      %p397 = scmp.ne.s32.totalorder %s386, %s387
      %p398 = scmp.eq.s32.totalorder %s54, 0
      %p399 = por %p397, %p398
      %p400 = scmp.ne.s32.totalorder %s386, %s387
      %p401 = scmp.eq.s32.totalorder %s55, 1
      %p402 = por %p400, %p401
      %p404 = scmp.ne.s32.totalorder %s387, %s403
      %p405 = scmp.eq.s32.totalorder %s55, 0
      %p406 = por %p404, %p405
      %s407 = ssub.s32 %s57, %s64
      %p408 = scmp.eq.s32.totalorder %s407, 0
      %s410 = sadd.s32 %s409, 1
      %s411 = scalar_select %p408, %s409, %s410
      %p414 = pneg %p408
      %p415 = scmp.eq.s32.totalorder %s49, 1
      %p416 = por %p414, %p415
      %p417 = scmp.ne.s32.totalorder %s409, %s412
      %p418 = scmp.eq.s32.totalorder %s49, 0
      %p419 = por %p417, %p418
      %p420 = scmp.ne.s32.totalorder %s409, %s412
      %p421 = scmp.eq.s32.totalorder %s54, 1
      %p422 = por %p420, %p421
      %p423 = scmp.ne.s32.totalorder %s412, %s413
      %p424 = scmp.eq.s32.totalorder %s54, 0
      %p425 = por %p423, %p424
      %p426 = scmp.ne.s32.totalorder %s412, %s413
      %p427 = scmp.eq.s32.totalorder %s55, 1
      %p428 = por %p426, %p427
      %p430 = scmp.ne.s32.totalorder %s413, %s429
      %p431 = scmp.eq.s32.totalorder %s55, 0
      %p432 = por %p430, %p431
      %s433 = ssub.s32 %s57, %s64
      %p434 = scmp.eq.s32.totalorder %s433, 0
      %s436 = sadd.s32 %s435, 1
      %s437 = scalar_select %p434, %s435, %s436
      %p440 = pneg %p434
      %p441 = scmp.eq.s32.totalorder %s49, 1
      %p442 = por %p440, %p441
      %p443 = scmp.ne.s32.totalorder %s435, %s438
      %p444 = scmp.eq.s32.totalorder %s49, 0
      %p445 = por %p443, %p444
      %p446 = scmp.ne.s32.totalorder %s435, %s438
      %p447 = scmp.eq.s32.totalorder %s54, 1
      %p448 = por %p446, %p447
      %p449 = scmp.ne.s32.totalorder %s438, %s439
      %p450 = scmp.eq.s32.totalorder %s54, 0
      %p451 = por %p449, %p450
      %p452 = scmp.ne.s32.totalorder %s438, %s439
      %p453 = scmp.eq.s32.totalorder %s55, 1
      %p454 = por %p452, %p453
      %p456 = scmp.ne.s32.totalorder %s439, %s455
      %p457 = scmp.eq.s32.totalorder %s55, 0
      %p458 = por %p456, %p457
      %s460 = sadd.s32 %s459, 1
      %p463 = scmp.eq.s32.totalorder %s49, 1
      %p464 = scmp.ne.s32.totalorder %s459, %s461
      %p465 = scmp.eq.s32.totalorder %s49, 0
      %p466 = por %p464, %p465
      %p467 = scmp.ne.s32.totalorder %s459, %s461
      %p468 = scmp.eq.s32.totalorder %s54, 1
      %p469 = por %p467, %p468
      %p470 = scmp.ne.s32.totalorder %s461, %s462
      %p471 = scmp.eq.s32.totalorder %s54, 0
      %p472 = por %p470, %p471
      %p473 = scmp.ne.s32.totalorder %s461, %s462
      %p474 = scmp.eq.s32.totalorder %s55, 1
      %p475 = por %p473, %p474
      %p477 = scmp.ne.s32.totalorder %s462, %s476
      %p478 = scmp.eq.s32.totalorder %s55, 0
      %p479 = por %p477, %p478
      %s481 = sadd.s32 %s480, 1
      %p484 = scmp.eq.s32.totalorder %s49, 1
      %p485 = scmp.ne.s32.totalorder %s480, %s482
      %p486 = scmp.eq.s32.totalorder %s49, 0
      %p487 = por %p485, %p486
      %p488 = scmp.ne.s32.totalorder %s480, %s482
      %p489 = scmp.eq.s32.totalorder %s54, 1
      %p490 = por %p488, %p489
      %p491 = scmp.ne.s32.totalorder %s482, %s483
      %p492 = scmp.eq.s32.totalorder %s54, 0
      %p493 = por %p491, %p492
      %p494 = scmp.ne.s32.totalorder %s482, %s483
      %p495 = scmp.eq.s32.totalorder %s55, 1
      %p496 = por %p494, %p495
      %p498 = scmp.ne.s32.totalorder %s483, %s497
      %p499 = scmp.eq.s32.totalorder %s55, 0
      %p500 = por %p498, %p499
      %s501 = ssub.s32 %s56, %s68
      %p502 = scmp.eq.s32.totalorder %s501, 0
      %s504 = sadd.s32 %s503, 1
      %s505 = scalar_select %p502, %s503, %s504
      %p508 = pneg %p502
      %p509 = scmp.eq.s32.totalorder %s49, 1
      %p510 = por %p508, %p509
      %p511 = scmp.ne.s32.totalorder %s503, %s506
      %p512 = scmp.eq.s32.totalorder %s49, 0
      %p513 = por %p511, %p512
      %p514 = scmp.ne.s32.totalorder %s503, %s506
      %p515 = scmp.eq.s32.totalorder %s54, 1
      %p516 = por %p514, %p515
      %p517 = scmp.ne.s32.totalorder %s506, %s507
      %p518 = scmp.eq.s32.totalorder %s54, 0
      %p519 = por %p517, %p518
      %p520 = scmp.ne.s32.totalorder %s506, %s507
      %p521 = scmp.eq.s32.totalorder %s55, 1
      %p522 = por %p520, %p521
      %p524 = scmp.ne.s32.totalorder %s507, %s523
      %p525 = scmp.eq.s32.totalorder %s55, 0
      %p526 = por %p524, %p525
      %s527 = ssub.s32 %s56, %s68
      %p528 = scmp.eq.s32.totalorder %s527, 0
      %s530 = sadd.s32 %s529, 1
      %s531 = scalar_select %p528, %s529, %s530
      %p534 = pneg %p528
      %p535 = scmp.eq.s32.totalorder %s49, 1
      %p536 = por %p534, %p535
      %p537 = scmp.ne.s32.totalorder %s529, %s532
      %p538 = scmp.eq.s32.totalorder %s49, 0
      %p539 = por %p537, %p538
      %p540 = scmp.ne.s32.totalorder %s529, %s532
      %p541 = scmp.eq.s32.totalorder %s54, 1
      %p542 = por %p540, %p541
      %p543 = scmp.ne.s32.totalorder %s532, %s533
      %p544 = scmp.eq.s32.totalorder %s54, 0
      %p545 = por %p543, %p544
      %p546 = scmp.ne.s32.totalorder %s532, %s533
      %p547 = scmp.eq.s32.totalorder %s55, 1
      %p548 = por %p546, %p547
      %p550 = scmp.ne.s32.totalorder %s533, %s549
      %p551 = scmp.eq.s32.totalorder %s55, 0
      %p552 = por %p550, %p551
      %s553 = ssub.s32 %s56, %s68
      %p554 = scmp.eq.s32.totalorder %s553, 0
      %s556 = sadd.s32 %s555, 1
      %s557 = scalar_select %p554, %s555, %s556
      %p560 = pneg %p554
      %p561 = scmp.eq.s32.totalorder %s49, 1
      %p562 = por %p560, %p561
      %p563 = scmp.ne.s32.totalorder %s555, %s558
      %p564 = scmp.eq.s32.totalorder %s49, 0
      %p565 = por %p563, %p564
      %p566 = scmp.ne.s32.totalorder %s555, %s558
      %p567 = scmp.eq.s32.totalorder %s54, 1
      %p568 = por %p566, %p567
      %p569 = scmp.ne.s32.totalorder %s558, %s559
      %p570 = scmp.eq.s32.totalorder %s54, 0
      %p571 = por %p569, %p570
      %p572 = scmp.ne.s32.totalorder %s558, %s559
      %p573 = scmp.eq.s32.totalorder %s55, 1
      %p574 = por %p572, %p573
      %p576 = scmp.ne.s32.totalorder %s559, %s575
      %p577 = scmp.eq.s32.totalorder %s55, 0
      %p578 = por %p576, %p577
      %p579 = scmp.le.s32.totalorder 1, %s49
      %p580 = scmp.lt.s32.totalorder %s49, 3
      %p581 = pnand %p579, %p580
      %p582 = pneg %p581
      // Predicated region
      $region9: #{tpu_custom_call.1} parent=5 // pred_check
        _
      $region10: #{tpu_custom_call.1} parent=5 // pred_check_branch
        %584 = sbr.rel (%p581) target = $region12
      $region11: #{tpu_custom_call.1} parent=5 // pred_region
        %s585 = ssub.s32 %s49, 1
        // Predicated region
        $region13: #{tpu_custom_call.1} parent=11 // pred_check
          %p586 = pneg %p87
        $region14: #{tpu_custom_call.1} parent=11 // pred_check_branch
          %588 = sbr.rel (%p586) target = $region16
        $region15: #{tpu_custom_call.1} parent=11 // pred_region
          %s589 = smul.u32 2, %s58
          %s591 = ssub.s32 256, 256
          %592 = vsyncadd [#allocation4], %s591
          %s593 = smul.addr %s589, 128
          %s594 = scalar_lea.hbm %s0, %s593
          %s595 = sshll.u32 [#allocation3], 4
          %s596 = int_to_ptr.vmem [resolvable:$true] %s595
          %601 = dma.hbm_to_vmem [thread:$0]  %s594, 256, %s596, [#allocation4], 128, 128, 8
        $region16: #{tpu_custom_call.1} parent=11 // pred_fallthru
          _
        // Predicated region
        $region17: #{tpu_custom_call.1} parent=11 // pred_check
          %p602 = pneg %p472
        $region18: #{tpu_custom_call.1} parent=11 // pred_check_branch
          %604 = sbr.rel (%p602) target = $region20
        $region19: #{tpu_custom_call.1} parent=11 // pred_region
          %s606 = ssub.s32 16, 16
          %607 = vsyncadd [#allocation28], %s606
          %s609 = sshll.u32 [#allocation27], 4
          %s610 = int_to_ptr.vmem [resolvable:$true] %s609
          %612 = dma.hbm_to_vmem [thread:$0]  %s15, 16, %s610, [#allocation28]
        $region20: #{tpu_custom_call.1} parent=11 // pred_fallthru
          _
        // Predicated region
        $region21: #{tpu_custom_call.1} parent=11 // pred_check
          %p613 = pneg %p493
        $region22: #{tpu_custom_call.1} parent=11 // pred_check_branch
          %615 = sbr.rel (%p613) target = $region24
        $region23: #{tpu_custom_call.1} parent=11 // pred_region
          %s617 = ssub.s32 16, 16
          %618 = vsyncadd [#allocation28], %s617
          %s620 = sshll.u32 [#allocation29], 4
          %s621 = int_to_ptr.vmem [resolvable:$true] %s620
          %623 = dma.hbm_to_vmem [thread:$0]  %s16, 16, %s621, [#allocation28]
        $region24: #{tpu_custom_call.1} parent=11 // pred_fallthru
          _
        // Predicated region
        $region25: #{tpu_custom_call.1} parent=11 // pred_check
          %p624 = pneg %p519
        $region26: #{tpu_custom_call.1} parent=11 // pred_check_branch
          %626 = sbr.rel (%p624) target = $region28
        $region27: #{tpu_custom_call.1} parent=11 // pred_region
          %s627 = smul.u32 2, %s58
          %p628 = scmp.lt.s32.totalorder %s627, 1
          %s629 = scalar_select %p628, %s627, 1
          %s630 = smul.addr %s629, 8
          %s631 = scalar_lea.vmem %s17, %s630
          %s632 = smul.u32 2, %s58
        $region28: #{tpu_custom_call.1} parent=11 // pred_fallthru
          _
        // Predicated region
        $region29: #{tpu_custom_call.1} parent=11 // pred_check
          %p633 = pneg %p545
        $region30: #{tpu_custom_call.1} parent=11 // pred_check_branch
          %635 = sbr.rel (%p633) target = $region32
        $region31: #{tpu_custom_call.1} parent=11 // pred_region
          %s636 = smul.u32 2, %s58
          %p637 = scmp.lt.s32.totalorder %s636, 1
          %s638 = scalar_select %p637, %s636, 1
          %s639 = smul.addr %s638, 8
          %s640 = scalar_lea.vmem %s18, %s639
          %s641 = smul.u32 2, %s58
        $region32: #{tpu_custom_call.1} parent=11 // pred_fallthru
          _
      $region12: #{tpu_custom_call.1} parent=5 // pred_fallthru
        _
      %p642 = scmp.lt.s32.totalorder %s49, 2
      // Predicated region
      $region33: #{tpu_custom_call.1} parent=5 // pred_check
        %p643 = pneg %p642
      $region34: #{tpu_custom_call.1} parent=5 // pred_check_branch
        %645 = sbr.rel (%p643) target = $region36
      $region35: #{tpu_custom_call.1} parent=5 // pred_region
        // Predicated region
        $region37: #{tpu_custom_call.1} parent=35 // pred_check
          %p646 = pneg %p107
        $region38: #{tpu_custom_call.1} parent=35 // pred_check_branch
          %648 = sbr.rel (%p646) target = $region40
        $region39: #{tpu_custom_call.1} parent=35 // pred_region
          %s649 = sand.u32 %s49, 1
          %s650 = scalar_lea.sflag [#allocation7], %s649
          %s651 = sand.u32 %s97, 1
          %s652 = scalar_lea.vmem [#allocation6], %s651
          %s654 = ssub.s32 16, 16
          %655 = vsyncadd %s650, %s654
          %s656 = smul.addr %s57, 16
          %s657 = scalar_lea.hbm %s1, %s656
          %s659 = sshll.u32 %s652, 4
          %s660 = int_to_ptr.vmem [resolvable:$true] %s659
          %662 = dma.hbm_to_vmem [thread:$0]  %s657, 16, %s660, %s650
        $region40: #{tpu_custom_call.1} parent=35 // pred_fallthru
          _
        // Predicated region
        $region41: #{tpu_custom_call.1} parent=35 // pred_check
          %p663 = pneg %p133
        $region42: #{tpu_custom_call.1} parent=35 // pred_check_branch
          %665 = sbr.rel (%p663) target = $region44
        $region43: #{tpu_custom_call.1} parent=35 // pred_region
          %s666 = sand.u32 %s49, 1
          %s667 = scalar_lea.sflag [#allocation7], %s666
          %s668 = sand.u32 %s123, 1
          %s669 = scalar_lea.vmem [#allocation8], %s668
          %s671 = ssub.s32 16, 16
          %672 = vsyncadd %s667, %s671
          %s673 = smul.addr %s57, 16
          %s674 = scalar_lea.hbm %s2, %s673
          %s676 = sshll.u32 %s669, 4
          %s677 = int_to_ptr.vmem [resolvable:$true] %s676
          %679 = dma.hbm_to_vmem [thread:$0]  %s674, 16, %s677, %s667
        $region44: #{tpu_custom_call.1} parent=35 // pred_fallthru
          _
        // Predicated region
        $region45: #{tpu_custom_call.1} parent=35 // pred_check
          %p680 = pneg %p159
        $region46: #{tpu_custom_call.1} parent=35 // pred_check_branch
          %682 = sbr.rel (%p680) target = $region48
        $region47: #{tpu_custom_call.1} parent=35 // pred_region
          %s683 = sand.u32 %s49, 1
          %s684 = scalar_lea.sflag [#allocation10], %s683
          %s685 = sand.u32 %s149, 1
          %s686 = smul.addr %s685, 16
          %s687 = scalar_lea.vmem [#allocation9], %s686
          %s689 = ssub.s32 256, 256
          %690 = vsyncadd %s684, %s689
          %s691 = smul.addr %s57, 4
          %s692 = smul.addr %s691, 64
          %s693 = scalar_lea.hbm %s3, %s692
          %s694 = sshll.u32 %s687, 4
          %s695 = int_to_ptr.vmem [resolvable:$true] %s694
          %700 = dma.hbm_to_vmem [thread:$0]  %s693, 256, %s695, %s684, 64, 64, 4
        $region48: #{tpu_custom_call.1} parent=35 // pred_fallthru
          _
        // Predicated region
        $region49: #{tpu_custom_call.1} parent=35 // pred_check
          %p701 = pneg %p185
        $region50: #{tpu_custom_call.1} parent=35 // pred_check_branch
          %703 = sbr.rel (%p701) target = $region52
        $region51: #{tpu_custom_call.1} parent=35 // pred_region
          %s704 = sand.u32 %s49, 1
          %s705 = scalar_lea.sflag [#allocation10], %s704
          %s706 = sand.u32 %s175, 1
          %s707 = scalar_lea.vmem [#allocation11], %s706
          %s709 = ssub.s32 16, 16
          %710 = vsyncadd %s705, %s709
          %s711 = smul.addr %s57, 16
          %s712 = scalar_lea.hbm %s4, %s711
          %s714 = sshll.u32 %s707, 4
          %s715 = int_to_ptr.vmem [resolvable:$true] %s714
          %717 = dma.hbm_to_vmem [thread:$0]  %s712, 16, %s715, %s705
        $region52: #{tpu_custom_call.1} parent=35 // pred_fallthru
          _
        // Predicated region
        $region53: #{tpu_custom_call.1} parent=35 // pred_check
          %p718 = pneg %p211
        $region54: #{tpu_custom_call.1} parent=35 // pred_check_branch
          %720 = sbr.rel (%p718) target = $region56
        $region55: #{tpu_custom_call.1} parent=35 // pred_region
          %s721 = sand.u32 %s49, 1
          %s722 = scalar_lea.sflag [#allocation13], %s721
          %s723 = sand.u32 %s201, 1
          %s724 = smul.addr %s723, 16
          %s725 = scalar_lea.vmem [#allocation12], %s724
          %s727 = ssub.s32 256, 256
          %728 = vsyncadd %s722, %s727
          %s729 = smul.addr %s57, 4
          %s730 = smul.addr %s729, 64
          %s731 = scalar_lea.hbm %s5, %s730
          %s732 = sshll.u32 %s725, 4
          %s733 = int_to_ptr.vmem [resolvable:$true] %s732
          %738 = dma.hbm_to_vmem [thread:$0]  %s731, 256, %s733, %s722, 64, 64, 4
        $region56: #{tpu_custom_call.1} parent=35 // pred_fallthru
          _
        // Predicated region
        $region57: #{tpu_custom_call.1} parent=35 // pred_check
          %p739 = pneg %p237
        $region58: #{tpu_custom_call.1} parent=35 // pred_check_branch
          %741 = sbr.rel (%p739) target = $region60
        $region59: #{tpu_custom_call.1} parent=35 // pred_region
          %s742 = sand.u32 %s49, 1
          %s743 = scalar_lea.sflag [#allocation13], %s742
          %s744 = sand.u32 %s227, 1
          %s745 = scalar_lea.vmem [#allocation14], %s744
          %s747 = ssub.s32 16, 16
          %748 = vsyncadd %s743, %s747
          %s749 = smul.addr %s57, 16
          %s750 = scalar_lea.hbm %s6, %s749
          %s752 = sshll.u32 %s745, 4
          %s753 = int_to_ptr.vmem [resolvable:$true] %s752
          %755 = dma.hbm_to_vmem [thread:$0]  %s750, 16, %s753, %s743
        $region60: #{tpu_custom_call.1} parent=35 // pred_fallthru
          _
        // Predicated region
        $region61: #{tpu_custom_call.1} parent=35 // pred_check
          %p756 = pneg %p263
        $region62: #{tpu_custom_call.1} parent=35 // pred_check_branch
          %758 = sbr.rel (%p756) target = $region64
        $region63: #{tpu_custom_call.1} parent=35 // pred_region
          %s759 = sand.u32 %s49, 1
          %s760 = scalar_lea.sflag [#allocation16], %s759
          %s761 = sand.u32 %s253, 1
          %s762 = smul.addr %s761, 16
          %s763 = scalar_lea.vmem [#allocation15], %s762
          %s765 = ssub.s32 256, 256
          %766 = vsyncadd %s760, %s765
          %s767 = smul.addr %s57, 4
          %s768 = smul.addr %s767, 64
          %s769 = scalar_lea.hbm %s7, %s768
          %s770 = sshll.u32 %s763, 4
          %s771 = int_to_ptr.vmem [resolvable:$true] %s770
          %776 = dma.hbm_to_vmem [thread:$0]  %s769, 256, %s771, %s760, 64, 64, 4
        $region64: #{tpu_custom_call.1} parent=35 // pred_fallthru
          _
        // Predicated region
        $region65: #{tpu_custom_call.1} parent=35 // pred_check
          %p777 = pneg %p289
        $region66: #{tpu_custom_call.1} parent=35 // pred_check_branch
          %779 = sbr.rel (%p777) target = $region68
        $region67: #{tpu_custom_call.1} parent=35 // pred_region
          %s780 = sand.u32 %s49, 1
          %s781 = scalar_lea.sflag [#allocation16], %s780
          %s782 = sand.u32 %s279, 1
          %s783 = scalar_lea.vmem [#allocation17], %s782
          %s785 = ssub.s32 16, 16
          %786 = vsyncadd %s781, %s785
          %s787 = smul.addr %s57, 16
          %s788 = scalar_lea.hbm %s8, %s787
          %s790 = sshll.u32 %s783, 4
          %s791 = int_to_ptr.vmem [resolvable:$true] %s790
          %793 = dma.hbm_to_vmem [thread:$0]  %s788, 16, %s791, %s781
        $region68: #{tpu_custom_call.1} parent=35 // pred_fallthru
          _
        // Predicated region
        $region69: #{tpu_custom_call.1} parent=35 // pred_check
          %p794 = pneg %p315
        $region70: #{tpu_custom_call.1} parent=35 // pred_check_branch
          %796 = sbr.rel (%p794) target = $region72
        $region71: #{tpu_custom_call.1} parent=35 // pred_region
          %s797 = sand.u32 %s49, 1
          %s798 = scalar_lea.sflag [#allocation19], %s797
          %s799 = sand.u32 %s305, 1
          %s800 = scalar_lea.vmem [#allocation18], %s799
          %s802 = ssub.s32 16, 16
          %803 = vsyncadd %s798, %s802
          %s804 = smul.addr %s57, 16
          %s805 = scalar_lea.hbm %s9, %s804
          %s807 = sshll.u32 %s800, 4
          %s808 = int_to_ptr.vmem [resolvable:$true] %s807
          %810 = dma.hbm_to_vmem [thread:$0]  %s805, 16, %s808, %s798
        $region72: #{tpu_custom_call.1} parent=35 // pred_fallthru
          _
        // Predicated region
        $region73: #{tpu_custom_call.1} parent=35 // pred_check
          %p811 = pneg %p341
        $region74: #{tpu_custom_call.1} parent=35 // pred_check_branch
          %813 = sbr.rel (%p811) target = $region76
        $region75: #{tpu_custom_call.1} parent=35 // pred_region
          %s814 = sand.u32 %s49, 1
          %s815 = scalar_lea.sflag [#allocation19], %s814
          %s816 = sand.u32 %s331, 1
          %s817 = scalar_lea.vmem [#allocation20], %s816
          %s819 = ssub.s32 16, 16
          %820 = vsyncadd %s815, %s819
          %s821 = smul.addr %s57, 16
          %s822 = scalar_lea.hbm %s10, %s821
          %s824 = sshll.u32 %s817, 4
          %s825 = int_to_ptr.vmem [resolvable:$true] %s824
          %827 = dma.hbm_to_vmem [thread:$0]  %s822, 16, %s825, %s815
        $region76: #{tpu_custom_call.1} parent=35 // pred_fallthru
          _
        // Predicated region
        $region77: #{tpu_custom_call.1} parent=35 // pred_check
          %p828 = pneg %p367
        $region78: #{tpu_custom_call.1} parent=35 // pred_check_branch
          %830 = sbr.rel (%p828) target = $region80
        $region79: #{tpu_custom_call.1} parent=35 // pred_region
          %s831 = sand.u32 %s49, 1
          %s832 = scalar_lea.sflag [#allocation22], %s831
          %s833 = sand.u32 %s357, 1
          %s834 = smul.addr %s833, 16
          %s835 = scalar_lea.vmem [#allocation21], %s834
          %s837 = ssub.s32 256, 256
          %838 = vsyncadd %s832, %s837
          %s839 = smul.addr %s57, 4
          %s840 = smul.addr %s839, 64
          %s841 = scalar_lea.hbm %s11, %s840
          %s842 = sshll.u32 %s835, 4
          %s843 = int_to_ptr.vmem [resolvable:$true] %s842
          %848 = dma.hbm_to_vmem [thread:$0]  %s841, 256, %s843, %s832, 64, 64, 4
        $region80: #{tpu_custom_call.1} parent=35 // pred_fallthru
          _
        // Predicated region
        $region81: #{tpu_custom_call.1} parent=35 // pred_check
          %p849 = pneg %p393
        $region82: #{tpu_custom_call.1} parent=35 // pred_check_branch
          %851 = sbr.rel (%p849) target = $region84
        $region83: #{tpu_custom_call.1} parent=35 // pred_region
          %s852 = sand.u32 %s49, 1
          %s853 = scalar_lea.sflag [#allocation22], %s852
          %s854 = sand.u32 %s383, 1
          %s855 = scalar_lea.vmem [#allocation23], %s854
          %s857 = ssub.s32 16, 16
          %858 = vsyncadd %s853, %s857
          %s859 = smul.addr %s57, 16
          %s860 = scalar_lea.hbm %s12, %s859
          %s862 = sshll.u32 %s855, 4
          %s863 = int_to_ptr.vmem [resolvable:$true] %s862
          %865 = dma.hbm_to_vmem [thread:$0]  %s860, 16, %s863, %s853
        $region84: #{tpu_custom_call.1} parent=35 // pred_fallthru
          _
        // Predicated region
        $region85: #{tpu_custom_call.1} parent=35 // pred_check
          %p866 = pneg %p419
        $region86: #{tpu_custom_call.1} parent=35 // pred_check_branch
          %868 = sbr.rel (%p866) target = $region88
        $region87: #{tpu_custom_call.1} parent=35 // pred_region
          %s869 = sand.u32 %s49, 1
          %s870 = scalar_lea.sflag [#allocation25], %s869
          %s871 = sand.u32 %s409, 1
          %s872 = smul.addr %s871, 16
          %s873 = scalar_lea.vmem [#allocation24], %s872
          %s875 = ssub.s32 256, 256
          %876 = vsyncadd %s870, %s875
          %s877 = smul.addr %s57, 4
          %s878 = smul.addr %s877, 64
          %s879 = scalar_lea.hbm %s13, %s878
          %s880 = sshll.u32 %s873, 4
          %s881 = int_to_ptr.vmem [resolvable:$true] %s880
          %886 = dma.hbm_to_vmem [thread:$0]  %s879, 256, %s881, %s870, 64, 64, 4
        $region88: #{tpu_custom_call.1} parent=35 // pred_fallthru
          _
        // Predicated region
        $region89: #{tpu_custom_call.1} parent=35 // pred_check
          %p887 = pneg %p445
        $region90: #{tpu_custom_call.1} parent=35 // pred_check_branch
          %889 = sbr.rel (%p887) target = $region92
        $region91: #{tpu_custom_call.1} parent=35 // pred_region
          %s890 = sand.u32 %s49, 1
          %s891 = scalar_lea.sflag [#allocation25], %s890
          %s892 = sand.u32 %s435, 1
          %s893 = scalar_lea.vmem [#allocation26], %s892
          %s895 = ssub.s32 16, 16
          %896 = vsyncadd %s891, %s895
          %s897 = smul.addr %s57, 16
          %s898 = scalar_lea.hbm %s14, %s897
          %s900 = sshll.u32 %s893, 4
          %s901 = int_to_ptr.vmem [resolvable:$true] %s900
          %903 = dma.hbm_to_vmem [thread:$0]  %s898, 16, %s901, %s891
        $region92: #{tpu_custom_call.1} parent=35 // pred_fallthru
          _
      $region36: #{tpu_custom_call.1} parent=5 // pred_fallthru
        _
      %p904 = scmp.le.s32.totalorder 1, %s49
      %p905 = scmp.lt.s32.totalorder %s49, 3
      %p906 = pnand %p904, %p905
      %p907 = pneg %p906
      // Predicated region
      $region93: #{tpu_custom_call.1} parent=5 // pred_check
        _
      $region94: #{tpu_custom_call.1} parent=5 // pred_check_branch
        %909 = sbr.rel (%p906) target = $region96
      $region95: #{tpu_custom_call.1} parent=5 // pred_region
        %s910 = ssub.s32 %s49, 1
        // Predicated region
        $region97: #{tpu_custom_call.1} parent=95 // pred_check
          %p911 = pneg %p87
        $region98: #{tpu_custom_call.1} parent=95 // pred_check_branch
          %913 = sbr.rel (%p911) target = $region100
        $region99: #{tpu_custom_call.1} parent=95 // pred_region
          %914 = dma.done [#allocation4], 256
        $region100: #{tpu_custom_call.1} parent=95 // pred_fallthru
          _
        %s915 = sand.u32 %s54, 1
        %s916 = scalar_lea.sflag [#allocation7], %s915
        %s917 = sand.u32 %s100, 1
        %s918 = scalar_lea.vmem [#allocation6], %s917
        // Predicated region
        $region101: #{tpu_custom_call.1} parent=95 // pred_check
          %p919 = pneg %p113
        $region102: #{tpu_custom_call.1} parent=95 // pred_check_branch
          %921 = sbr.rel (%p919) target = $region104
        $region103: #{tpu_custom_call.1} parent=95 // pred_region
          %922 = dma.done %s916, 16
        $region104: #{tpu_custom_call.1} parent=95 // pred_fallthru
          _
        %s923 = sand.u32 %s54, 1
        %s924 = scalar_lea.sflag [#allocation7], %s923
        %s925 = sand.u32 %s126, 1
        %s926 = scalar_lea.vmem [#allocation8], %s925
        // Predicated region
        $region105: #{tpu_custom_call.1} parent=95 // pred_check
          %p927 = pneg %p139
        $region106: #{tpu_custom_call.1} parent=95 // pred_check_branch
          %929 = sbr.rel (%p927) target = $region108
        $region107: #{tpu_custom_call.1} parent=95 // pred_region
          %930 = dma.done %s924, 16
        $region108: #{tpu_custom_call.1} parent=95 // pred_fallthru
          _
        %s931 = sand.u32 %s54, 1
        %s932 = scalar_lea.sflag [#allocation10], %s931
        %s933 = sand.u32 %s152, 1
        %s934 = smul.addr %s933, 16
        %s935 = scalar_lea.vmem [#allocation9], %s934
        // Predicated region
        $region109: #{tpu_custom_call.1} parent=95 // pred_check
          %p936 = pneg %p165
        $region110: #{tpu_custom_call.1} parent=95 // pred_check_branch
          %938 = sbr.rel (%p936) target = $region112
        $region111: #{tpu_custom_call.1} parent=95 // pred_region
          %939 = dma.done %s932, 256
        $region112: #{tpu_custom_call.1} parent=95 // pred_fallthru
          _
        %s940 = sand.u32 %s54, 1
        %s941 = scalar_lea.sflag [#allocation10], %s940
        %s942 = sand.u32 %s178, 1
        %s943 = scalar_lea.vmem [#allocation11], %s942
        // Predicated region
        $region113: #{tpu_custom_call.1} parent=95 // pred_check
          %p944 = pneg %p191
        $region114: #{tpu_custom_call.1} parent=95 // pred_check_branch
          %946 = sbr.rel (%p944) target = $region116
        $region115: #{tpu_custom_call.1} parent=95 // pred_region
          %947 = dma.done %s941, 16
        $region116: #{tpu_custom_call.1} parent=95 // pred_fallthru
          _
        %s948 = sand.u32 %s54, 1
        %s949 = scalar_lea.sflag [#allocation13], %s948
        %s950 = sand.u32 %s204, 1
        %s951 = smul.addr %s950, 16
        %s952 = scalar_lea.vmem [#allocation12], %s951
        // Predicated region
        $region117: #{tpu_custom_call.1} parent=95 // pred_check
          %p953 = pneg %p217
        $region118: #{tpu_custom_call.1} parent=95 // pred_check_branch
          %955 = sbr.rel (%p953) target = $region120
        $region119: #{tpu_custom_call.1} parent=95 // pred_region
          %956 = dma.done %s949, 256
        $region120: #{tpu_custom_call.1} parent=95 // pred_fallthru
          _
        %s957 = sand.u32 %s54, 1
        %s958 = scalar_lea.sflag [#allocation13], %s957
        %s959 = sand.u32 %s230, 1
        %s960 = scalar_lea.vmem [#allocation14], %s959
        // Predicated region
        $region121: #{tpu_custom_call.1} parent=95 // pred_check
          %p961 = pneg %p243
        $region122: #{tpu_custom_call.1} parent=95 // pred_check_branch
          %963 = sbr.rel (%p961) target = $region124
        $region123: #{tpu_custom_call.1} parent=95 // pred_region
          %964 = dma.done %s958, 16
        $region124: #{tpu_custom_call.1} parent=95 // pred_fallthru
          _
        %s965 = sand.u32 %s54, 1
        %s966 = scalar_lea.sflag [#allocation16], %s965
        %s967 = sand.u32 %s256, 1
        %s968 = smul.addr %s967, 16
        %s969 = scalar_lea.vmem [#allocation15], %s968
        // Predicated region
        $region125: #{tpu_custom_call.1} parent=95 // pred_check
          %p970 = pneg %p269
        $region126: #{tpu_custom_call.1} parent=95 // pred_check_branch
          %972 = sbr.rel (%p970) target = $region128
        $region127: #{tpu_custom_call.1} parent=95 // pred_region
          %973 = dma.done %s966, 256
        $region128: #{tpu_custom_call.1} parent=95 // pred_fallthru
          _
        %s974 = sand.u32 %s54, 1
        %s975 = scalar_lea.sflag [#allocation16], %s974
        %s976 = sand.u32 %s282, 1
        %s977 = scalar_lea.vmem [#allocation17], %s976
        // Predicated region
        $region129: #{tpu_custom_call.1} parent=95 // pred_check
          %p978 = pneg %p295
        $region130: #{tpu_custom_call.1} parent=95 // pred_check_branch
          %980 = sbr.rel (%p978) target = $region132
        $region131: #{tpu_custom_call.1} parent=95 // pred_region
          %981 = dma.done %s975, 16
        $region132: #{tpu_custom_call.1} parent=95 // pred_fallthru
          _
        %s982 = sand.u32 %s54, 1
        %s983 = scalar_lea.sflag [#allocation19], %s982
        %s984 = sand.u32 %s308, 1
        %s985 = scalar_lea.vmem [#allocation18], %s984
        // Predicated region
        $region133: #{tpu_custom_call.1} parent=95 // pred_check
          %p986 = pneg %p321
        $region134: #{tpu_custom_call.1} parent=95 // pred_check_branch
          %988 = sbr.rel (%p986) target = $region136
        $region135: #{tpu_custom_call.1} parent=95 // pred_region
          %989 = dma.done %s983, 16
        $region136: #{tpu_custom_call.1} parent=95 // pred_fallthru
          _
        %s990 = sand.u32 %s54, 1
        %s991 = scalar_lea.sflag [#allocation19], %s990
        %s992 = sand.u32 %s334, 1
        %s993 = scalar_lea.vmem [#allocation20], %s992
        // Predicated region
        $region137: #{tpu_custom_call.1} parent=95 // pred_check
          %p994 = pneg %p347
        $region138: #{tpu_custom_call.1} parent=95 // pred_check_branch
          %996 = sbr.rel (%p994) target = $region140
        $region139: #{tpu_custom_call.1} parent=95 // pred_region
          %997 = dma.done %s991, 16
        $region140: #{tpu_custom_call.1} parent=95 // pred_fallthru
          _
        %s998 = sand.u32 %s54, 1
        %s999 = scalar_lea.sflag [#allocation22], %s998
        %s1000 = sand.u32 %s360, 1
        %s1001 = smul.addr %s1000, 16
        %s1002 = scalar_lea.vmem [#allocation21], %s1001
        // Predicated region
        $region141: #{tpu_custom_call.1} parent=95 // pred_check
          %p1003 = pneg %p373
        $region142: #{tpu_custom_call.1} parent=95 // pred_check_branch
          %1005 = sbr.rel (%p1003) target = $region144
        $region143: #{tpu_custom_call.1} parent=95 // pred_region
          %1006 = dma.done %s999, 256
        $region144: #{tpu_custom_call.1} parent=95 // pred_fallthru
          _
        %s1007 = sand.u32 %s54, 1
        %s1008 = scalar_lea.sflag [#allocation22], %s1007
        %s1009 = sand.u32 %s386, 1
        %s1010 = scalar_lea.vmem [#allocation23], %s1009
        // Predicated region
        $region145: #{tpu_custom_call.1} parent=95 // pred_check
          %p1011 = pneg %p399
        $region146: #{tpu_custom_call.1} parent=95 // pred_check_branch
          %1013 = sbr.rel (%p1011) target = $region148
        $region147: #{tpu_custom_call.1} parent=95 // pred_region
          %1014 = dma.done %s1008, 16
        $region148: #{tpu_custom_call.1} parent=95 // pred_fallthru
          _
        %s1015 = sand.u32 %s54, 1
        %s1016 = scalar_lea.sflag [#allocation25], %s1015
        %s1017 = sand.u32 %s412, 1
        %s1018 = smul.addr %s1017, 16
        %s1019 = scalar_lea.vmem [#allocation24], %s1018
        // Predicated region
        $region149: #{tpu_custom_call.1} parent=95 // pred_check
          %p1020 = pneg %p425
        $region150: #{tpu_custom_call.1} parent=95 // pred_check_branch
          %1022 = sbr.rel (%p1020) target = $region152
        $region151: #{tpu_custom_call.1} parent=95 // pred_region
          %1023 = dma.done %s1016, 256
        $region152: #{tpu_custom_call.1} parent=95 // pred_fallthru
          _
        %s1024 = sand.u32 %s54, 1
        %s1025 = scalar_lea.sflag [#allocation25], %s1024
        %s1026 = sand.u32 %s438, 1
        %s1027 = scalar_lea.vmem [#allocation26], %s1026
        // Predicated region
        $region153: #{tpu_custom_call.1} parent=95 // pred_check
          %p1028 = pneg %p451
        $region154: #{tpu_custom_call.1} parent=95 // pred_check_branch
          %1030 = sbr.rel (%p1028) target = $region156
        $region155: #{tpu_custom_call.1} parent=95 // pred_region
          %1031 = dma.done %s1025, 16
        $region156: #{tpu_custom_call.1} parent=95 // pred_fallthru
          _
        // Predicated region
        $region157: #{tpu_custom_call.1} parent=95 // pred_check
          %p1032 = pneg %p472
        $region158: #{tpu_custom_call.1} parent=95 // pred_check_branch
          %1034 = sbr.rel (%p1032) target = $region160
        $region159: #{tpu_custom_call.1} parent=95 // pred_region
          %1035 = dma.done [#allocation28], 16
        $region160: #{tpu_custom_call.1} parent=95 // pred_fallthru
          _
        // Predicated region
        $region161: #{tpu_custom_call.1} parent=95 // pred_check
          %p1036 = pneg %p493
        $region162: #{tpu_custom_call.1} parent=95 // pred_check_branch
          %1038 = sbr.rel (%p1036) target = $region164
        $region163: #{tpu_custom_call.1} parent=95 // pred_region
          %1039 = dma.done [#allocation28], 16
        $region164: #{tpu_custom_call.1} parent=95 // pred_fallthru
          _
        %p1040 = pneg %p87
        %p1041 = pneg %p84
        %s1042 = sand.u32 %s54, 1
        %s1043 = scalar_lea.sflag [#allocation7], %s1042
        %s1044 = sand.u32 %s100, 1
        %s1045 = scalar_lea.vmem [#allocation6], %s1044
        %p1046 = pneg %p113
        %p1047 = pneg %p110
        %s1048 = sand.u32 %s54, 1
        %s1049 = scalar_lea.sflag [#allocation7], %s1048
        %s1050 = sand.u32 %s126, 1
        %s1051 = scalar_lea.vmem [#allocation8], %s1050
        %p1052 = pneg %p139
        %p1053 = pneg %p136
        %s1054 = sand.u32 %s54, 1
        %s1055 = scalar_lea.sflag [#allocation10], %s1054
        %s1056 = sand.u32 %s152, 1
        %s1057 = smul.addr %s1056, 16
        %s1058 = scalar_lea.vmem [#allocation9], %s1057
        %p1059 = pneg %p165
        %p1060 = pneg %p162
        %s1061 = sand.u32 %s54, 1
        %s1062 = scalar_lea.sflag [#allocation10], %s1061
        %s1063 = sand.u32 %s178, 1
        %s1064 = scalar_lea.vmem [#allocation11], %s1063
        %p1065 = pneg %p191
        %p1066 = pneg %p188
        %s1067 = sand.u32 %s54, 1
        %s1068 = scalar_lea.sflag [#allocation13], %s1067
        %s1069 = sand.u32 %s204, 1
        %s1070 = smul.addr %s1069, 16
        %s1071 = scalar_lea.vmem [#allocation12], %s1070
        %p1072 = pneg %p217
        %p1073 = pneg %p214
        %s1074 = sand.u32 %s54, 1
        %s1075 = scalar_lea.sflag [#allocation13], %s1074
        %s1076 = sand.u32 %s230, 1
        %s1077 = scalar_lea.vmem [#allocation14], %s1076
        %p1078 = pneg %p243
        %p1079 = pneg %p240
        %s1080 = sand.u32 %s54, 1
        %s1081 = scalar_lea.sflag [#allocation16], %s1080
        %s1082 = sand.u32 %s256, 1
        %s1083 = smul.addr %s1082, 16
        %s1084 = scalar_lea.vmem [#allocation15], %s1083
        %p1085 = pneg %p269
        %p1086 = pneg %p266
        %s1087 = sand.u32 %s54, 1
        %s1088 = scalar_lea.sflag [#allocation16], %s1087
        %s1089 = sand.u32 %s282, 1
        %s1090 = scalar_lea.vmem [#allocation17], %s1089
        %p1091 = pneg %p295
        %p1092 = pneg %p292
        %s1093 = sand.u32 %s54, 1
        %s1094 = scalar_lea.sflag [#allocation19], %s1093
        %s1095 = sand.u32 %s308, 1
        %s1096 = scalar_lea.vmem [#allocation18], %s1095
        %p1097 = pneg %p321
        %p1098 = pneg %p318
        %s1099 = sand.u32 %s54, 1
        %s1100 = scalar_lea.sflag [#allocation19], %s1099
        %s1101 = sand.u32 %s334, 1
        %s1102 = scalar_lea.vmem [#allocation20], %s1101
        %p1103 = pneg %p347
        %p1104 = pneg %p344
        %s1105 = sand.u32 %s54, 1
        %s1106 = scalar_lea.sflag [#allocation22], %s1105
        %s1107 = sand.u32 %s360, 1
        %s1108 = smul.addr %s1107, 16
        %s1109 = scalar_lea.vmem [#allocation21], %s1108
        %p1110 = pneg %p373
        %p1111 = pneg %p370
        %s1112 = sand.u32 %s54, 1
        %s1113 = scalar_lea.sflag [#allocation22], %s1112
        %s1114 = sand.u32 %s386, 1
        %s1115 = scalar_lea.vmem [#allocation23], %s1114
        %p1116 = pneg %p399
        %p1117 = pneg %p396
        %s1118 = sand.u32 %s54, 1
        %s1119 = scalar_lea.sflag [#allocation25], %s1118
        %s1120 = sand.u32 %s412, 1
        %s1121 = smul.addr %s1120, 16
        %s1122 = scalar_lea.vmem [#allocation24], %s1121
        %p1123 = pneg %p425
        %p1124 = pneg %p422
        %s1125 = sand.u32 %s54, 1
        %s1126 = scalar_lea.sflag [#allocation25], %s1125
        %s1127 = sand.u32 %s438, 1
        %s1128 = scalar_lea.vmem [#allocation26], %s1127
        %p1129 = pneg %p451
        %p1130 = pneg %p448
        %p1131 = pneg %p472
        %p1132 = pneg %p469
        %p1133 = pneg %p493
        %p1134 = pneg %p490
        %s1135 = smul.u32 2, %s58
        %p1136 = scmp.lt.s32.totalorder %s1135, 1
        %s1137 = scalar_select %p1136, %s1135, 1
        %s1138 = smul.addr %s1137, 8
        %s1139 = scalar_lea.vmem %s17, %s1138
        %p1140 = pneg %p519
        %p1141 = pneg %p516
        %s1142 = smul.u32 2, %s58
        %p1143 = scmp.lt.s32.totalorder %s1142, 1
        %s1144 = scalar_select %p1143, %s1142, 1
        %s1145 = smul.addr %s1144, 8
        %s1146 = scalar_lea.vmem %s18, %s1145
        %p1147 = pneg %p545
        %p1148 = pneg %p542
        %p1149 = pneg %p571
        %p1150 = pneg %p568
        %s1151 = smul.u32 2, %s58
        %s1152 = smul.u32 2, %s58
        %p1153 = scmp.lt.s32.totalorder %s1152, 1
        %s1154 = scalar_select %p1153, %s1152, 1
        %s1155 = smul.addr %s1154, 8
        %s1156 = scalar_lea.vmem %s17, %s1155
        %s1157 = smul.u32 2, %s58
        %s1158 = smul.u32 2, %s58
        %p1159 = scmp.lt.s32.totalorder %s1158, 1
        %s1160 = scalar_select %p1159, %s1158, 1
        %s1161 = smul.addr %s1160, 8
        %s1162 = scalar_lea.vmem %s18, %s1161
        %s1163 = smul.u32 2, %s58
        %p1165 = scmp.eq.s32.totalorder %s59, 0
        // Predicated region
        $region165: #{tpu_custom_call.1} parent=95 // pred_check
          %p1166 = pneg %p1165
        $region166: #{tpu_custom_call.1} parent=95 // pred_check_branch
          %1168 = sbr.rel (%p1166) target = $region168
        $region167: #{tpu_custom_call.1} parent=95 // pred_region
          %v1169 = vld [vmem:[#allocation3] sm:$0xff]
          %v1170 = vld [vmem:[#allocation3 + $0x8] sm:$0xff]
          %vm1171 = vcmask 261120
          %1172 = vst.msk [vmem:[#allocation2] sm:$0xff] %vm1171, %v1169
          %1173 = vst.msk [vmem:[#allocation2 + $0x8] sm:$0xff] %vm1171, %v1170
        $region168: #{tpu_custom_call.1} parent=95 // pred_fallthru
          _
        %v1174 = vld [vmem:[#allocation2] sm:$0xff]
        %v1175 = vld [vmem:[#allocation2 + $0x8] sm:$0xff]
        %v1176 = vld [vmem:[%s918] sm:$0x1]
        %v1177 = vld [vmem:[%s926] sm:$0x1]
        %vm1178 = vcmask 261120
        %v1179 = vsel %vm1178, %v1174, 0.0
        %1180 = vadd.xlane.f32.xlu0 %v1179
        %v1181 = vpop.xlane.xlu0 %1180
        %v1182 = vsel %vm1178, %v1175, 0.0
        %1183 = vadd.xlane.f32.xlu0 %v1182
        %v1184 = vpop.xlane.xlu0 %1183
        %v1185 = vrcp.pop 32.0
        %v1186 = vmul.f32 %v1181, %v1185
        %v1187 = vmul.f32 %v1184, %v1185
        %v1188 = vsub.f32 %v1174, %v1186
        %v1189 = vsub.f32 %v1175, %v1187
        %v1190 = vmul.f32 %v1188, %v1188
        %v1191 = vmul.f32 %v1189, %v1189
        %v1192 = vsel %vm1178, %v1190, 0.0
        %1193 = vadd.xlane.f32.xlu0 %v1192
        %v1194 = vpop.xlane.xlu0 %1193
        %v1195 = vsel %vm1178, %v1191, 0.0
        %1196 = vadd.xlane.f32.xlu0 %v1195
        %v1197 = vpop.xlane.xlu0 %1196
        %v1198 = vmul.f32 %v1194, %v1185
        %v1199 = vmul.f32 %v1197, %v1185
        %v1200 = vadd.f32 %v1198, 1e-08
        %v1201 = vadd.f32 %v1199, 1e-08
        %v1202 = vrsqrt.pop %v1200
        %v1203 = vrsqrt.pop %v1201
        %v1204 = vmul.f32 %v1188, %v1202
        %v1205 = vmul.f32 %v1189, %v1203
        %v1207 = vlaneseq
        %v1208 = vshrl.u32 %v1207, 7
        %v1209 = vsub.s32 0, %v1208
        %v1210 = vrot.slane %v1176, %v1209
        %v1212 = vmul.f32 %v1204, %v1210
        %v1213 = vmul.f32 %v1205, %v1210
        %v1215 = vlaneseq
        %v1216 = vshrl.u32 %v1215, 7
        %v1217 = vsub.s32 0, %v1216
        %v1218 = vrot.slane %v1177, %v1217
        %v1220 = vadd.f32 %v1212, %v1218
        %v1221 = vadd.f32 %v1213, %v1218
        %v1222 = vpack.c.bf16 %v1221, %v1220
        %v1223 = vld [vmem:[%s935] sm:$0xf]
        %v1224 = vld [vmem:[%s935 + $0x4] sm:$0xf]
        %v1225 = vld [vmem:[%s935 + $0x8] sm:$0xf]
        %v1226 = vld [vmem:[%s935 + $0xc] sm:$0xf]
        %v1227 = vld [vmem:[%s943] sm:$0x1]
        %v1229 = vlaneseq
        %v1230 = vshrl.u32 %v1229, 7
        %v1231 = vsub.s32 0, %v1230
        %v1232 = vrot.slane %v1227, %v1231
        %v1238 = vunpack.c.l.b16 %v1223
        %v1239 = vunpack.c.l.b16 %v1224
        %v1240 = vunpack.c.l.b16 %v1225
        %v1241 = vunpack.c.l.b16 %v1226
        %v1242 = vpack.c.b16 %v1239, %v1238
        %v1243 = vpack.c.b16 %v1241, %v1240
        %v1247 = vsel %vm1178, %v1222, 0
        %1249 = vmatprep.subr.bf16.mxu0 0
        %1250 = vmatpush1.bf16.msra.mxu0 0
        %1251 = vmatprep.subr.bf16.mxu0 0
        %1252 = vmatpush1.bf16.msra.mxu0 0
        %1253 = vmatprep.subr.bf16.mxu0 0
        %1254 = vmatpush1.bf16.msra.mxu0 0
        %1255 = vmatprep.subr.bf16.mxu0 0
        %1256 = vmatpush1.bf16.msra.mxu0 0
        %1257 = vmatprep.subr.bf16.mxu0 0
        %1258 = vmatpush1.bf16.msra.mxu0 0
        %1259 = vmatprep.subr.bf16.mxu0 0
        %1260 = vmatpush1.bf16.msra.mxu0 0
        %1261 = vmatprep.subr.bf16.mxu0 0
        %1262 = vmatpush1.bf16.msra.mxu0 %v1243
        %1263 = vmatprep.subr.bf16.mxu0 0
        %1264 = vmatpush1.bf16.msra.mxu0 %v1242
        %1265 = vmatprep.subr.bf16.mxu0 0
        %1266 = vmatpush2.bf16.msra.mxu0 0
        %1267 = vmatprep.subr.bf16.mxu0 0
        %1268 = vmatpush2.bf16.msra.mxu0 0
        %1269 = vmatprep.subr.bf16.mxu0 0
        %1270 = vmatpush2.bf16.msra.mxu0 0
        %1271 = vmatprep.subr.bf16.mxu0 0
        %1272 = vmatpush2.bf16.msra.mxu0 0
        %1273 = vmatprep.subr.bf16.mxu0 0
        %1274 = vmatpush2.bf16.msra.mxu0 0
        %1275 = vmatprep.subr.bf16.mxu0 0
        %1276 = vmatpush2.bf16.msra.mxu0 0
        %1277 = vmatprep.subr.bf16.mxu0 0
        %1278 = vmatpush2.bf16.msra.mxu0 0
        %1279 = vmatprep.subr.bf16.mxu0 0
        %1280 = vmatpush2.bf16.msra.mxu0 0
        %1281 = vmatprep.mubr.bf16.mxu0 0
        %1282 = vmatmul.mubr.bf16.gmra.mxu0 %v1247
        %v1283 = vpop.f32.mrf.mxu0
        %v1284 = vadd.f32 %v1232, %v1283
        %v1285 = vpop.f32.mrf.mxu0
        %v1286 = vpop.f32.mrf.mxu0
        %v1287 = vadd.f32 %v1232, %v1286
        %v1288 = vpop.f32.mrf.mxu0
        %1289 = vdwg.mxu0
        %v1290 = vpack.c.bf16 %v1175, %v1174
        %v1291 = vld [vmem:[%s952] sm:$0xf]
        %v1292 = vld [vmem:[%s952 + $0x4] sm:$0xf]
        %v1293 = vld [vmem:[%s952 + $0x8] sm:$0xf]
        %v1294 = vld [vmem:[%s952 + $0xc] sm:$0xf]
        %v1295 = vld [vmem:[%s960] sm:$0x1]
        %v1297 = vlaneseq
        %v1298 = vshrl.u32 %v1297, 7
        %v1299 = vsub.s32 0, %v1298
        %v1300 = vrot.slane %v1295, %v1299
        %v1306 = vunpack.c.l.b16 %v1291
        %v1307 = vunpack.c.l.b16 %v1292
        %v1308 = vunpack.c.l.b16 %v1293
        %v1309 = vunpack.c.l.b16 %v1294
        %v1310 = vpack.c.b16 %v1307, %v1306
        %v1311 = vpack.c.b16 %v1309, %v1308
        %v1315 = vsel %vm1178, %v1290, 0
        %1317 = vmatprep.subr.bf16.mxu0 0
        %1318 = vmatpush1.bf16.msra.mxu0 0
        %1319 = vmatprep.subr.bf16.mxu0 0
        %1320 = vmatpush1.bf16.msra.mxu0 0
        %1321 = vmatprep.subr.bf16.mxu0 0
        %1322 = vmatpush1.bf16.msra.mxu0 0
        %1323 = vmatprep.subr.bf16.mxu0 0
        %1324 = vmatpush1.bf16.msra.mxu0 0
        %1325 = vmatprep.subr.bf16.mxu0 0
        %1326 = vmatpush1.bf16.msra.mxu0 0
        %1327 = vmatprep.subr.bf16.mxu0 0
        %1328 = vmatpush1.bf16.msra.mxu0 0
        %1329 = vmatprep.subr.bf16.mxu0 0
        %1330 = vmatpush1.bf16.msra.mxu0 %v1311
        %1331 = vmatprep.subr.bf16.mxu0 0
        %1332 = vmatpush1.bf16.msra.mxu0 %v1310
        %1333 = vmatprep.subr.bf16.mxu0 0
        %1334 = vmatpush2.bf16.msra.mxu0 0
        %1335 = vmatprep.subr.bf16.mxu0 0
        %1336 = vmatpush2.bf16.msra.mxu0 0
        %1337 = vmatprep.subr.bf16.mxu0 0
        %1338 = vmatpush2.bf16.msra.mxu0 0
        %1339 = vmatprep.subr.bf16.mxu0 0
        %1340 = vmatpush2.bf16.msra.mxu0 0
        %1341 = vmatprep.subr.bf16.mxu0 0
        %1342 = vmatpush2.bf16.msra.mxu0 0
        %1343 = vmatprep.subr.bf16.mxu0 0
        %1344 = vmatpush2.bf16.msra.mxu0 0
        %1345 = vmatprep.subr.bf16.mxu0 0
        %1346 = vmatpush2.bf16.msra.mxu0 0
        %1347 = vmatprep.subr.bf16.mxu0 0
        %1348 = vmatpush2.bf16.msra.mxu0 0
        %1349 = vmatprep.mubr.bf16.mxu0 0
        %1350 = vmatmul.mubr.bf16.gmra.mxu0 %v1315
        %v1351 = vpop.f32.mrf.mxu0
        %v1352 = vadd.f32 %v1300, %v1351
        %v1353 = vpop.f32.mrf.mxu0
        %v1354 = vpop.f32.mrf.mxu0
        %v1355 = vadd.f32 %v1300, %v1354
        %v1356 = vpop.f32.mrf.mxu0
        %1357 = vdwg.mxu0
        %v1358 = vmul.f32 %v1284, 0.25
        %v1359 = vmul.f32 %v1287, 0.25
        %1362 = vrot.lane.b32.xlu0 %v1358, 112
        %v1363 = vpop.permute.xlu0 %1362
        %1364 = vrot.lane.b32.xlu0 %v1359, 112
        %v1365 = vpop.permute.xlu0 %1364
        %v1368 = vcombine.high %v1358, 0.0
        %v1370 = vunpack.c.l.s4 1983009808
        %v1371 = vunpack.c.0.s8 %v1370
        %v1372 = vlaneseq
        %v1373 = vshrl.u32 %v1372, 7
        %v1374 = vsub.s32 %v1371, %v1373
        %v1375 = vrot.slane %v1358, %v1374
        %v1377 = vunpack.c.l.s4 1983009808
        %v1378 = vunpack.c.0.s8 %v1377
        %v1379 = vlaneseq
        %v1380 = vshrl.u32 %v1379, 7
        %v1381 = vsub.s32 %v1378, %v1380
        %v1382 = vrot.slane %v1368, %v1381
        %v1383 = vcombine.high %v1363, 0.0
        %v1385 = vunpack.c.l.s4 1983009808
        %v1386 = vunpack.c.0.s8 %v1385
        %v1387 = vlaneseq
        %v1388 = vshrl.u32 %v1387, 7
        %v1389 = vsub.s32 %v1386, %v1388
        %v1390 = vrot.slane %v1363, %v1389
        %v1392 = vunpack.c.l.s4 1983009808
        %v1393 = vunpack.c.0.s8 %v1392
        %v1394 = vlaneseq
        %v1395 = vshrl.u32 %v1394, 7
        %v1396 = vsub.s32 %v1393, %v1395
        %v1397 = vrot.slane %v1383, %v1396
        %v1398 = vcombine.low %v1375, %v1390
        %v1399 = vcombine.high %v1375, %v1390
        %v1401 = vunpack.c.l.s4 1934713408
        %v1402 = vunpack.c.0.s8 %v1401
        %v1403 = vlaneseq
        %v1404 = vshrl.u32 %v1403, 7
        %v1405 = vsub.s32 %v1402, %v1404
        %v1406 = vrot.slane %v1398, %v1405
        %v1408 = vunpack.c.l.s4 1934713408
        %v1409 = vunpack.c.0.s8 %v1408
        %v1410 = vlaneseq
        %v1411 = vshrl.u32 %v1410, 7
        %v1412 = vsub.s32 %v1409, %v1411
        %v1413 = vrot.slane %v1399, %v1412
        %v1414 = vcombine.low %v1382, %v1397
        %v1415 = vcombine.high %v1382, %v1397
        %v1417 = vunpack.c.l.s4 1934713408
        %v1418 = vunpack.c.0.s8 %v1417
        %v1419 = vlaneseq
        %v1420 = vshrl.u32 %v1419, 7
        %v1421 = vsub.s32 %v1418, %v1420
        %v1422 = vrot.slane %v1414, %v1421
        %v1424 = vunpack.c.l.s4 1934713408
        %v1425 = vunpack.c.0.s8 %v1424
        %v1426 = vlaneseq
        %v1427 = vshrl.u32 %v1426, 7
        %v1428 = vsub.s32 %v1425, %v1427
        %v1429 = vrot.slane %v1415, %v1428
        %v1430 = vcombine.high %v1406, 0.0
        %v1431 = vcombine.high %v1413, 0.0
        %v1432 = vcombine.high %v1422, 0.0
        %v1433 = vcombine.high %v1429, 0.0
        %v1434 = vcombine.high %v1359, 0.0
        %v1436 = vunpack.c.l.s4 1983009808
        %v1437 = vunpack.c.0.s8 %v1436
        %v1438 = vlaneseq
        %v1439 = vshrl.u32 %v1438, 7
        %v1440 = vsub.s32 %v1437, %v1439
        %v1441 = vrot.slane %v1359, %v1440
        %v1443 = vunpack.c.l.s4 1983009808
        %v1444 = vunpack.c.0.s8 %v1443
        %v1445 = vlaneseq
        %v1446 = vshrl.u32 %v1445, 7
        %v1447 = vsub.s32 %v1444, %v1446
        %v1448 = vrot.slane %v1434, %v1447
        %v1449 = vcombine.high %v1365, 0.0
        %v1451 = vunpack.c.l.s4 1983009808
        %v1452 = vunpack.c.0.s8 %v1451
        %v1453 = vlaneseq
        %v1454 = vshrl.u32 %v1453, 7
        %v1455 = vsub.s32 %v1452, %v1454
        %v1456 = vrot.slane %v1365, %v1455
        %v1458 = vunpack.c.l.s4 1983009808
        %v1459 = vunpack.c.0.s8 %v1458
        %v1460 = vlaneseq
        %v1461 = vshrl.u32 %v1460, 7
        %v1462 = vsub.s32 %v1459, %v1461
        %v1463 = vrot.slane %v1449, %v1462
        %v1464 = vcombine.low %v1441, %v1456
        %v1465 = vcombine.high %v1441, %v1456
        %v1467 = vunpack.c.l.s4 1934713408
        %v1468 = vunpack.c.0.s8 %v1467
        %v1469 = vlaneseq
        %v1470 = vshrl.u32 %v1469, 7
        %v1471 = vsub.s32 %v1468, %v1470
        %v1472 = vrot.slane %v1464, %v1471
        %v1474 = vunpack.c.l.s4 1934713408
        %v1475 = vunpack.c.0.s8 %v1474
        %v1476 = vlaneseq
        %v1477 = vshrl.u32 %v1476, 7
        %v1478 = vsub.s32 %v1475, %v1477
        %v1479 = vrot.slane %v1465, %v1478
        %v1480 = vcombine.low %v1448, %v1463
        %v1481 = vcombine.high %v1448, %v1463
        %v1483 = vunpack.c.l.s4 1934713408
        %v1484 = vunpack.c.0.s8 %v1483
        %v1485 = vlaneseq
        %v1486 = vshrl.u32 %v1485, 7
        %v1487 = vsub.s32 %v1484, %v1486
        %v1488 = vrot.slane %v1480, %v1487
        %v1490 = vunpack.c.l.s4 1934713408
        %v1491 = vunpack.c.0.s8 %v1490
        %v1492 = vlaneseq
        %v1493 = vshrl.u32 %v1492, 7
        %v1494 = vsub.s32 %v1491, %v1493
        %v1495 = vrot.slane %v1481, %v1494
        %v1496 = vcombine.high %v1472, 0.0
        %v1497 = vcombine.high %v1479, 0.0
        %v1498 = vcombine.high %v1488, 0.0
        %v1499 = vcombine.high %v1495, 0.0
        %v1500 = vcombine.low %v1406, %v1413
        %v1502 = vunpack.c.l.s4 1983009808
        %v1503 = vunpack.c.0.s8 %v1502
        %v1504 = vlaneseq
        %v1505 = vshrl.u32 %v1504, 7
        %v1506 = vsub.s32 %v1503, %v1505
        %v1507 = vrot.slane %v1500, %v1506
        %v1508 = vcombine.low %v1430, %v1431
        %v1510 = vunpack.c.l.s4 1983009808
        %v1511 = vunpack.c.0.s8 %v1510
        %v1512 = vlaneseq
        %v1513 = vshrl.u32 %v1512, 7
        %v1514 = vsub.s32 %v1511, %v1513
        %v1515 = vrot.slane %v1508, %v1514
        %v1516 = vcombine.low %v1422, %v1429
        %v1518 = vunpack.c.l.s4 1983009808
        %v1519 = vunpack.c.0.s8 %v1518
        %v1520 = vlaneseq
        %v1521 = vshrl.u32 %v1520, 7
        %v1522 = vsub.s32 %v1519, %v1521
        %v1523 = vrot.slane %v1516, %v1522
        %v1524 = vcombine.low %v1432, %v1433
        %v1526 = vunpack.c.l.s4 1983009808
        %v1527 = vunpack.c.0.s8 %v1526
        %v1528 = vlaneseq
        %v1529 = vshrl.u32 %v1528, 7
        %v1530 = vsub.s32 %v1527, %v1529
        %v1531 = vrot.slane %v1524, %v1530
        %v1532 = vcombine.low %v1507, %v1515
        %v1534 = vunpack.c.l.s4 1934713408
        %v1535 = vunpack.c.0.s8 %v1534
        %v1536 = vlaneseq
        %v1537 = vshrl.u32 %v1536, 7
        %v1538 = vsub.s32 %v1535, %v1537
        %v1539 = vrot.slane %v1532, %v1538
        %v1540 = vcombine.low %v1523, %v1531
        %v1542 = vunpack.c.l.s4 1934713408
        %v1543 = vunpack.c.0.s8 %v1542
        %v1544 = vlaneseq
        %v1545 = vshrl.u32 %v1544, 7
        %v1546 = vsub.s32 %v1543, %v1545
        %v1547 = vrot.slane %v1540, %v1546
        %v1548 = vcombine.low %v1539, %v1547
        %v1549 = vcombine.high %v1539, %v1547
        %v1550 = vcombine.low %v1472, %v1479
        %v1552 = vunpack.c.l.s4 1983009808
        %v1553 = vunpack.c.0.s8 %v1552
        %v1554 = vlaneseq
        %v1555 = vshrl.u32 %v1554, 7
        %v1556 = vsub.s32 %v1553, %v1555
        %v1557 = vrot.slane %v1550, %v1556
        %v1558 = vcombine.low %v1496, %v1497
        %v1560 = vunpack.c.l.s4 1983009808
        %v1561 = vunpack.c.0.s8 %v1560
        %v1562 = vlaneseq
        %v1563 = vshrl.u32 %v1562, 7
        %v1564 = vsub.s32 %v1561, %v1563
        %v1565 = vrot.slane %v1558, %v1564
        %v1566 = vcombine.low %v1488, %v1495
        %v1568 = vunpack.c.l.s4 1983009808
        %v1569 = vunpack.c.0.s8 %v1568
        %v1570 = vlaneseq
        %v1571 = vshrl.u32 %v1570, 7
        %v1572 = vsub.s32 %v1569, %v1571
        %v1573 = vrot.slane %v1566, %v1572
        %v1574 = vcombine.low %v1498, %v1499
        %v1576 = vunpack.c.l.s4 1983009808
        %v1577 = vunpack.c.0.s8 %v1576
        %v1578 = vlaneseq
        %v1579 = vshrl.u32 %v1578, 7
        %v1580 = vsub.s32 %v1577, %v1579
        %v1581 = vrot.slane %v1574, %v1580
        %v1582 = vcombine.low %v1557, %v1565
        %v1584 = vunpack.c.l.s4 1934713408
        %v1585 = vunpack.c.0.s8 %v1584
        %v1586 = vlaneseq
        %v1587 = vshrl.u32 %v1586, 7
        %v1588 = vsub.s32 %v1585, %v1587
        %v1589 = vrot.slane %v1582, %v1588
        %v1590 = vcombine.low %v1573, %v1581
        %v1592 = vunpack.c.l.s4 1934713408
        %v1593 = vunpack.c.0.s8 %v1592
        %v1594 = vlaneseq
        %v1595 = vshrl.u32 %v1594, 7
        %v1596 = vsub.s32 %v1593, %v1595
        %v1597 = vrot.slane %v1590, %v1596
        %v1598 = vcombine.low %v1589, %v1597
        %v1599 = vcombine.high %v1589, %v1597
        %v1600 = vpack.c.bf16 %v1548, %v1548
        %v1601 = vpack.c.bf16 %v1549, %v1549
        %v1602 = vpack.c.bf16 %v1598, %v1598
        %v1603 = vpack.c.bf16 %v1599, %v1599
        %1606 = vrot.lane.b32.xlu0 %v1352, 112
        %v1607 = vpop.permute.xlu0 %1606
        %1608 = vrot.lane.b32.xlu0 %v1355, 112
        %v1609 = vpop.permute.xlu0 %1608
        %v1612 = vcombine.high %v1352, 0.0
        %v1614 = vunpack.c.l.s4 1983009808
        %v1615 = vunpack.c.0.s8 %v1614
        %v1616 = vlaneseq
        %v1617 = vshrl.u32 %v1616, 7
        %v1618 = vsub.s32 %v1615, %v1617
        %v1619 = vrot.slane %v1352, %v1618
        %v1621 = vunpack.c.l.s4 1983009808
        %v1622 = vunpack.c.0.s8 %v1621
        %v1623 = vlaneseq
        %v1624 = vshrl.u32 %v1623, 7
        %v1625 = vsub.s32 %v1622, %v1624
        %v1626 = vrot.slane %v1612, %v1625
        %v1627 = vcombine.high %v1607, 0.0
        %v1629 = vunpack.c.l.s4 1983009808
        %v1630 = vunpack.c.0.s8 %v1629
        %v1631 = vlaneseq
        %v1632 = vshrl.u32 %v1631, 7
        %v1633 = vsub.s32 %v1630, %v1632
        %v1634 = vrot.slane %v1607, %v1633
        %v1636 = vunpack.c.l.s4 1983009808
        %v1637 = vunpack.c.0.s8 %v1636
        %v1638 = vlaneseq
        %v1639 = vshrl.u32 %v1638, 7
        %v1640 = vsub.s32 %v1637, %v1639
        %v1641 = vrot.slane %v1627, %v1640
        %v1642 = vcombine.low %v1619, %v1634
        %v1643 = vcombine.high %v1619, %v1634
        %v1645 = vunpack.c.l.s4 1934713408
        %v1646 = vunpack.c.0.s8 %v1645
        %v1647 = vlaneseq
        %v1648 = vshrl.u32 %v1647, 7
        %v1649 = vsub.s32 %v1646, %v1648
        %v1650 = vrot.slane %v1642, %v1649
        %v1652 = vunpack.c.l.s4 1934713408
        %v1653 = vunpack.c.0.s8 %v1652
        %v1654 = vlaneseq
        %v1655 = vshrl.u32 %v1654, 7
        %v1656 = vsub.s32 %v1653, %v1655
        %v1657 = vrot.slane %v1643, %v1656
        %v1658 = vcombine.low %v1626, %v1641
        %v1659 = vcombine.high %v1626, %v1641
        %v1661 = vunpack.c.l.s4 1934713408
        %v1662 = vunpack.c.0.s8 %v1661
        %v1663 = vlaneseq
        %v1664 = vshrl.u32 %v1663, 7
        %v1665 = vsub.s32 %v1662, %v1664
        %v1666 = vrot.slane %v1658, %v1665
        %v1668 = vunpack.c.l.s4 1934713408
        %v1669 = vunpack.c.0.s8 %v1668
        %v1670 = vlaneseq
        %v1671 = vshrl.u32 %v1670, 7
        %v1672 = vsub.s32 %v1669, %v1671
        %v1673 = vrot.slane %v1659, %v1672
        %v1674 = vcombine.high %v1650, 0.0
        %v1675 = vcombine.high %v1657, 0.0
        %v1676 = vcombine.high %v1666, 0.0
        %v1677 = vcombine.high %v1673, 0.0
        %v1678 = vcombine.high %v1355, 0.0
        %v1680 = vunpack.c.l.s4 1983009808
        %v1681 = vunpack.c.0.s8 %v1680
        %v1682 = vlaneseq
        %v1683 = vshrl.u32 %v1682, 7
        %v1684 = vsub.s32 %v1681, %v1683
        %v1685 = vrot.slane %v1355, %v1684
        %v1687 = vunpack.c.l.s4 1983009808
        %v1688 = vunpack.c.0.s8 %v1687
        %v1689 = vlaneseq
        %v1690 = vshrl.u32 %v1689, 7
        %v1691 = vsub.s32 %v1688, %v1690
        %v1692 = vrot.slane %v1678, %v1691
        %v1693 = vcombine.high %v1609, 0.0
        %v1695 = vunpack.c.l.s4 1983009808
        %v1696 = vunpack.c.0.s8 %v1695
        %v1697 = vlaneseq
        %v1698 = vshrl.u32 %v1697, 7
        %v1699 = vsub.s32 %v1696, %v1698
        %v1700 = vrot.slane %v1609, %v1699
        %v1702 = vunpack.c.l.s4 1983009808
        %v1703 = vunpack.c.0.s8 %v1702
        %v1704 = vlaneseq
        %v1705 = vshrl.u32 %v1704, 7
        %v1706 = vsub.s32 %v1703, %v1705
        %v1707 = vrot.slane %v1693, %v1706
        %v1708 = vcombine.low %v1685, %v1700
        %v1709 = vcombine.high %v1685, %v1700
        %v1711 = vunpack.c.l.s4 1934713408
        %v1712 = vunpack.c.0.s8 %v1711
        %v1713 = vlaneseq
        %v1714 = vshrl.u32 %v1713, 7
        %v1715 = vsub.s32 %v1712, %v1714
        %v1716 = vrot.slane %v1708, %v1715
        %v1718 = vunpack.c.l.s4 1934713408
        %v1719 = vunpack.c.0.s8 %v1718
        %v1720 = vlaneseq
        %v1721 = vshrl.u32 %v1720, 7
        %v1722 = vsub.s32 %v1719, %v1721
        %v1723 = vrot.slane %v1709, %v1722
        %v1724 = vcombine.low %v1692, %v1707
        %v1725 = vcombine.high %v1692, %v1707
        %v1727 = vunpack.c.l.s4 1934713408
        %v1728 = vunpack.c.0.s8 %v1727
        %v1729 = vlaneseq
        %v1730 = vshrl.u32 %v1729, 7
        %v1731 = vsub.s32 %v1728, %v1730
        %v1732 = vrot.slane %v1724, %v1731
        %v1734 = vunpack.c.l.s4 1934713408
        %v1735 = vunpack.c.0.s8 %v1734
        %v1736 = vlaneseq
        %v1737 = vshrl.u32 %v1736, 7
        %v1738 = vsub.s32 %v1735, %v1737
        %v1739 = vrot.slane %v1725, %v1738
        %v1740 = vcombine.high %v1716, 0.0
        %v1741 = vcombine.high %v1723, 0.0
        %v1742 = vcombine.high %v1732, 0.0
        %v1743 = vcombine.high %v1739, 0.0
        %v1744 = vcombine.low %v1650, %v1657
        %v1746 = vunpack.c.l.s4 1983009808
        %v1747 = vunpack.c.0.s8 %v1746
        %v1748 = vlaneseq
        %v1749 = vshrl.u32 %v1748, 7
        %v1750 = vsub.s32 %v1747, %v1749
        %v1751 = vrot.slane %v1744, %v1750
        %v1752 = vcombine.low %v1674, %v1675
        %v1754 = vunpack.c.l.s4 1983009808
        %v1755 = vunpack.c.0.s8 %v1754
        %v1756 = vlaneseq
        %v1757 = vshrl.u32 %v1756, 7
        %v1758 = vsub.s32 %v1755, %v1757
        %v1759 = vrot.slane %v1752, %v1758
        %v1760 = vcombine.low %v1666, %v1673
        %v1762 = vunpack.c.l.s4 1983009808
        %v1763 = vunpack.c.0.s8 %v1762
        %v1764 = vlaneseq
        %v1765 = vshrl.u32 %v1764, 7
        %v1766 = vsub.s32 %v1763, %v1765
        %v1767 = vrot.slane %v1760, %v1766
        %v1768 = vcombine.low %v1676, %v1677
        %v1770 = vunpack.c.l.s4 1983009808
        %v1771 = vunpack.c.0.s8 %v1770
        %v1772 = vlaneseq
        %v1773 = vshrl.u32 %v1772, 7
        %v1774 = vsub.s32 %v1771, %v1773
        %v1775 = vrot.slane %v1768, %v1774
        %v1776 = vcombine.low %v1751, %v1759
        %v1778 = vunpack.c.l.s4 1934713408
        %v1779 = vunpack.c.0.s8 %v1778
        %v1780 = vlaneseq
        %v1781 = vshrl.u32 %v1780, 7
        %v1782 = vsub.s32 %v1779, %v1781
        %v1783 = vrot.slane %v1776, %v1782
        %v1784 = vcombine.low %v1767, %v1775
        %v1786 = vunpack.c.l.s4 1934713408
        %v1787 = vunpack.c.0.s8 %v1786
        %v1788 = vlaneseq
        %v1789 = vshrl.u32 %v1788, 7
        %v1790 = vsub.s32 %v1787, %v1789
        %v1791 = vrot.slane %v1784, %v1790
        %v1792 = vcombine.low %v1783, %v1791
        %v1793 = vcombine.high %v1783, %v1791
        %v1794 = vcombine.low %v1716, %v1723
        %v1796 = vunpack.c.l.s4 1983009808
        %v1797 = vunpack.c.0.s8 %v1796
        %v1798 = vlaneseq
        %v1799 = vshrl.u32 %v1798, 7
        %v1800 = vsub.s32 %v1797, %v1799
        %v1801 = vrot.slane %v1794, %v1800
        %v1802 = vcombine.low %v1740, %v1741
        %v1804 = vunpack.c.l.s4 1983009808
        %v1805 = vunpack.c.0.s8 %v1804
        %v1806 = vlaneseq
        %v1807 = vshrl.u32 %v1806, 7
        %v1808 = vsub.s32 %v1805, %v1807
        %v1809 = vrot.slane %v1802, %v1808
        %v1810 = vcombine.low %v1732, %v1739
        %v1812 = vunpack.c.l.s4 1983009808
        %v1813 = vunpack.c.0.s8 %v1812
        %v1814 = vlaneseq
        %v1815 = vshrl.u32 %v1814, 7
        %v1816 = vsub.s32 %v1813, %v1815
        %v1817 = vrot.slane %v1810, %v1816
        %v1818 = vcombine.low %v1742, %v1743
        %v1820 = vunpack.c.l.s4 1983009808
        %v1821 = vunpack.c.0.s8 %v1820
        %v1822 = vlaneseq
        %v1823 = vshrl.u32 %v1822, 7
        %v1824 = vsub.s32 %v1821, %v1823
        %v1825 = vrot.slane %v1818, %v1824
        %v1826 = vcombine.low %v1801, %v1809
        %v1828 = vunpack.c.l.s4 1934713408
        %v1829 = vunpack.c.0.s8 %v1828
        %v1830 = vlaneseq
        %v1831 = vshrl.u32 %v1830, 7
        %v1832 = vsub.s32 %v1829, %v1831
        %v1833 = vrot.slane %v1826, %v1832
        %v1834 = vcombine.low %v1817, %v1825
        %v1836 = vunpack.c.l.s4 1934713408
        %v1837 = vunpack.c.0.s8 %v1836
        %v1838 = vlaneseq
        %v1839 = vshrl.u32 %v1838, 7
        %v1840 = vsub.s32 %v1837, %v1839
        %v1841 = vrot.slane %v1834, %v1840
        %v1842 = vcombine.low %v1833, %v1841
        %v1843 = vcombine.high %v1833, %v1841
        %v1844 = vpack.c.bf16 %v1792, %v1792
        %v1845 = vpack.c.bf16 %v1793, %v1793
        %v1846 = vpack.c.bf16 %v1842, %v1842
        %v1847 = vpack.c.bf16 %v1843, %v1843
        %1848 = vrot.lane.b32.xlu0 %v1352, 96
        %v1849 = vpop.permute.xlu0 %1848
        %1850 = vrot.lane.b32.xlu0 %v1355, 96
        %v1851 = vpop.permute.xlu0 %1850
        %1852 = vrot.lane.b32.xlu0 %v1607, 96
        %v1853 = vpop.permute.xlu0 %1852
        %1854 = vrot.lane.b32.xlu0 %v1609, 96
        %v1855 = vpop.permute.xlu0 %1854
        %v1860 = vcombine.high %v1849, 0.0
        %v1862 = vunpack.c.l.s4 1983009808
        %v1863 = vunpack.c.0.s8 %v1862
        %v1864 = vlaneseq
        %v1865 = vshrl.u32 %v1864, 7
        %v1866 = vsub.s32 %v1863, %v1865
        %v1867 = vrot.slane %v1849, %v1866
        %v1869 = vunpack.c.l.s4 1983009808
        %v1870 = vunpack.c.0.s8 %v1869
        %v1871 = vlaneseq
        %v1872 = vshrl.u32 %v1871, 7
        %v1873 = vsub.s32 %v1870, %v1872
        %v1874 = vrot.slane %v1860, %v1873
        %v1875 = vcombine.high %v1853, 0.0
        %v1877 = vunpack.c.l.s4 1983009808
        %v1878 = vunpack.c.0.s8 %v1877
        %v1879 = vlaneseq
        %v1880 = vshrl.u32 %v1879, 7
        %v1881 = vsub.s32 %v1878, %v1880
        %v1882 = vrot.slane %v1853, %v1881
        %v1884 = vunpack.c.l.s4 1983009808
        %v1885 = vunpack.c.0.s8 %v1884
        %v1886 = vlaneseq
        %v1887 = vshrl.u32 %v1886, 7
        %v1888 = vsub.s32 %v1885, %v1887
        %v1889 = vrot.slane %v1875, %v1888
        %v1890 = vcombine.low %v1867, %v1882
        %v1891 = vcombine.high %v1867, %v1882
        %v1893 = vunpack.c.l.s4 1934713408
        %v1894 = vunpack.c.0.s8 %v1893
        %v1895 = vlaneseq
        %v1896 = vshrl.u32 %v1895, 7
        %v1897 = vsub.s32 %v1894, %v1896
        %v1898 = vrot.slane %v1890, %v1897
        %v1900 = vunpack.c.l.s4 1934713408
        %v1901 = vunpack.c.0.s8 %v1900
        %v1902 = vlaneseq
        %v1903 = vshrl.u32 %v1902, 7
        %v1904 = vsub.s32 %v1901, %v1903
        %v1905 = vrot.slane %v1891, %v1904
        %v1906 = vcombine.low %v1874, %v1889
        %v1907 = vcombine.high %v1874, %v1889
        %v1909 = vunpack.c.l.s4 1934713408
        %v1910 = vunpack.c.0.s8 %v1909
        %v1911 = vlaneseq
        %v1912 = vshrl.u32 %v1911, 7
        %v1913 = vsub.s32 %v1910, %v1912
        %v1914 = vrot.slane %v1906, %v1913
        %v1916 = vunpack.c.l.s4 1934713408
        %v1917 = vunpack.c.0.s8 %v1916
        %v1918 = vlaneseq
        %v1919 = vshrl.u32 %v1918, 7
        %v1920 = vsub.s32 %v1917, %v1919
        %v1921 = vrot.slane %v1907, %v1920
        %v1922 = vcombine.high %v1898, 0.0
        %v1923 = vcombine.high %v1905, 0.0
        %v1924 = vcombine.high %v1914, 0.0
        %v1925 = vcombine.high %v1921, 0.0
        %v1926 = vcombine.high %v1851, 0.0
        %v1928 = vunpack.c.l.s4 1983009808
        %v1929 = vunpack.c.0.s8 %v1928
        %v1930 = vlaneseq
        %v1931 = vshrl.u32 %v1930, 7
        %v1932 = vsub.s32 %v1929, %v1931
        %v1933 = vrot.slane %v1851, %v1932
        %v1935 = vunpack.c.l.s4 1983009808
        %v1936 = vunpack.c.0.s8 %v1935
        %v1937 = vlaneseq
        %v1938 = vshrl.u32 %v1937, 7
        %v1939 = vsub.s32 %v1936, %v1938
        %v1940 = vrot.slane %v1926, %v1939
        %v1941 = vcombine.high %v1855, 0.0
        %v1943 = vunpack.c.l.s4 1983009808
        %v1944 = vunpack.c.0.s8 %v1943
        %v1945 = vlaneseq
        %v1946 = vshrl.u32 %v1945, 7
        %v1947 = vsub.s32 %v1944, %v1946
        %v1948 = vrot.slane %v1855, %v1947
        %v1950 = vunpack.c.l.s4 1983009808
        %v1951 = vunpack.c.0.s8 %v1950
        %v1952 = vlaneseq
        %v1953 = vshrl.u32 %v1952, 7
        %v1954 = vsub.s32 %v1951, %v1953
        %v1955 = vrot.slane %v1941, %v1954
        %v1956 = vcombine.low %v1933, %v1948
        %v1957 = vcombine.high %v1933, %v1948
        %v1959 = vunpack.c.l.s4 1934713408
        %v1960 = vunpack.c.0.s8 %v1959
        %v1961 = vlaneseq
        %v1962 = vshrl.u32 %v1961, 7
        %v1963 = vsub.s32 %v1960, %v1962
        %v1964 = vrot.slane %v1956, %v1963
        %v1966 = vunpack.c.l.s4 1934713408
        %v1967 = vunpack.c.0.s8 %v1966
        %v1968 = vlaneseq
        %v1969 = vshrl.u32 %v1968, 7
        %v1970 = vsub.s32 %v1967, %v1969
        %v1971 = vrot.slane %v1957, %v1970
        %v1972 = vcombine.low %v1940, %v1955
        %v1973 = vcombine.high %v1940, %v1955
        %v1975 = vunpack.c.l.s4 1934713408
        %v1976 = vunpack.c.0.s8 %v1975
        %v1977 = vlaneseq
        %v1978 = vshrl.u32 %v1977, 7
        %v1979 = vsub.s32 %v1976, %v1978
        %v1980 = vrot.slane %v1972, %v1979
        %v1982 = vunpack.c.l.s4 1934713408
        %v1983 = vunpack.c.0.s8 %v1982
        %v1984 = vlaneseq
        %v1985 = vshrl.u32 %v1984, 7
        %v1986 = vsub.s32 %v1983, %v1985
        %v1987 = vrot.slane %v1973, %v1986
        %v1988 = vcombine.high %v1964, 0.0
        %v1989 = vcombine.high %v1971, 0.0
        %v1990 = vcombine.high %v1980, 0.0
        %v1991 = vcombine.high %v1987, 0.0
        %v1992 = vcombine.low %v1898, %v1905
        %v1994 = vunpack.c.l.s4 1983009808
        %v1995 = vunpack.c.0.s8 %v1994
        %v1996 = vlaneseq
        %v1997 = vshrl.u32 %v1996, 7
        %v1998 = vsub.s32 %v1995, %v1997
        %v1999 = vrot.slane %v1992, %v1998
        %v2000 = vcombine.low %v1922, %v1923
        %v2002 = vunpack.c.l.s4 1983009808
        %v2003 = vunpack.c.0.s8 %v2002
        %v2004 = vlaneseq
        %v2005 = vshrl.u32 %v2004, 7
        %v2006 = vsub.s32 %v2003, %v2005
        %v2007 = vrot.slane %v2000, %v2006
        %v2008 = vcombine.low %v1914, %v1921
        %v2010 = vunpack.c.l.s4 1983009808
        %v2011 = vunpack.c.0.s8 %v2010
        %v2012 = vlaneseq
        %v2013 = vshrl.u32 %v2012, 7
        %v2014 = vsub.s32 %v2011, %v2013
        %v2015 = vrot.slane %v2008, %v2014
        %v2016 = vcombine.low %v1924, %v1925
        %v2018 = vunpack.c.l.s4 1983009808
        %v2019 = vunpack.c.0.s8 %v2018
        %v2020 = vlaneseq
        %v2021 = vshrl.u32 %v2020, 7
        %v2022 = vsub.s32 %v2019, %v2021
        %v2023 = vrot.slane %v2016, %v2022
        %v2024 = vcombine.low %v1999, %v2007
        %v2026 = vunpack.c.l.s4 1934713408
        %v2027 = vunpack.c.0.s8 %v2026
        %v2028 = vlaneseq
        %v2029 = vshrl.u32 %v2028, 7
        %v2030 = vsub.s32 %v2027, %v2029
        %v2031 = vrot.slane %v2024, %v2030
        %v2032 = vcombine.low %v2015, %v2023
        %v2034 = vunpack.c.l.s4 1934713408
        %v2035 = vunpack.c.0.s8 %v2034
        %v2036 = vlaneseq
        %v2037 = vshrl.u32 %v2036, 7
        %v2038 = vsub.s32 %v2035, %v2037
        %v2039 = vrot.slane %v2032, %v2038
        %v2040 = vcombine.low %v2031, %v2039
        %v2041 = vcombine.high %v2031, %v2039
        %v2042 = vcombine.low %v1964, %v1971
        %v2044 = vunpack.c.l.s4 1983009808
        %v2045 = vunpack.c.0.s8 %v2044
        %v2046 = vlaneseq
        %v2047 = vshrl.u32 %v2046, 7
        %v2048 = vsub.s32 %v2045, %v2047
        %v2049 = vrot.slane %v2042, %v2048
        %v2050 = vcombine.low %v1988, %v1989
        %v2052 = vunpack.c.l.s4 1983009808
        %v2053 = vunpack.c.0.s8 %v2052
        %v2054 = vlaneseq
        %v2055 = vshrl.u32 %v2054, 7
        %v2056 = vsub.s32 %v2053, %v2055
        %v2057 = vrot.slane %v2050, %v2056
        %v2058 = vcombine.low %v1980, %v1987
        %v2060 = vunpack.c.l.s4 1983009808
        %v2061 = vunpack.c.0.s8 %v2060
        %v2062 = vlaneseq
        %v2063 = vshrl.u32 %v2062, 7
        %v2064 = vsub.s32 %v2061, %v2063
        %v2065 = vrot.slane %v2058, %v2064
        %v2066 = vcombine.low %v1990, %v1991
        %v2068 = vunpack.c.l.s4 1983009808
        %v2069 = vunpack.c.0.s8 %v2068
        %v2070 = vlaneseq
        %v2071 = vshrl.u32 %v2070, 7
        %v2072 = vsub.s32 %v2069, %v2071
        %v2073 = vrot.slane %v2066, %v2072
        %v2074 = vcombine.low %v2049, %v2057
        %v2076 = vunpack.c.l.s4 1934713408
        %v2077 = vunpack.c.0.s8 %v2076
        %v2078 = vlaneseq
        %v2079 = vshrl.u32 %v2078, 7
        %v2080 = vsub.s32 %v2077, %v2079
        %v2081 = vrot.slane %v2074, %v2080
        %v2082 = vcombine.low %v2065, %v2073
        %v2084 = vunpack.c.l.s4 1934713408
        %v2085 = vunpack.c.0.s8 %v2084
        %v2086 = vlaneseq
        %v2087 = vshrl.u32 %v2086, 7
        %v2088 = vsub.s32 %v2085, %v2087
        %v2089 = vrot.slane %v2082, %v2088
        %v2090 = vcombine.low %v2081, %v2089
        %v2091 = vcombine.high %v2081, %v2089
        %v2092 = vpack.c.bf16 %v2040, %v2040
        %v2093 = vpack.c.bf16 %v2041, %v2041
        %v2094 = vpack.c.bf16 %v2090, %v2090
        %v2095 = vpack.c.bf16 %v2091, %v2091
        %v2096 = vlaneseq
        %v2097 = vshrl.u32 %v2096, 7
        %v2098 = vlaneseq
        %v2099 = vand.u32 %v2098, 127
        %vm2100 = vcmp.gt.s32.totalorder %v2099, %v2097
        %v2101 = vsel %vm2100, -1e+09, 0.0
        %vm2102 = vcmask 130048
        %v2104 = vsel %vm2102, %v1600, 0
        %v2107 = vsel %vm2102, %v1844, 0
        %2109 = vmatprep.subr.bf16.mxu0 0
        %2110 = vmatpush1.bf16.xpose.msra.mxu0 0
        %2111 = vmatprep.subr.bf16.mxu0 0
        %2112 = vmatpush1.bf16.xpose.msra.mxu0 0
        %2113 = vmatprep.subr.bf16.mxu0 0
        %2114 = vmatpush1.bf16.xpose.msra.mxu0 0
        %2115 = vmatprep.subr.bf16.mxu0 0
        %2116 = vmatpush1.bf16.xpose.msra.mxu0 0
        %2117 = vmatprep.subr.bf16.mxu0 0
        %2118 = vmatpush1.bf16.xpose.msra.mxu0 0
        %2119 = vmatprep.subr.bf16.mxu0 0
        %2120 = vmatpush1.bf16.xpose.msra.mxu0 0
        %2121 = vmatprep.subr.bf16.mxu0 0
        %2122 = vmatpush1.bf16.xpose.msra.mxu0 0
        %2123 = vmatprep.subr.bf16.mxu0 0
        %2124 = vmatpush1.bf16.xpose.msra.mxu0 %v2107
        %2125 = vmatprep.subr.bf16.mxu0 0
        %2126 = vmatpush2.bf16.xpose.msra.mxu0 0
        %2127 = vmatprep.subr.bf16.mxu0 0
        %2128 = vmatpush2.bf16.xpose.msra.mxu0 0
        %2129 = vmatprep.subr.bf16.mxu0 0
        %2130 = vmatpush2.bf16.xpose.msra.mxu0 0
        %2131 = vmatprep.subr.bf16.mxu0 0
        %2132 = vmatpush2.bf16.xpose.msra.mxu0 0
        %2133 = vmatprep.subr.bf16.mxu0 0
        %2134 = vmatpush2.bf16.xpose.msra.mxu0 0
        %2135 = vmatprep.subr.bf16.mxu0 0
        %2136 = vmatpush2.bf16.xpose.msra.mxu0 0
        %2137 = vmatprep.subr.bf16.mxu0 0
        %2138 = vmatpush2.bf16.xpose.msra.mxu0 0
        %2139 = vmatprep.subr.bf16.mxu0 0
        %2140 = vmatpush2.bf16.xpose.msra.mxu0 0
        %2141 = vmatprep.mubr.bf16.mxu0 0
        %2142 = vmatmul.mubr.bf16.gmra.mxu0 %v2104
        %v2143 = vpop.f32.mrf.mxu0
        %v2144 = vadd.f32 %v2101, %v2143
        %v2145 = vpop.f32.mrf.mxu0
        %v2146 = vpop.f32.mrf.mxu0
        %v2147 = vpop.f32.mrf.mxu0
        %2148 = vdwg.mxu0
        %v2150 = vsel %vm2102, %v1601, 0
        %v2153 = vsel %vm2102, %v1845, 0
        %2155 = vmatprep.subr.bf16.mxu0 0
        %2156 = vmatpush1.bf16.xpose.msra.mxu0 0
        %2157 = vmatprep.subr.bf16.mxu0 0
        %2158 = vmatpush1.bf16.xpose.msra.mxu0 0
        %2159 = vmatprep.subr.bf16.mxu0 0
        %2160 = vmatpush1.bf16.xpose.msra.mxu0 0
        %2161 = vmatprep.subr.bf16.mxu0 0
        %2162 = vmatpush1.bf16.xpose.msra.mxu0 0
        %2163 = vmatprep.subr.bf16.mxu0 0
        %2164 = vmatpush1.bf16.xpose.msra.mxu0 0
        %2165 = vmatprep.subr.bf16.mxu0 0
        %2166 = vmatpush1.bf16.xpose.msra.mxu0 0
        %2167 = vmatprep.subr.bf16.mxu0 0
        %2168 = vmatpush1.bf16.xpose.msra.mxu0 0
        %2169 = vmatprep.subr.bf16.mxu0 0
        %2170 = vmatpush1.bf16.xpose.msra.mxu0 %v2153
        %2171 = vmatprep.subr.bf16.mxu0 0
        %2172 = vmatpush2.bf16.xpose.msra.mxu0 0
        %2173 = vmatprep.subr.bf16.mxu0 0
        %2174 = vmatpush2.bf16.xpose.msra.mxu0 0
        %2175 = vmatprep.subr.bf16.mxu0 0
        %2176 = vmatpush2.bf16.xpose.msra.mxu0 0
        %2177 = vmatprep.subr.bf16.mxu0 0
        %2178 = vmatpush2.bf16.xpose.msra.mxu0 0
        %2179 = vmatprep.subr.bf16.mxu0 0
        %2180 = vmatpush2.bf16.xpose.msra.mxu0 0
        %2181 = vmatprep.subr.bf16.mxu0 0
        %2182 = vmatpush2.bf16.xpose.msra.mxu0 0
        %2183 = vmatprep.subr.bf16.mxu0 0
        %2184 = vmatpush2.bf16.xpose.msra.mxu0 0
        %2185 = vmatprep.subr.bf16.mxu0 0
        %2186 = vmatpush2.bf16.xpose.msra.mxu0 0
        %2187 = vmatprep.mubr.bf16.mxu0 0
        %2188 = vmatmul.mubr.bf16.gmra.mxu0 %v2150
        %v2189 = vpop.f32.mrf.mxu0
        %v2190 = vadd.f32 %v2101, %v2189
        %v2191 = vpop.f32.mrf.mxu0
        %v2192 = vpop.f32.mrf.mxu0
        %v2193 = vpop.f32.mrf.mxu0
        %2194 = vdwg.mxu0
        %v2196 = vsel %vm2102, %v1602, 0
        %v2199 = vsel %vm2102, %v1846, 0
        %2201 = vmatprep.subr.bf16.mxu0 0
        %2202 = vmatpush1.bf16.xpose.msra.mxu0 0
        %2203 = vmatprep.subr.bf16.mxu0 0
        %2204 = vmatpush1.bf16.xpose.msra.mxu0 0
        %2205 = vmatprep.subr.bf16.mxu0 0
        %2206 = vmatpush1.bf16.xpose.msra.mxu0 0
        %2207 = vmatprep.subr.bf16.mxu0 0
        %2208 = vmatpush1.bf16.xpose.msra.mxu0 0
        %2209 = vmatprep.subr.bf16.mxu0 0
        %2210 = vmatpush1.bf16.xpose.msra.mxu0 0
        %2211 = vmatprep.subr.bf16.mxu0 0
        %2212 = vmatpush1.bf16.xpose.msra.mxu0 0
        %2213 = vmatprep.subr.bf16.mxu0 0
        %2214 = vmatpush1.bf16.xpose.msra.mxu0 0
        %2215 = vmatprep.subr.bf16.mxu0 0
        %2216 = vmatpush1.bf16.xpose.msra.mxu0 %v2199
        %2217 = vmatprep.subr.bf16.mxu0 0
        %2218 = vmatpush2.bf16.xpose.msra.mxu0 0
        %2219 = vmatprep.subr.bf16.mxu0 0
        %2220 = vmatpush2.bf16.xpose.msra.mxu0 0
        %2221 = vmatprep.subr.bf16.mxu0 0
        %2222 = vmatpush2.bf16.xpose.msra.mxu0 0
        %2223 = vmatprep.subr.bf16.mxu0 0
        %2224 = vmatpush2.bf16.xpose.msra.mxu0 0
        %2225 = vmatprep.subr.bf16.mxu0 0
        %2226 = vmatpush2.bf16.xpose.msra.mxu0 0
        %2227 = vmatprep.subr.bf16.mxu0 0
        %2228 = vmatpush2.bf16.xpose.msra.mxu0 0
        %2229 = vmatprep.subr.bf16.mxu0 0
        %2230 = vmatpush2.bf16.xpose.msra.mxu0 0
        %2231 = vmatprep.subr.bf16.mxu0 0
        %2232 = vmatpush2.bf16.xpose.msra.mxu0 0
        %2233 = vmatprep.mubr.bf16.mxu0 0
        %2234 = vmatmul.mubr.bf16.gmra.mxu0 %v2196
        %v2235 = vpop.f32.mrf.mxu0
        %v2236 = vadd.f32 %v2101, %v2235
        %v2237 = vpop.f32.mrf.mxu0
        %v2238 = vpop.f32.mrf.mxu0
        %v2239 = vpop.f32.mrf.mxu0
        %2240 = vdwg.mxu0
        %v2242 = vsel %vm2102, %v1603, 0
        %v2245 = vsel %vm2102, %v1847, 0
        %2247 = vmatprep.subr.bf16.mxu0 0
        %2248 = vmatpush1.bf16.xpose.msra.mxu0 0
        %2249 = vmatprep.subr.bf16.mxu0 0
        %2250 = vmatpush1.bf16.xpose.msra.mxu0 0
        %2251 = vmatprep.subr.bf16.mxu0 0
        %2252 = vmatpush1.bf16.xpose.msra.mxu0 0
        %2253 = vmatprep.subr.bf16.mxu0 0
        %2254 = vmatpush1.bf16.xpose.msra.mxu0 0
        %2255 = vmatprep.subr.bf16.mxu0 0
        %2256 = vmatpush1.bf16.xpose.msra.mxu0 0
        %2257 = vmatprep.subr.bf16.mxu0 0
        %2258 = vmatpush1.bf16.xpose.msra.mxu0 0
        %2259 = vmatprep.subr.bf16.mxu0 0
        %2260 = vmatpush1.bf16.xpose.msra.mxu0 0
        %2261 = vmatprep.subr.bf16.mxu0 0
        %2262 = vmatpush1.bf16.xpose.msra.mxu0 %v2245
        %2263 = vmatprep.subr.bf16.mxu0 0
        %2264 = vmatpush2.bf16.xpose.msra.mxu0 0
        %2265 = vmatprep.subr.bf16.mxu0 0
        %2266 = vmatpush2.bf16.xpose.msra.mxu0 0
        %2267 = vmatprep.subr.bf16.mxu0 0
        %2268 = vmatpush2.bf16.xpose.msra.mxu0 0
        %2269 = vmatprep.subr.bf16.mxu0 0
        %2270 = vmatpush2.bf16.xpose.msra.mxu0 0
        %2271 = vmatprep.subr.bf16.mxu0 0
        %2272 = vmatpush2.bf16.xpose.msra.mxu0 0
        %2273 = vmatprep.subr.bf16.mxu0 0
        %2274 = vmatpush2.bf16.xpose.msra.mxu0 0
        %2275 = vmatprep.subr.bf16.mxu0 0
        %2276 = vmatpush2.bf16.xpose.msra.mxu0 0
        %2277 = vmatprep.subr.bf16.mxu0 0
        %2278 = vmatpush2.bf16.xpose.msra.mxu0 0
        %2279 = vmatprep.mubr.bf16.mxu0 0
        %2280 = vmatmul.mubr.bf16.gmra.mxu0 %v2242
        %v2281 = vpop.f32.mrf.mxu0
        %v2282 = vadd.f32 %v2101, %v2281
        %v2283 = vpop.f32.mrf.mxu0
        %v2284 = vpop.f32.mrf.mxu0
        %v2285 = vpop.f32.mrf.mxu0
        %2286 = vdwg.mxu0
        %vm2287 = vcmask 64512
        %v2288 = vsel %vm2287, %v2144, -inf
        %2289 = vmax.xlane.f32.xlu0 %v2288
        %v2290 = vpop.xlane.xlu0 %2289
        %v2291 = vsel %vm2287, %v2190, -inf
        %2292 = vmax.xlane.f32.xlu0 %v2291
        %v2293 = vpop.xlane.xlu0 %2292
        %v2294 = vsel %vm2287, %v2236, -inf
        %2295 = vmax.xlane.f32.xlu0 %v2294
        %v2296 = vpop.xlane.xlu0 %2295
        %v2297 = vsel %vm2287, %v2282, -inf
        %2298 = vmax.xlane.f32.xlu0 %v2297
        %v2299 = vpop.xlane.xlu0 %2298
        %v2300 = vsub.f32 %v2144, %v2290
        %v2301 = vsub.f32 %v2190, %v2293
        %v2302 = vsub.f32 %v2236, %v2296
        %v2303 = vsub.f32 %v2282, %v2299
        %v2304 = vmul.f32 %v2300, 1.442695
        %v2305 = vpow.pop %v2304
        %v2306 = vmul.f32 %v2301, 1.442695
        %v2307 = vpow.pop %v2306
        %v2308 = vmul.f32 %v2302, 1.442695
        %v2309 = vpow.pop %v2308
        %v2310 = vmul.f32 %v2303, 1.442695
        %v2311 = vpow.pop %v2310
        %v2312 = vsel %vm2287, %v2305, 0.0
        %2313 = vadd.xlane.f32.xlu0 %v2312
        %v2314 = vpop.xlane.xlu0 %2313
        %v2315 = vsel %vm2287, %v2307, 0.0
        %2316 = vadd.xlane.f32.xlu0 %v2315
        %v2317 = vpop.xlane.xlu0 %2316
        %v2318 = vsel %vm2287, %v2309, 0.0
        %2319 = vadd.xlane.f32.xlu0 %v2318
        %v2320 = vpop.xlane.xlu0 %2319
        %v2321 = vsel %vm2287, %v2311, 0.0
        %2322 = vadd.xlane.f32.xlu0 %v2321
        %v2323 = vpop.xlane.xlu0 %2322
        %v2324 = vrcp.pop %v2314
        %v2325 = vrcp.pop %v2317
        %v2326 = vrcp.pop %v2320
        %v2327 = vrcp.pop %v2323
        %v2328 = vmul.f32 %v2305, %v2324
        %v2329 = vmul.f32 %v2307, %v2325
        %v2330 = vmul.f32 %v2309, %v2326
        %v2331 = vmul.f32 %v2311, %v2327
        %v2332 = vpack.c.bf16 %v2328, %v2328
        %v2333 = vpack.c.bf16 %v2329, %v2329
        %v2334 = vpack.c.bf16 %v2330, %v2330
        %v2335 = vpack.c.bf16 %v2331, %v2331
        %v2337 = vsel %vm2287, %v2332, 0
        %vm2339 = vcmask 1043456
        %v2341 = vsel %vm2339, %v2092, 0
        %2343 = vmatprep.subr.bf16.mxu0 0
        %2344 = vmatpush1.bf16.msra.mxu0 0
        %2345 = vmatprep.subr.bf16.mxu0 0
        %2346 = vmatpush1.bf16.msra.mxu0 0
        %2347 = vmatprep.subr.bf16.mxu0 0
        %2348 = vmatpush1.bf16.msra.mxu0 0
        %2349 = vmatprep.subr.bf16.mxu0 0
        %2350 = vmatpush1.bf16.msra.mxu0 0
        %2351 = vmatprep.subr.bf16.mxu0 0
        %2352 = vmatpush1.bf16.msra.mxu0 0
        %2353 = vmatprep.subr.bf16.mxu0 0
        %2354 = vmatpush1.bf16.msra.mxu0 0
        %2355 = vmatprep.subr.bf16.mxu0 0
        %2356 = vmatpush1.bf16.msra.mxu0 0
        %2357 = vmatprep.subr.bf16.mxu0 0
        %2358 = vmatpush1.bf16.msra.mxu0 %v2341
        %2359 = vmatprep.subr.bf16.mxu0 0
        %2360 = vmatpush2.bf16.msra.mxu0 0
        %2361 = vmatprep.subr.bf16.mxu0 0
        %2362 = vmatpush2.bf16.msra.mxu0 0
        %2363 = vmatprep.subr.bf16.mxu0 0
        %2364 = vmatpush2.bf16.msra.mxu0 0
        %2365 = vmatprep.subr.bf16.mxu0 0
        %2366 = vmatpush2.bf16.msra.mxu0 0
        %2367 = vmatprep.subr.bf16.mxu0 0
        %2368 = vmatpush2.bf16.msra.mxu0 0
        %2369 = vmatprep.subr.bf16.mxu0 0
        %2370 = vmatpush2.bf16.msra.mxu0 0
        %2371 = vmatprep.subr.bf16.mxu0 0
        %2372 = vmatpush2.bf16.msra.mxu0 0
        %2373 = vmatprep.subr.bf16.mxu0 0
        %2374 = vmatpush2.bf16.msra.mxu0 0
        %2375 = vmatprep.mubr.bf16.mxu0 0
        %2376 = vmatmul.mubr.bf16.gmra.mxu0 %v2337
        %v2377 = vpop.f32.mrf.mxu0
        %v2378 = vadd.f32 0.0, %v2377
        %v2379 = vpop.f32.mrf.mxu0
        %v2380 = vpop.f32.mrf.mxu0
        %v2381 = vpop.f32.mrf.mxu0
        %2382 = vdwg.mxu0
        %v2384 = vsel %vm2287, %v2333, 0
        %v2387 = vsel %vm2339, %v2093, 0
        %2389 = vmatprep.subr.bf16.mxu0 0
        %2390 = vmatpush1.bf16.msra.mxu0 0
        %2391 = vmatprep.subr.bf16.mxu0 0
        %2392 = vmatpush1.bf16.msra.mxu0 0
        %2393 = vmatprep.subr.bf16.mxu0 0
        %2394 = vmatpush1.bf16.msra.mxu0 0
        %2395 = vmatprep.subr.bf16.mxu0 0
        %2396 = vmatpush1.bf16.msra.mxu0 0
        %2397 = vmatprep.subr.bf16.mxu0 0
        %2398 = vmatpush1.bf16.msra.mxu0 0
        %2399 = vmatprep.subr.bf16.mxu0 0
        %2400 = vmatpush1.bf16.msra.mxu0 0
        %2401 = vmatprep.subr.bf16.mxu0 0
        %2402 = vmatpush1.bf16.msra.mxu0 0
        %2403 = vmatprep.subr.bf16.mxu0 0
        %2404 = vmatpush1.bf16.msra.mxu0 %v2387
        %2405 = vmatprep.subr.bf16.mxu0 0
        %2406 = vmatpush2.bf16.msra.mxu0 0
        %2407 = vmatprep.subr.bf16.mxu0 0
        %2408 = vmatpush2.bf16.msra.mxu0 0
        %2409 = vmatprep.subr.bf16.mxu0 0
        %2410 = vmatpush2.bf16.msra.mxu0 0
        %2411 = vmatprep.subr.bf16.mxu0 0
        %2412 = vmatpush2.bf16.msra.mxu0 0
        %2413 = vmatprep.subr.bf16.mxu0 0
        %2414 = vmatpush2.bf16.msra.mxu0 0
        %2415 = vmatprep.subr.bf16.mxu0 0
        %2416 = vmatpush2.bf16.msra.mxu0 0
        %2417 = vmatprep.subr.bf16.mxu0 0
        %2418 = vmatpush2.bf16.msra.mxu0 0
        %2419 = vmatprep.subr.bf16.mxu0 0
        %2420 = vmatpush2.bf16.msra.mxu0 0
        %2421 = vmatprep.mubr.bf16.mxu0 0
        %2422 = vmatmul.mubr.bf16.gmra.mxu0 %v2384
        %v2423 = vpop.f32.mrf.mxu0
        %v2424 = vadd.f32 0.0, %v2423
        %v2425 = vpop.f32.mrf.mxu0
        %v2426 = vpop.f32.mrf.mxu0
        %v2427 = vpop.f32.mrf.mxu0
        %2428 = vdwg.mxu0
        %v2430 = vsel %vm2287, %v2334, 0
        %v2433 = vsel %vm2339, %v2094, 0
        %2435 = vmatprep.subr.bf16.mxu0 0
        %2436 = vmatpush1.bf16.msra.mxu0 0
        %2437 = vmatprep.subr.bf16.mxu0 0
        %2438 = vmatpush1.bf16.msra.mxu0 0
        %2439 = vmatprep.subr.bf16.mxu0 0
        %2440 = vmatpush1.bf16.msra.mxu0 0
        %2441 = vmatprep.subr.bf16.mxu0 0
        %2442 = vmatpush1.bf16.msra.mxu0 0
        %2443 = vmatprep.subr.bf16.mxu0 0
        %2444 = vmatpush1.bf16.msra.mxu0 0
        %2445 = vmatprep.subr.bf16.mxu0 0
        %2446 = vmatpush1.bf16.msra.mxu0 0
        %2447 = vmatprep.subr.bf16.mxu0 0
        %2448 = vmatpush1.bf16.msra.mxu0 0
        %2449 = vmatprep.subr.bf16.mxu0 0
        %2450 = vmatpush1.bf16.msra.mxu0 %v2433
        %2451 = vmatprep.subr.bf16.mxu0 0
        %2452 = vmatpush2.bf16.msra.mxu0 0
        %2453 = vmatprep.subr.bf16.mxu0 0
        %2454 = vmatpush2.bf16.msra.mxu0 0
        %2455 = vmatprep.subr.bf16.mxu0 0
        %2456 = vmatpush2.bf16.msra.mxu0 0
        %2457 = vmatprep.subr.bf16.mxu0 0
        %2458 = vmatpush2.bf16.msra.mxu0 0
        %2459 = vmatprep.subr.bf16.mxu0 0
        %2460 = vmatpush2.bf16.msra.mxu0 0
        %2461 = vmatprep.subr.bf16.mxu0 0
        %2462 = vmatpush2.bf16.msra.mxu0 0
        %2463 = vmatprep.subr.bf16.mxu0 0
        %2464 = vmatpush2.bf16.msra.mxu0 0
        %2465 = vmatprep.subr.bf16.mxu0 0
        %2466 = vmatpush2.bf16.msra.mxu0 0
        %2467 = vmatprep.mubr.bf16.mxu0 0
        %2468 = vmatmul.mubr.bf16.gmra.mxu0 %v2430
        %v2469 = vpop.f32.mrf.mxu0
        %v2470 = vadd.f32 0.0, %v2469
        %v2471 = vpop.f32.mrf.mxu0
        %v2472 = vpop.f32.mrf.mxu0
        %v2473 = vpop.f32.mrf.mxu0
        %2474 = vdwg.mxu0
        %v2476 = vsel %vm2287, %v2335, 0
        %v2479 = vsel %vm2339, %v2095, 0
        %2481 = vmatprep.subr.bf16.mxu0 0
        %2482 = vmatpush1.bf16.msra.mxu0 0
        %2483 = vmatprep.subr.bf16.mxu0 0
        %2484 = vmatpush1.bf16.msra.mxu0 0
        %2485 = vmatprep.subr.bf16.mxu0 0
        %2486 = vmatpush1.bf16.msra.mxu0 0
        %2487 = vmatprep.subr.bf16.mxu0 0
        %2488 = vmatpush1.bf16.msra.mxu0 0
        %2489 = vmatprep.subr.bf16.mxu0 0
        %2490 = vmatpush1.bf16.msra.mxu0 0
        %2491 = vmatprep.subr.bf16.mxu0 0
        %2492 = vmatpush1.bf16.msra.mxu0 0
        %2493 = vmatprep.subr.bf16.mxu0 0
        %2494 = vmatpush1.bf16.msra.mxu0 0
        %2495 = vmatprep.subr.bf16.mxu0 0
        %2496 = vmatpush1.bf16.msra.mxu0 %v2479
        %2497 = vmatprep.subr.bf16.mxu0 0
        %2498 = vmatpush2.bf16.msra.mxu0 0
        %2499 = vmatprep.subr.bf16.mxu0 0
        %2500 = vmatpush2.bf16.msra.mxu0 0
        %2501 = vmatprep.subr.bf16.mxu0 0
        %2502 = vmatpush2.bf16.msra.mxu0 0
        %2503 = vmatprep.subr.bf16.mxu0 0
        %2504 = vmatpush2.bf16.msra.mxu0 0
        %2505 = vmatprep.subr.bf16.mxu0 0
        %2506 = vmatpush2.bf16.msra.mxu0 0
        %2507 = vmatprep.subr.bf16.mxu0 0
        %2508 = vmatpush2.bf16.msra.mxu0 0
        %2509 = vmatprep.subr.bf16.mxu0 0
        %2510 = vmatpush2.bf16.msra.mxu0 0
        %2511 = vmatprep.subr.bf16.mxu0 0
        %2512 = vmatpush2.bf16.msra.mxu0 0
        %2513 = vmatprep.mubr.bf16.mxu0 0
        %2514 = vmatmul.mubr.bf16.gmra.mxu0 %v2476
        %v2515 = vpop.f32.mrf.mxu0
        %v2516 = vadd.f32 0.0, %v2515
        %v2517 = vpop.f32.mrf.mxu0
        %v2518 = vpop.f32.mrf.mxu0
        %v2519 = vpop.f32.mrf.mxu0
        %2520 = vdwg.mxu0
        %v2521 = vcombine.high %v2378, 0.0
        %v2523 = vunpack.c.l.s4 1983009808
        %v2524 = vunpack.c.0.s8 %v2523
        %v2525 = vlaneseq
        %v2526 = vshrl.u32 %v2525, 7
        %v2527 = vsub.s32 %v2524, %v2526
        %v2528 = vrot.slane %v2378, %v2527
        %v2530 = vunpack.c.l.s4 1983009808
        %v2531 = vunpack.c.0.s8 %v2530
        %v2532 = vlaneseq
        %v2533 = vshrl.u32 %v2532, 7
        %v2534 = vsub.s32 %v2531, %v2533
        %v2535 = vrot.slane %v2521, %v2534
        %v2536 = vcombine.high %v2424, 0.0
        %v2538 = vunpack.c.l.s4 1983009808
        %v2539 = vunpack.c.0.s8 %v2538
        %v2540 = vlaneseq
        %v2541 = vshrl.u32 %v2540, 7
        %v2542 = vsub.s32 %v2539, %v2541
        %v2543 = vrot.slane %v2424, %v2542
        %v2545 = vunpack.c.l.s4 1983009808
        %v2546 = vunpack.c.0.s8 %v2545
        %v2547 = vlaneseq
        %v2548 = vshrl.u32 %v2547, 7
        %v2549 = vsub.s32 %v2546, %v2548
        %v2550 = vrot.slane %v2536, %v2549
        %v2551 = vcombine.low %v2528, %v2543
        %v2552 = vcombine.high %v2528, %v2543
        %v2554 = vunpack.c.l.s4 1934713408
        %v2555 = vunpack.c.0.s8 %v2554
        %v2556 = vlaneseq
        %v2557 = vshrl.u32 %v2556, 7
        %v2558 = vsub.s32 %v2555, %v2557
        %v2559 = vrot.slane %v2551, %v2558
        %v2561 = vunpack.c.l.s4 1934713408
        %v2562 = vunpack.c.0.s8 %v2561
        %v2563 = vlaneseq
        %v2564 = vshrl.u32 %v2563, 7
        %v2565 = vsub.s32 %v2562, %v2564
        %v2566 = vrot.slane %v2552, %v2565
        %v2567 = vcombine.low %v2535, %v2550
        %v2568 = vcombine.high %v2535, %v2550
        %v2570 = vunpack.c.l.s4 1934713408
        %v2571 = vunpack.c.0.s8 %v2570
        %v2572 = vlaneseq
        %v2573 = vshrl.u32 %v2572, 7
        %v2574 = vsub.s32 %v2571, %v2573
        %v2575 = vrot.slane %v2567, %v2574
        %v2577 = vunpack.c.l.s4 1934713408
        %v2578 = vunpack.c.0.s8 %v2577
        %v2579 = vlaneseq
        %v2580 = vshrl.u32 %v2579, 7
        %v2581 = vsub.s32 %v2578, %v2580
        %v2582 = vrot.slane %v2568, %v2581
        %v2583 = vcombine.high %v2559, 0.0
        %v2584 = vcombine.high %v2566, 0.0
        %v2585 = vcombine.high %v2575, 0.0
        %v2586 = vcombine.high %v2582, 0.0
        %v2587 = vcombine.high %v2470, 0.0
        %v2589 = vunpack.c.l.s4 1983009808
        %v2590 = vunpack.c.0.s8 %v2589
        %v2591 = vlaneseq
        %v2592 = vshrl.u32 %v2591, 7
        %v2593 = vsub.s32 %v2590, %v2592
        %v2594 = vrot.slane %v2470, %v2593
        %v2596 = vunpack.c.l.s4 1983009808
        %v2597 = vunpack.c.0.s8 %v2596
        %v2598 = vlaneseq
        %v2599 = vshrl.u32 %v2598, 7
        %v2600 = vsub.s32 %v2597, %v2599
        %v2601 = vrot.slane %v2587, %v2600
        %v2602 = vcombine.high %v2516, 0.0
        %v2604 = vunpack.c.l.s4 1983009808
        %v2605 = vunpack.c.0.s8 %v2604
        %v2606 = vlaneseq
        %v2607 = vshrl.u32 %v2606, 7
        %v2608 = vsub.s32 %v2605, %v2607
        %v2609 = vrot.slane %v2516, %v2608
        %v2611 = vunpack.c.l.s4 1983009808
        %v2612 = vunpack.c.0.s8 %v2611
        %v2613 = vlaneseq
        %v2614 = vshrl.u32 %v2613, 7
        %v2615 = vsub.s32 %v2612, %v2614
        %v2616 = vrot.slane %v2602, %v2615
        %v2617 = vcombine.low %v2594, %v2609
        %v2618 = vcombine.high %v2594, %v2609
        %v2620 = vunpack.c.l.s4 1934713408
        %v2621 = vunpack.c.0.s8 %v2620
        %v2622 = vlaneseq
        %v2623 = vshrl.u32 %v2622, 7
        %v2624 = vsub.s32 %v2621, %v2623
        %v2625 = vrot.slane %v2617, %v2624
        %v2627 = vunpack.c.l.s4 1934713408
        %v2628 = vunpack.c.0.s8 %v2627
        %v2629 = vlaneseq
        %v2630 = vshrl.u32 %v2629, 7
        %v2631 = vsub.s32 %v2628, %v2630
        %v2632 = vrot.slane %v2618, %v2631
        %v2633 = vcombine.low %v2601, %v2616
        %v2634 = vcombine.high %v2601, %v2616
        %v2636 = vunpack.c.l.s4 1934713408
        %v2637 = vunpack.c.0.s8 %v2636
        %v2638 = vlaneseq
        %v2639 = vshrl.u32 %v2638, 7
        %v2640 = vsub.s32 %v2637, %v2639
        %v2641 = vrot.slane %v2633, %v2640
        %v2643 = vunpack.c.l.s4 1934713408
        %v2644 = vunpack.c.0.s8 %v2643
        %v2645 = vlaneseq
        %v2646 = vshrl.u32 %v2645, 7
        %v2647 = vsub.s32 %v2644, %v2646
        %v2648 = vrot.slane %v2634, %v2647
        %v2649 = vcombine.high %v2625, 0.0
        %v2650 = vcombine.high %v2632, 0.0
        %v2651 = vcombine.high %v2641, 0.0
        %v2652 = vcombine.high %v2648, 0.0
        %v2653 = vcombine.low %v2559, %v2566
        %v2655 = vunpack.c.l.s4 1983009808
        %v2656 = vunpack.c.0.s8 %v2655
        %v2657 = vlaneseq
        %v2658 = vshrl.u32 %v2657, 7
        %v2659 = vsub.s32 %v2656, %v2658
        %v2660 = vrot.slane %v2653, %v2659
        %v2661 = vcombine.low %v2583, %v2584
        %v2663 = vunpack.c.l.s4 1983009808
        %v2664 = vunpack.c.0.s8 %v2663
        %v2665 = vlaneseq
        %v2666 = vshrl.u32 %v2665, 7
        %v2667 = vsub.s32 %v2664, %v2666
        %v2668 = vrot.slane %v2661, %v2667
        %v2669 = vcombine.low %v2575, %v2582
        %v2671 = vunpack.c.l.s4 1983009808
        %v2672 = vunpack.c.0.s8 %v2671
        %v2673 = vlaneseq
        %v2674 = vshrl.u32 %v2673, 7
        %v2675 = vsub.s32 %v2672, %v2674
        %v2676 = vrot.slane %v2669, %v2675
        %v2677 = vcombine.low %v2585, %v2586
        %v2679 = vunpack.c.l.s4 1983009808
        %v2680 = vunpack.c.0.s8 %v2679
        %v2681 = vlaneseq
        %v2682 = vshrl.u32 %v2681, 7
        %v2683 = vsub.s32 %v2680, %v2682
        %v2684 = vrot.slane %v2677, %v2683
        %v2685 = vcombine.low %v2660, %v2668
        %v2687 = vunpack.c.l.s4 1934713408
        %v2688 = vunpack.c.0.s8 %v2687
        %v2689 = vlaneseq
        %v2690 = vshrl.u32 %v2689, 7
        %v2691 = vsub.s32 %v2688, %v2690
        %v2692 = vrot.slane %v2685, %v2691
        %v2693 = vcombine.low %v2676, %v2684
        %v2695 = vunpack.c.l.s4 1934713408
        %v2696 = vunpack.c.0.s8 %v2695
        %v2697 = vlaneseq
        %v2698 = vshrl.u32 %v2697, 7
        %v2699 = vsub.s32 %v2696, %v2698
        %v2700 = vrot.slane %v2693, %v2699
        %v2701 = vcombine.low %v2692, %v2700
        %v2702 = vcombine.high %v2692, %v2700
        %v2703 = vcombine.low %v2625, %v2632
        %v2705 = vunpack.c.l.s4 1983009808
        %v2706 = vunpack.c.0.s8 %v2705
        %v2707 = vlaneseq
        %v2708 = vshrl.u32 %v2707, 7
        %v2709 = vsub.s32 %v2706, %v2708
        %v2710 = vrot.slane %v2703, %v2709
        %v2711 = vcombine.low %v2649, %v2650
        %v2713 = vunpack.c.l.s4 1983009808
        %v2714 = vunpack.c.0.s8 %v2713
        %v2715 = vlaneseq
        %v2716 = vshrl.u32 %v2715, 7
        %v2717 = vsub.s32 %v2714, %v2716
        %v2718 = vrot.slane %v2711, %v2717
        %v2719 = vcombine.low %v2641, %v2648
        %v2721 = vunpack.c.l.s4 1983009808
        %v2722 = vunpack.c.0.s8 %v2721
        %v2723 = vlaneseq
        %v2724 = vshrl.u32 %v2723, 7
        %v2725 = vsub.s32 %v2722, %v2724
        %v2726 = vrot.slane %v2719, %v2725
        %v2727 = vcombine.low %v2651, %v2652
        %v2729 = vunpack.c.l.s4 1983009808
        %v2730 = vunpack.c.0.s8 %v2729
        %v2731 = vlaneseq
        %v2732 = vshrl.u32 %v2731, 7
        %v2733 = vsub.s32 %v2730, %v2732
        %v2734 = vrot.slane %v2727, %v2733
        %v2735 = vcombine.low %v2710, %v2718
        %v2737 = vunpack.c.l.s4 1934713408
        %v2738 = vunpack.c.0.s8 %v2737
        %v2739 = vlaneseq
        %v2740 = vshrl.u32 %v2739, 7
        %v2741 = vsub.s32 %v2738, %v2740
        %v2742 = vrot.slane %v2735, %v2741
        %v2743 = vcombine.low %v2726, %v2734
        %v2745 = vunpack.c.l.s4 1934713408
        %v2746 = vunpack.c.0.s8 %v2745
        %v2747 = vlaneseq
        %v2748 = vshrl.u32 %v2747, 7
        %v2749 = vsub.s32 %v2746, %v2748
        %v2750 = vrot.slane %v2743, %v2749
        %v2751 = vcombine.low %v2742, %v2750
        %v2752 = vcombine.high %v2742, %v2750
        %2755 = vrot.lane.b32.xlu0 %v2702, 16
        %v2756 = vpop.permute.xlu0 %2755
        %2757 = vrot.lane.b32.xlu0 %v2752, 16
        %v2758 = vpop.permute.xlu0 %2757
        %v2761 = vsel %vm2102, %v2701, %v2756
        %v2762 = vsel %vm2102, %v2751, %v2758
        %v2763 = vpack.c.bf16 %v2762, %v2761
        %v2764 = vld [vmem:[%s969] sm:$0xf]
        %v2765 = vld [vmem:[%s969 + $0x4] sm:$0xf]
        %v2766 = vld [vmem:[%s969 + $0x8] sm:$0xf]
        %v2767 = vld [vmem:[%s969 + $0xc] sm:$0xf]
        %v2768 = vld [vmem:[%s977] sm:$0x1]
        %v2770 = vlaneseq
        %v2771 = vshrl.u32 %v2770, 7
        %v2772 = vsub.s32 0, %v2771
        %v2773 = vrot.slane %v2768, %v2772
        %v2779 = vunpack.c.l.b16 %v2764
        %v2780 = vunpack.c.l.b16 %v2765
        %v2781 = vunpack.c.l.b16 %v2766
        %v2782 = vunpack.c.l.b16 %v2767
        %v2783 = vpack.c.b16 %v2780, %v2779
        %v2784 = vpack.c.b16 %v2782, %v2781
        %v2788 = vsel %vm1178, %v2763, 0
        %2790 = vmatprep.subr.bf16.mxu0 0
        %2791 = vmatpush1.bf16.msra.mxu0 0
        %2792 = vmatprep.subr.bf16.mxu0 0
        %2793 = vmatpush1.bf16.msra.mxu0 0
        %2794 = vmatprep.subr.bf16.mxu0 0
        %2795 = vmatpush1.bf16.msra.mxu0 0
        %2796 = vmatprep.subr.bf16.mxu0 0
        %2797 = vmatpush1.bf16.msra.mxu0 0
        %2798 = vmatprep.subr.bf16.mxu0 0
        %2799 = vmatpush1.bf16.msra.mxu0 0
        %2800 = vmatprep.subr.bf16.mxu0 0
        %2801 = vmatpush1.bf16.msra.mxu0 0
        %2802 = vmatprep.subr.bf16.mxu0 0
        %2803 = vmatpush1.bf16.msra.mxu0 %v2784
        %2804 = vmatprep.subr.bf16.mxu0 0
        %2805 = vmatpush1.bf16.msra.mxu0 %v2783
        %2806 = vmatprep.subr.bf16.mxu0 0
        %2807 = vmatpush2.bf16.msra.mxu0 0
        %2808 = vmatprep.subr.bf16.mxu0 0
        %2809 = vmatpush2.bf16.msra.mxu0 0
        %2810 = vmatprep.subr.bf16.mxu0 0
        %2811 = vmatpush2.bf16.msra.mxu0 0
        %2812 = vmatprep.subr.bf16.mxu0 0
        %2813 = vmatpush2.bf16.msra.mxu0 0
        %2814 = vmatprep.subr.bf16.mxu0 0
        %2815 = vmatpush2.bf16.msra.mxu0 0
        %2816 = vmatprep.subr.bf16.mxu0 0
        %2817 = vmatpush2.bf16.msra.mxu0 0
        %2818 = vmatprep.subr.bf16.mxu0 0
        %2819 = vmatpush2.bf16.msra.mxu0 0
        %2820 = vmatprep.subr.bf16.mxu0 0
        %2821 = vmatpush2.bf16.msra.mxu0 0
        %2822 = vmatprep.mubr.bf16.mxu0 0
        %2823 = vmatmul.mubr.bf16.gmra.mxu0 %v2788
        %v2824 = vpop.f32.mrf.mxu0
        %v2825 = vadd.f32 %v2773, %v2824
        %v2826 = vpop.f32.mrf.mxu0
        %v2827 = vpop.f32.mrf.mxu0
        %v2828 = vadd.f32 %v2773, %v2827
        %v2829 = vpop.f32.mrf.mxu0
        %2830 = vdwg.mxu0
        %v2831 = vadd.f32 %v1220, %v2825
        %v2832 = vadd.f32 %v1221, %v2828
        %v2833 = vld [vmem:[%s985] sm:$0x1]
        %v2834 = vld [vmem:[%s993] sm:$0x1]
        %v2835 = vsel %vm1178, %v2831, 0.0
        %2836 = vadd.xlane.f32.xlu0 %v2835
        %v2837 = vpop.xlane.xlu0 %2836
        %v2838 = vsel %vm1178, %v2832, 0.0
        %2839 = vadd.xlane.f32.xlu0 %v2838
        %v2840 = vpop.xlane.xlu0 %2839
        %v2841 = vmul.f32 %v2837, %v1185
        %v2842 = vmul.f32 %v2840, %v1185
        %v2843 = vsub.f32 %v2831, %v2841
        %v2844 = vsub.f32 %v2832, %v2842
        %v2845 = vmul.f32 %v2843, %v2843
        %v2846 = vmul.f32 %v2844, %v2844
        %v2847 = vsel %vm1178, %v2845, 0.0
        %2848 = vadd.xlane.f32.xlu0 %v2847
        %v2849 = vpop.xlane.xlu0 %2848
        %v2850 = vsel %vm1178, %v2846, 0.0
        %2851 = vadd.xlane.f32.xlu0 %v2850
        %v2852 = vpop.xlane.xlu0 %2851
        %v2853 = vmul.f32 %v2849, %v1185
        %v2854 = vmul.f32 %v2852, %v1185
        %v2855 = vadd.f32 %v2853, 1e-08
        %v2856 = vadd.f32 %v2854, 1e-08
        %v2857 = vrsqrt.pop %v2855
        %v2858 = vrsqrt.pop %v2856
        %v2859 = vmul.f32 %v2843, %v2857
        %v2860 = vmul.f32 %v2844, %v2858
        %v2862 = vlaneseq
        %v2863 = vshrl.u32 %v2862, 7
        %v2864 = vsub.s32 0, %v2863
        %v2865 = vrot.slane %v2833, %v2864
        %v2867 = vmul.f32 %v2859, %v2865
        %v2868 = vmul.f32 %v2860, %v2865
        %v2870 = vlaneseq
        %v2871 = vshrl.u32 %v2870, 7
        %v2872 = vsub.s32 0, %v2871
        %v2873 = vrot.slane %v2834, %v2872
        %v2875 = vadd.f32 %v2867, %v2873
        %v2876 = vadd.f32 %v2868, %v2873
        %v2877 = vpack.c.bf16 %v2876, %v2875
        %v2878 = vld [vmem:[%s1002] sm:$0xf]
        %v2879 = vld [vmem:[%s1002 + $0x4] sm:$0xf]
        %v2880 = vld [vmem:[%s1002 + $0x8] sm:$0xf]
        %v2881 = vld [vmem:[%s1002 + $0xc] sm:$0xf]
        %v2882 = vld [vmem:[%s1010] sm:$0x1]
        %v2884 = vlaneseq
        %v2885 = vshrl.u32 %v2884, 7
        %v2886 = vsub.s32 0, %v2885
        %v2887 = vrot.slane %v2882, %v2886
        %v2893 = vunpack.c.l.b16 %v2878
        %v2894 = vunpack.c.l.b16 %v2879
        %v2895 = vunpack.c.l.b16 %v2880
        %v2896 = vunpack.c.l.b16 %v2881
        %v2897 = vpack.c.b16 %v2894, %v2893
        %v2898 = vpack.c.b16 %v2896, %v2895
        %v2902 = vsel %vm1178, %v2877, 0
        %2904 = vmatprep.subr.bf16.mxu0 0
        %2905 = vmatpush1.bf16.msra.mxu0 0
        %2906 = vmatprep.subr.bf16.mxu0 0
        %2907 = vmatpush1.bf16.msra.mxu0 0
        %2908 = vmatprep.subr.bf16.mxu0 0
        %2909 = vmatpush1.bf16.msra.mxu0 0
        %2910 = vmatprep.subr.bf16.mxu0 0
        %2911 = vmatpush1.bf16.msra.mxu0 0
        %2912 = vmatprep.subr.bf16.mxu0 0
        %2913 = vmatpush1.bf16.msra.mxu0 0
        %2914 = vmatprep.subr.bf16.mxu0 0
        %2915 = vmatpush1.bf16.msra.mxu0 0
        %2916 = vmatprep.subr.bf16.mxu0 0
        %2917 = vmatpush1.bf16.msra.mxu0 %v2898
        %2918 = vmatprep.subr.bf16.mxu0 0
        %2919 = vmatpush1.bf16.msra.mxu0 %v2897
        %2920 = vmatprep.subr.bf16.mxu0 0
        %2921 = vmatpush2.bf16.msra.mxu0 0
        %2922 = vmatprep.subr.bf16.mxu0 0
        %2923 = vmatpush2.bf16.msra.mxu0 0
        %2924 = vmatprep.subr.bf16.mxu0 0
        %2925 = vmatpush2.bf16.msra.mxu0 0
        %2926 = vmatprep.subr.bf16.mxu0 0
        %2927 = vmatpush2.bf16.msra.mxu0 0
        %2928 = vmatprep.subr.bf16.mxu0 0
        %2929 = vmatpush2.bf16.msra.mxu0 0
        %2930 = vmatprep.subr.bf16.mxu0 0
        %2931 = vmatpush2.bf16.msra.mxu0 0
        %2932 = vmatprep.subr.bf16.mxu0 0
        %2933 = vmatpush2.bf16.msra.mxu0 0
        %2934 = vmatprep.subr.bf16.mxu0 0
        %2935 = vmatpush2.bf16.msra.mxu0 0
        %2936 = vmatprep.mubr.bf16.mxu0 0
        %2937 = vmatmul.mubr.bf16.gmra.mxu0 %v2902
        %v2938 = vpop.f32.mrf.mxu0
        %v2939 = vadd.f32 %v2887, %v2938
        %v2940 = vpop.f32.mrf.mxu0
        %v2941 = vpop.f32.mrf.mxu0
        %v2942 = vadd.f32 %v2887, %v2941
        %v2943 = vpop.f32.mrf.mxu0
        %2944 = vdwg.mxu0
        %v2945 = vmax.f32 %v2939, 0.0
        %v2946 = vmax.f32 %v2942, 0.0
        %v2947 = vpack.c.bf16 %v2946, %v2945
        %v2948 = vld [vmem:[%s1019] sm:$0xf]
        %v2949 = vld [vmem:[%s1019 + $0x4] sm:$0xf]
        %v2950 = vld [vmem:[%s1019 + $0x8] sm:$0xf]
        %v2951 = vld [vmem:[%s1019 + $0xc] sm:$0xf]
        %v2952 = vld [vmem:[%s1027] sm:$0x1]
        %v2954 = vlaneseq
        %v2955 = vshrl.u32 %v2954, 7
        %v2956 = vsub.s32 0, %v2955
        %v2957 = vrot.slane %v2952, %v2956
        %v2963 = vunpack.c.l.b16 %v2948
        %v2964 = vunpack.c.l.b16 %v2949
        %v2965 = vunpack.c.l.b16 %v2950
        %v2966 = vunpack.c.l.b16 %v2951
        %v2967 = vpack.c.b16 %v2964, %v2963
        %v2968 = vpack.c.b16 %v2966, %v2965
        %v2972 = vsel %vm1178, %v2947, 0
        %2974 = vmatprep.subr.bf16.mxu0 0
        %2975 = vmatpush1.bf16.msra.mxu0 0
        %2976 = vmatprep.subr.bf16.mxu0 0
        %2977 = vmatpush1.bf16.msra.mxu0 0
        %2978 = vmatprep.subr.bf16.mxu0 0
        %2979 = vmatpush1.bf16.msra.mxu0 0
        %2980 = vmatprep.subr.bf16.mxu0 0
        %2981 = vmatpush1.bf16.msra.mxu0 0
        %2982 = vmatprep.subr.bf16.mxu0 0
        %2983 = vmatpush1.bf16.msra.mxu0 0
        %2984 = vmatprep.subr.bf16.mxu0 0
        %2985 = vmatpush1.bf16.msra.mxu0 0
        %2986 = vmatprep.subr.bf16.mxu0 0
        %2987 = vmatpush1.bf16.msra.mxu0 %v2968
        %2988 = vmatprep.subr.bf16.mxu0 0
        %2989 = vmatpush1.bf16.msra.mxu0 %v2967
        %2990 = vmatprep.subr.bf16.mxu0 0
        %2991 = vmatpush2.bf16.msra.mxu0 0
        %2992 = vmatprep.subr.bf16.mxu0 0
        %2993 = vmatpush2.bf16.msra.mxu0 0
        %2994 = vmatprep.subr.bf16.mxu0 0
        %2995 = vmatpush2.bf16.msra.mxu0 0
        %2996 = vmatprep.subr.bf16.mxu0 0
        %2997 = vmatpush2.bf16.msra.mxu0 0
        %2998 = vmatprep.subr.bf16.mxu0 0
        %2999 = vmatpush2.bf16.msra.mxu0 0
        %3000 = vmatprep.subr.bf16.mxu0 0
        %3001 = vmatpush2.bf16.msra.mxu0 0
        %3002 = vmatprep.subr.bf16.mxu0 0
        %3003 = vmatpush2.bf16.msra.mxu0 0
        %3004 = vmatprep.subr.bf16.mxu0 0
        %3005 = vmatpush2.bf16.msra.mxu0 0
        %3006 = vmatprep.mubr.bf16.mxu0 0
        %3007 = vmatmul.mubr.bf16.gmra.mxu0 %v2972
        %v3008 = vpop.f32.mrf.mxu0
        %v3009 = vadd.f32 %v2957, %v3008
        %v3010 = vpop.f32.mrf.mxu0
        %v3011 = vpop.f32.mrf.mxu0
        %v3012 = vadd.f32 %v2957, %v3011
        %v3013 = vpop.f32.mrf.mxu0
        %3014 = vdwg.mxu0
        %v3015 = vadd.f32 %v3009, %v2875
        %v3016 = vadd.f32 %v3012, %v2876
        %3017 = vst.msk [vmem:[#allocation2] sm:$0xff] %vm1178, %v3015
        %3018 = vst.msk [vmem:[#allocation2 + $0x8] sm:$0xff] %vm1178, %v3016
        %p3019 = scmp.eq.s32.totalorder %s59, 1
        // Predicated region
        $region169: #{tpu_custom_call.1} parent=95 // pred_check
          %p3020 = pneg %p3019
        $region170: #{tpu_custom_call.1} parent=95 // pred_check_branch
          %3022 = sbr.rel (%p3020) target = $region172
        $region171: #{tpu_custom_call.1} parent=95 // pred_region
          %v3023 = vld [vmem:[#allocation27] sm:$0x1]
          %v3024 = vld [vmem:[#allocation29] sm:$0x1]
          %v3025 = vsel %vm1178, %v3015, 0.0
          %3026 = vadd.xlane.f32.xlu0 %v3025
          %v3027 = vpop.xlane.xlu0 %3026
          %v3028 = vsel %vm1178, %v3016, 0.0
          %3029 = vadd.xlane.f32.xlu0 %v3028
          %v3030 = vpop.xlane.xlu0 %3029
          %v3031 = vmul.f32 %v3027, %v1185
          %v3032 = vmul.f32 %v3030, %v1185
          %v3033 = vsub.f32 %v3015, %v3031
          %v3034 = vsub.f32 %v3016, %v3032
          %v3035 = vmul.f32 %v3033, %v3033
          %v3036 = vmul.f32 %v3034, %v3034
          %v3037 = vsel %vm1178, %v3035, 0.0
          %3038 = vadd.xlane.f32.xlu0 %v3037
          %v3039 = vpop.xlane.xlu0 %3038
          %v3040 = vsel %vm1178, %v3036, 0.0
          %3041 = vadd.xlane.f32.xlu0 %v3040
          %v3042 = vpop.xlane.xlu0 %3041
          %v3043 = vmul.f32 %v3039, %v1185
          %v3044 = vmul.f32 %v3042, %v1185
          %v3045 = vadd.f32 %v3043, 1e-08
          %v3046 = vadd.f32 %v3044, 1e-08
          %v3047 = vrsqrt.pop %v3045
          %v3048 = vrsqrt.pop %v3046
          %v3049 = vmul.f32 %v3033, %v3047
          %v3050 = vmul.f32 %v3034, %v3048
          %v3052 = vlaneseq
          %v3053 = vshrl.u32 %v3052, 7
          %v3054 = vsub.s32 0, %v3053
          %v3055 = vrot.slane %v3023, %v3054
          %v3057 = vmul.f32 %v3049, %v3055
          %v3058 = vmul.f32 %v3050, %v3055
          %v3060 = vlaneseq
          %v3061 = vshrl.u32 %v3060, 7
          %v3062 = vsub.s32 0, %v3061
          %v3063 = vrot.slane %v3024, %v3062
          %v3065 = vadd.f32 %v3057, %v3063
          %v3066 = vadd.f32 %v3058, %v3063
          %v3067 = vld [vmem:[%s1156] sm:$0xff]
          %v3068 = vld [vmem:[%s1156 + $0x8] sm:$0xff]
          %v3069 = vld [vmem:[%s1162] sm:$0xff]
          %v3070 = vld [vmem:[%s1162 + $0x8] sm:$0xff]
          %v3071 = vmul.f32 %v3065, %v3067
          %v3072 = vmul.f32 %v3066, %v3068
          %v3073 = vsel %vm1178, %v3071, 0.0
          %3074 = vadd.xlane.f32.xlu0 %v3073
          %v3075 = vpop.xlane.xlu0 %3074
          %v3076 = vsel %vm1178, %v3072, 0.0
          %3077 = vadd.xlane.f32.xlu0 %v3076
          %v3078 = vpop.xlane.xlu0 %3077
          %v3079 = vmul.f32 %v3065, %v3069
          %v3080 = vmul.f32 %v3066, %v3070
          %v3081 = vsel %vm1178, %v3079, 0.0
          %3082 = vadd.xlane.f32.xlu0 %v3081
          %v3083 = vpop.xlane.xlu0 %3082
          %v3084 = vsel %vm1178, %v3080, 0.0
          %3085 = vadd.xlane.f32.xlu0 %v3084
          %v3086 = vpop.xlane.xlu0 %3085
          %v3089 = vlaneseq
          %v3090 = vshrl.u32 %v3089, 7
          %v3091 = vsub.s32 %v2099, %v3090
          %v3092 = vrot.slane %v3075, %v3091
          %v3093 = vadd.s32 %v2099, 4294967288
          %v3094 = vlaneseq
          %v3095 = vshrl.u32 %v3094, 7
          %v3096 = vsub.s32 %v3093, %v3095
          %v3097 = vrot.slane %v3078, %v3096
          %vm3098 = vcmask 130112
          %v3099 = vsel %vm3098, %v3097, %v3092
          %v3103 = vlaneseq
          %v3104 = vshrl.u32 %v3103, 7
          %v3105 = vsub.s32 %v2099, %v3104
          %v3106 = vrot.slane %v3083, %v3105
          %v3107 = vlaneseq
          %v3108 = vshrl.u32 %v3107, 7
          %v3109 = vsub.s32 %v3093, %v3108
          %v3110 = vrot.slane %v3086, %v3109
          %v3111 = vsel %vm3098, %v3110, %v3106
          %vm3113 = vcmask 1040384
          %v3114 = vsel %vm3113, %v3099, %v3111
          %v3115 = vsel %vm2102, %v3114, 0.0
          %3116 = vst [vmem:[#allocation30] sm:$0x3] %v3115
        $region172: #{tpu_custom_call.1} parent=95 // pred_fallthru
          _
        // Predicated region
        $region173: #{tpu_custom_call.1} parent=95 // pred_check
          %p3117 = pneg %p568
        $region174: #{tpu_custom_call.1} parent=95 // pred_check_branch
          %3119 = sbr.rel (%p3117) target = $region176
        $region175: #{tpu_custom_call.1} parent=95 // pred_region
          %s3121 = ssub.s32 32, 32
          %3122 = vsyncadd [#allocation5], %s3121
          %s3123 = smul.addr %s58, 32
          %s3124 = scalar_lea.hbm %s19, %s3123
          %s3126 = sshll.u32 [#allocation30], 4
          %s3127 = int_to_ptr.vmem [resolvable:$true] %s3126
          %3129 = dma.vmem_to_hbm [thread:$0]  %s3127, 32, %s3124, [#allocation5]
        $region176: #{tpu_custom_call.1} parent=95 // pred_fallthru
          _
        // Predicated region
        $region177: #{tpu_custom_call.1} parent=95 // pred_check
          %p3130 = pneg %p568
        $region178: #{tpu_custom_call.1} parent=95 // pred_check_branch
          %3132 = sbr.rel (%p3130) target = $region180
        $region179: #{tpu_custom_call.1} parent=95 // pred_region
          %3133 = dma.done [#allocation5], 32
        $region180: #{tpu_custom_call.1} parent=95 // pred_fallthru
          _
      $region96: #{tpu_custom_call.1} parent=5 // pred_fallthru
        _
      %p3134 = scmp.le.s32.totalorder 2, %s49
      // Predicated region
      $region181: #{tpu_custom_call.1} parent=5 // pred_check
        %p3135 = pneg %p3134
      $region182: #{tpu_custom_call.1} parent=5 // pred_check_branch
        %3137 = sbr.rel (%p3135) target = $region184
      $region183: #{tpu_custom_call.1} parent=5 // pred_region
        %s3138 = ssub.s32 %s49, 2
      $region184: #{tpu_custom_call.1} parent=5 // pred_fallthru
        _
    $region6: #{tpu_custom_call.1} parent=1 // loop_footer
      %s53 = sadd.s32 1, %s49
    $region7: #{tpu_custom_call.1} parent=1 // loop_footer_branch
      %48 = sbr.rel target = $region3
    $region8: #{tpu_custom_call.1} parent=1 // loop_exit
      _
    %3139 = vsyncpa [#allocation4], 1
    %s3140 = scalar_lea.sflag [#allocation4], 1
    %3141 = vsyncpa %s3140, 1
    %3142 = vsyncpa [#allocation7], 1
    %s3143 = scalar_lea.sflag [#allocation7], 1
    %3144 = vsyncpa %s3143, 1
    %3145 = vsyncpa [#allocation10], 1
    %s3146 = scalar_lea.sflag [#allocation10], 1
    %3147 = vsyncpa %s3146, 1
    %3148 = vsyncpa [#allocation13], 1
    %s3149 = scalar_lea.sflag [#allocation13], 1
    %3150 = vsyncpa %s3149, 1
    %3151 = vsyncpa [#allocation16], 1
    %s3152 = scalar_lea.sflag [#allocation16], 1
    %3153 = vsyncpa %s3152, 1
    %3154 = vsyncpa [#allocation19], 1
    %s3155 = scalar_lea.sflag [#allocation19], 1
    %3156 = vsyncpa %s3155, 1
    %3157 = vsyncpa [#allocation22], 1
    %s3158 = scalar_lea.sflag [#allocation22], 1
    %3159 = vsyncpa %s3158, 1
    %3160 = vsyncpa [#allocation25], 1
    %s3161 = scalar_lea.sflag [#allocation25], 1
    %3162 = vsyncpa %s3161, 1
    %3163 = vsyncpa [#allocation28], 1
    %3164 = vsyncpa [#allocation5], 1
    %s3165 = scalar_lea.sflag [#allocation5], 1
    %3166 = vsyncpa %s3165, 1

</llo_original>
